<compile_context>
chip_gen: v5e
topology: v5e:2x2
jax: 0.10.0
libtpu: 0.0.40
codegen_flags: <defaults>
</compile_context>

<pallas_src>
import math
import functools

import jax
import jax.numpy as jnp
from jax import lax
from jax.experimental import pallas as pl
from jax.experimental.pallas import tpu as pltpu


def _gelu_tanh(x):
    # GeLU exactly as the PyTorch GeLU module (tanh approximation).
    c = math.sqrt(2.0 / math.pi)
    return 0.5 * x * (1.0 + jnp.tanh(c * (x + 0.044715 * x * x * x)))


def gcn_layer_kernel(x_ref, mask_ref, adj_ref,
                     wr_ref, br_ref, ws_ref, bs_ref, wa_ref, ba_ref,
                     out_ref, *, num_hop, num_rel):
    # TODO(synk): nn.Dropout (node dropout) and edge dropout are identity in eval mode
    # (dropout p only matters in training); stochastic training-mode dropout not implemented.
    Bt, N, _ = adj_ref.shape                 # adjacency block (Bt, N, R*N), bf16, cols pre-masked
    M, P = out_ref.shape                     # M = Bt * N flattened node rows, P = proj_dim

    # Hoisted once per grid step (JAX does not CSE broadcast_in_dim).
    m_p = jnp.broadcast_to(mask_ref[...], (M, P))           # (M, P) f32 node mask

    def hop(_, cur):                                         # cur: (M, P) f32
        cur_bf = cur.astype(jnp.bfloat16)

        # Fused relation projections: ONE (M, D) x (D, R*P) bf16 MXU matmul, f32 accumulation.
        # The source-node mask is already folded into the adjacency columns, so h stays unmasked.
        h_all = jnp.dot(cur_bf, wr_ref[...],
                        preferred_element_type=jnp.float32) + br_ref[...]
        h_bf = h_all.astype(jnp.bfloat16)                    # (M, R*P)

        # Self projection, masked per node.
        upd_self = (jnp.dot(cur_bf, ws_ref[...],
                            preferred_element_type=jnp.float32) + bs_ref[...]) * m_p

        # Message passing: one (N, R*N) x (R*N, P) dot per batch (K = R*N), register
        # accumulation, single full-tile result (no scratch read-modify-write).
        rows = []
        for b in range(Bt):
            hb = h_bf[b * N:(b + 1) * N]                     # (N, R*P)
            h_cat = jnp.concatenate(
                [hb[:, r * P:(r + 1) * P] for r in range(num_rel)], axis=0)   # (R*N, P)
            rows.append(jnp.dot(adj_ref[b], h_cat,
                                preferred_element_type=jnp.float32))          # (N, P) f32
        upd = jnp.concatenate(rows, axis=0) + upd_self       # (M, P) f32

        # Gate: single fused K = 2P matmul on [update, cur] against [Wa_u; Wa_x].
        gate_lhs = jnp.concatenate([upd.astype(jnp.bfloat16), cur_bf], axis=1)  # (M, 2P)
        gate_pre = jnp.dot(gate_lhs, wa_ref[...],
                           preferred_element_type=jnp.float32) + ba_ref[...]
        gate = jax.nn.sigmoid(gate_pre) * m_p

        return gate * _gelu_tanh(upd) + (1.0 - gate) * cur

    cur = lax.fori_loop(0, num_hop, hop, x_ref[...])         # hop state carried in registers/VMEM
    out_ref[...] = cur.astype(out_ref.dtype)


def _choose_batch_block(batch, n_nodes):
    # Fill >= 256 MXU rows per grid step when possible, but keep >= 2 grid steps so v7x's
    # second TensorCore is used (dimension_semantics=("parallel",)).
    divs = [d for d in range(1, batch + 1) if batch % d == 0]
    multi_step = [d for d in divs if batch // d >= 2] or divs
    big = [d for d in multi_step if d * n_nodes >= 256]
    return min(big) if big else max(multi_step)


def gcn_layer_forward(x, mask, adj, params, *, num_hop=3, batch_block=None):
    B, N, D = x.shape
    R = adj.shape[1]
    P = params["ws"].shape[1]
    assert D == P, "gcnLayer with num_hop > 1 requires input_dim == proj_dim"

    Bt = _choose_batch_block(B, N) if batch_block is None else batch_block
    assert B % Bt == 0, "batch_block must divide the batch size"
    M = Bt * N

    # One-time host-side layout work:
    #  * flatten nodes -> (B*N, D) so every weight matmul is one big MXU call per block;
    #  * fold the source-node mask into the adjacency columns (exact: mask and adj are 0/1)
    #    and concatenate the R relations along the contraction axis -> (B, N, R*N);
    #  * fuse the R relation weights into (D, R*P) and the gate weight into (2P, P);
    #  * MXU operands in bf16, biases / mask / activations stay f32.
    x_flat = x.reshape(B * N, D).astype(jnp.float32)
    mask_flat = mask.reshape(B * N, 1).astype(jnp.float32)
    adj_masked = adj.astype(jnp.float32) * mask[:, None, None, :].astype(jnp.float32)
    adj_cat = jnp.transpose(adj_masked, (0, 2, 1, 3)).reshape(B, N, R * N).astype(jnp.bfloat16)
    wr_cat = jnp.transpose(params["wr"], (1, 0, 2)).reshape(D, R * P).astype(jnp.bfloat16)
    br_cat = params["br"].reshape(1, R * P).astype(jnp.float32)
    ws = params["ws"].astype(jnp.bfloat16)
    bs = params["bs"].astype(jnp.float32)
    wa_cat = jnp.concatenate([params["wau"], params["wax"]], axis=0).astype(jnp.bfloat16)
    ba = params["ba"].astype(jnp.float32)

    kernel = functools.partial(gcn_layer_kernel, num_hop=num_hop, num_rel=R)

    out_flat = pl.pallas_call(
        kernel,
        out_shape=jax.ShapeDtypeStruct((B * N, P), jnp.float32),
        grid=(B // Bt,),
        in_specs=[
            pl.BlockSpec((M, D), lambda b: (b, 0)),               # x (flattened node rows)
            pl.BlockSpec((M, 1), lambda b: (b, 0)),               # node mask
            pl.BlockSpec((Bt, N, R * N), lambda b: (b, 0, 0)),    # adjacency, relations on K
            pl.BlockSpec((D, R * P), lambda b: (0, 0)),           # Wr fused (bf16)
            pl.BlockSpec((1, R * P), lambda b: (0, 0)),           # br fused
            pl.BlockSpec((D, P), lambda b: (0, 0)),               # Ws (bf16)
            pl.BlockSpec((1, P), lambda b: (0, 0)),               # bs
            pl.BlockSpec((2 * P, P), lambda b: (0, 0)),           # [Wa_u; Wa_x] (bf16)
            pl.BlockSpec((1, P), lambda b: (0, 0)),               # ba
        ],
        out_specs=pl.BlockSpec((M, P), lambda b: (b, 0)),
        compiler_params=pltpu.CompilerParams(
            dimension_semantics=("parallel",),
            vmem_limit_bytes=32 * 1024 * 1024),
    )(x_flat, mask_flat, adj_cat, wr_cat, br_cat, ws, bs, wa_cat, ba)

    return out_flat.reshape(B, N, P)


def gcn_layer_reference(x, mask, adj, params, *, num_hop=3, mxu_dtype=jnp.float32):
    """Pure-JAX reference mirroring the PyTorch forward (eval mode).

    mxu_dtype=float32: exact f32 module semantics.
    mxu_dtype=bfloat16: mirrors the kernel's MXU casts (bf16 operands, f32 accumulation).
    """
    m = mask[..., None].astype(jnp.float32)
    cur = x.astype(jnp.float32)
    R = adj.shape[1]
    wr = params["wr"].astype(mxu_dtype)
    ws = params["ws"].astype(mxu_dtype)
    wau = params["wau"].astype(mxu_dtype)
    wax = params["wax"].astype(mxu_dtype)
    adj_c = adj.astype(mxu_dtype)
    for _ in range(num_hop):
        cur_c = cur.astype(mxu_dtype)
        nb = jnp.stack(
            [(jnp.einsum("bnd,dp->bnp", cur_c, wr[r],
                         preferred_element_type=jnp.float32) + params["br"][r]) * m
             for r in range(R)], axis=1)                                # (B, R, N, P)
        upd = jnp.einsum("brnm,brmp->bnp", adj_c, nb.astype(mxu_dtype),
                         preferred_element_type=jnp.float32)
        upd = upd + (jnp.einsum("bnd,dp->bnp", cur_c, ws,
                                preferred_element_type=jnp.float32) + params["bs"]) * m
        gate = jax.nn.sigmoid(
            jnp.einsum("bnp,pq->bnq", upd.astype(mxu_dtype), wau,
                       preferred_element_type=jnp.float32)
            + jnp.einsum("bnd,dp->bnp", cur_c, wax,
                         preferred_element_type=jnp.float32)
            + params["ba"]) * m
        cur = gate * _gelu_tanh(upd) + (1.0 - gate) * cur
    return cur


def init_params(key, input_dim, proj_dim, num_rel):
    ks = jax.random.split(key, 7)
    s_in = 1.0 / math.sqrt(input_dim)
    s_cat = 1.0 / math.sqrt(input_dim + proj_dim)
    return {
        "wr": jax.random.uniform(ks[0], (num_rel, input_dim, proj_dim),
                                 jnp.float32, -s_in, s_in),
        "br": jax.random.uniform(ks[1], (num_rel, 1, proj_dim),
                                 jnp.float32, -s_in, s_in),
        "ws": jax.random.uniform(ks[2], (input_dim, proj_dim),
                                 jnp.float32, -s_in, s_in),
        "bs": jax.random.uniform(ks[3], (1, proj_dim), jnp.float32, -s_in, s_in),
        # Wa acts on cat(update, cur): update half (wau) and cur half (wax).
        "wau": jax.random.uniform(ks[4], (proj_dim, proj_dim),
                                  jnp.float32, -s_cat, s_cat),
        "wax": jax.random.uniform(ks[5], (input_dim, proj_dim),
                                  jnp.float32, -s_cat, s_cat),
        "ba": jax.random.uniform(ks[6], (1, proj_dim), jnp.float32, -s_cat, s_cat),
    }


if __name__ == "__main__":
    # Lane-dense feature dim (D = proj_dim = 128).  Bt is auto-chosen: 8 batches per grid
    # step -> M = 256 rows per step, 2 grid steps (keeps both v7x TensorCores busy).
    B, N, D, R, NUM_HOP = 16, 32, 128, 3, 3

    key = jax.random.PRNGKey(0)
    kx, km, ka, kp = jax.random.split(key, 4)

    x = jax.random.normal(kx, (B, N, D), jnp.float32)
    mask = (jax.random.uniform(km, (B, N)) > 0.15).astype(jnp.float32)      # binary node mask
    adj = (jax.random.uniform(ka, (B, R, N, N)) > 0.6).astype(jnp.float32)  # binary adjacency

    params = init_params(kp, D, D, R)

    out = gcn_layer_forward(x, mask, adj, params, num_hop=NUM_HOP)
    out = jax.block_until_ready(out)
    assert out.shape == (B, N, D)
    assert bool(jnp.all(jnp.isfinite(out)))

    # 1) Elementwise check against a reference that mirrors the kernel's bf16 MXU casts.
    #    Tolerance accounts for accumulation-order and in-kernel vs XLA transcendental
    #    differences compounded over num_hop hops (a structural bug would give O(1) errors).
    ref_bf16 = gcn_layer_reference(x, mask, adj, params, num_hop=NUM_HOP,
                                   mxu_dtype=jnp.bfloat16)
    assert jnp.allclose(out, ref_bf16, atol=3e-2, rtol=3e-2), \
        "mismatch vs bf16-MXU JAX reference"

    # 2) Global relative-L2 check against the exact f32 PyTorch semantics
    #    (bf16 rounding of MXU operands is the only intended difference).
    ref_f32 = gcn_layer_reference(x, mask, adj, params, num_hop=NUM_HOP,
                                  mxu_dtype=jnp.float32)
    rel_err = jnp.sqrt(jnp.sum((out - ref_f32) ** 2)
                       / jnp.maximum(jnp.sum(ref_f32 ** 2), 1e-12))
    assert float(rel_err) < 5e-2, "relative error vs f32 JAX reference too large"

    print("KERNEL_OK")
</pallas_src>

<mosaic_0001>
module attributes {stable_mosaic.version = 11 : i64} {
  func.func @gcn_layer_kernel(%arg0: i32, %arg1: memref<256x128xf32, #tpu.memory_space<vmem>>, %arg2: memref<256x1xf32, #tpu.memory_space<vmem>>, %arg3: memref<8x32x96xbf16, #tpu.memory_space<vmem>>, %arg4: memref<128x384xbf16, #tpu.memory_space<vmem>>, %arg5: memref<1x384xf32, #tpu.memory_space<vmem>>, %arg6: memref<128x128xbf16, #tpu.memory_space<vmem>>, %arg7: memref<1x128xf32, #tpu.memory_space<vmem>>, %arg8: memref<256x128xbf16, #tpu.memory_space<vmem>>, %arg9: memref<1x128xf32, #tpu.memory_space<vmem>>, %arg10: memref<256x128xf32, #tpu.memory_space<vmem>>) attributes {dimension_semantics = [#tpu.dimension_semantics<parallel>], iteration_bounds = array<i64: 2>, scalar_prefetch = 0 : i64, scratch_operands = 0 : i64, tpu.core_type = #tpu.core_type<tc>, window_params = [{transform_indices = @transform_0, window_bounds = array<i64: 256, 128>}, {transform_indices = @transform_1, window_bounds = array<i64: 256, 1>}, {transform_indices = @transform_2, window_bounds = array<i64: 8, 32, 96>}, {pipeline_mode = #tpu.pipeline_mode<synchronous>, transform_indices = @transform_3, window_bounds = array<i64: 128, 384>}, {pipeline_mode = #tpu.pipeline_mode<synchronous>, transform_indices = @transform_4, window_bounds = array<i64: 1, 384>}, {pipeline_mode = #tpu.pipeline_mode<synchronous>, transform_indices = @transform_5, window_bounds = array<i64: 128, 128>}, {pipeline_mode = #tpu.pipeline_mode<synchronous>, transform_indices = @transform_6, window_bounds = array<i64: 1, 128>}, {pipeline_mode = #tpu.pipeline_mode<synchronous>, transform_indices = @transform_7, window_bounds = array<i64: 256, 128>}, {pipeline_mode = #tpu.pipeline_mode<synchronous>, transform_indices = @transform_8, window_bounds = array<i64: 1, 128>}, {transform_indices = @transform_9, window_bounds = array<i64: 256, 128>}]} {
    %c0 = arith.constant 0 : index
    %c0_0 = arith.constant 0 : index
    %0 = vector.load %arg2[%c0, %c0_0] : memref<256x1xf32, #tpu.memory_space<vmem>>, vector<256x1xf32>
    %1 = vector.shape_cast %0 : vector<256x1xf32> to vector<256x1xf32>
    %2 = vector.broadcast %1 : vector<256x1xf32> to vector<256x128xf32>
    %c0_1 = arith.constant 0 : index
    %c0_2 = arith.constant 0 : index
    %3 = vector.load %arg1[%c0_1, %c0_2] : memref<256x128xf32, #tpu.memory_space<vmem>>, vector<256x128xf32>
    %c0_i32 = arith.constant 0 : i32
    %c3_i32 = arith.constant 3 : i32
    %4 = arith.addi %c0_i32, %c3_i32 : i32
    %c1_i32 = arith.constant 1 : i32
    %5 = scf.for %arg11 = %c0_i32 to %4 step %c1_i32 iter_args(%arg12 = %3) -> (vector<256x128xf32>)  : i32 {
      %7 = arith.truncf %arg12 : vector<256x128xf32> to vector<256x128xbf16>
      %c0_5 = arith.constant 0 : index
      %c0_6 = arith.constant 0 : index
      %8 = vector.load %arg4[%c0_5, %c0_6] : memref<128x384xbf16, #tpu.memory_space<vmem>>, vector<128x384xbf16>
      %cst = arith.constant dense<0.000000e+00> : vector<256x384xf32>
      %9 = tpu.matmul %7, %8, %cst {dimension_numbers = #tpu.dot_dimension_numbers<[1], [0], [0], [1], [0, 0, 1, 1], [], []>} : vector<256x128xbf16>, vector<128x384xbf16>, vector<256x384xf32> -> vector<256x384xf32>
      %c0_7 = arith.constant 0 : index
      %c0_8 = arith.constant 0 : index
      %10 = vector.load %arg5[%c0_7, %c0_8] : memref<1x384xf32, #tpu.memory_space<vmem>>, vector<1x384xf32>
      %11 = vector.broadcast %10 : vector<1x384xf32> to vector<256x384xf32>
      %12 = arith.addf %9, %11 : vector<256x384xf32>
      %13 = arith.truncf %12 : vector<256x384xf32> to vector<256x384xbf16>
      %c0_9 = arith.constant 0 : index
      %c0_10 = arith.constant 0 : index
      %14 = vector.load %arg6[%c0_9, %c0_10] : memref<128x128xbf16, #tpu.memory_space<vmem>>, vector<128x128xbf16>
      %cst_11 = arith.constant dense<0.000000e+00> : vector<256x128xf32>
      %15 = tpu.matmul %7, %14, %cst_11 {dimension_numbers = #tpu.dot_dimension_numbers<[1], [0], [0], [1], [0, 0, 1, 1], [], []>} : vector<256x128xbf16>, vector<128x128xbf16>, vector<256x128xf32> -> vector<256x128xf32>
      %c0_12 = arith.constant 0 : index
      %c0_13 = arith.constant 0 : index
      %16 = vector.load %arg7[%c0_12, %c0_13] : memref<1x128xf32, #tpu.memory_space<vmem>>, vector<1x128xf32>
      %17 = vector.broadcast %16 : vector<1x128xf32> to vector<256x128xf32>
      %18 = arith.addf %15, %17 : vector<256x128xf32>
      %19 = arith.mulf %18, %2 : vector<256x128xf32>
      %20 = vector.extract_strided_slice %13 {offsets = [0, 0], sizes = [32, 384], strides = [1, 1]} : vector<256x384xbf16> to vector<32x384xbf16>
      %21 = vector.extract_strided_slice %20 {offsets = [0, 0], sizes = [32, 128], strides = [1, 1]} : vector<32x384xbf16> to vector<32x128xbf16>
      %22 = vector.extract_strided_slice %20 {offsets = [0, 128], sizes = [32, 128], strides = [1, 1]} : vector<32x384xbf16> to vector<32x128xbf16>
      %23 = vector.extract_strided_slice %20 {offsets = [0, 256], sizes = [32, 128], strides = [1, 1]} : vector<32x384xbf16> to vector<32x128xbf16>
      %24 = tpu.concatenate %21, %22, %23 in 0 : vector<32x128xbf16>, vector<32x128xbf16>, vector<32x128xbf16> -> vector<96x128xbf16>
      %c0_14 = arith.constant 0 : index
      %c0_15 = arith.constant 0 : index
      %c0_16 = arith.constant 0 : index
      %25 = vector.load %arg3[%c0_14, %c0_15, %c0_16] : memref<8x32x96xbf16, #tpu.memory_space<vmem>>, vector<1x32x96xbf16>
      %26 = vector.shape_cast %25 : vector<1x32x96xbf16> to vector<32x96xbf16>
      %cst_17 = arith.constant dense<0.000000e+00> : vector<32x128xf32>
      %27 = tpu.matmul %26, %24, %cst_17 {dimension_numbers = #tpu.dot_dimension_numbers<[1], [0], [0], [1], [0, 0, 1, 1], [], []>} : vector<32x96xbf16>, vector<96x128xbf16>, vector<32x128xf32> -> vector<32x128xf32>
      %28 = vector.extract_strided_slice %13 {offsets = [32, 0], sizes = [32, 384], strides = [1, 1]} : vector<256x384xbf16> to vector<32x384xbf16>
      %29 = vector.extract_strided_slice %28 {offsets = [0, 0], sizes = [32, 128], strides = [1, 1]} : vector<32x384xbf16> to vector<32x128xbf16>
      %30 = vector.extract_strided_slice %28 {offsets = [0, 128], sizes = [32, 128], strides = [1, 1]} : vector<32x384xbf16> to vector<32x128xbf16>
      %31 = vector.extract_strided_slice %28 {offsets = [0, 256], sizes = [32, 128], strides = [1, 1]} : vector<32x384xbf16> to vector<32x128xbf16>
      %32 = tpu.concatenate %29, %30, %31 in 0 : vector<32x128xbf16>, vector<32x128xbf16>, vector<32x128xbf16> -> vector<96x128xbf16>
      %c1 = arith.constant 1 : index
      %c0_18 = arith.constant 0 : index
      %c0_19 = arith.constant 0 : index
      %33 = vector.load %arg3[%c1, %c0_18, %c0_19] : memref<8x32x96xbf16, #tpu.memory_space<vmem>>, vector<1x32x96xbf16>
      %34 = vector.shape_cast %33 : vector<1x32x96xbf16> to vector<32x96xbf16>
      %cst_20 = arith.constant dense<0.000000e+00> : vector<32x128xf32>
      %35 = tpu.matmul %34, %32, %cst_20 {dimension_numbers = #tpu.dot_dimension_numbers<[1], [0], [0], [1], [0, 0, 1, 1], [], []>} : vector<32x96xbf16>, vector<96x128xbf16>, vector<32x128xf32> -> vector<32x128xf32>
      %36 = vector.extract_strided_slice %13 {offsets = [64, 0], sizes = [32, 384], strides = [1, 1]} : vector<256x384xbf16> to vector<32x384xbf16>
      %37 = vector.extract_strided_slice %36 {offsets = [0, 0], sizes = [32, 128], strides = [1, 1]} : vector<32x384xbf16> to vector<32x128xbf16>
      %38 = vector.extract_strided_slice %36 {offsets = [0, 128], sizes = [32, 128], strides = [1, 1]} : vector<32x384xbf16> to vector<32x128xbf16>
      %39 = vector.extract_strided_slice %36 {offsets = [0, 256], sizes = [32, 128], strides = [1, 1]} : vector<32x384xbf16> to vector<32x128xbf16>
      %40 = tpu.concatenate %37, %38, %39 in 0 : vector<32x128xbf16>, vector<32x128xbf16>, vector<32x128xbf16> -> vector<96x128xbf16>
      %c2 = arith.constant 2 : index
      %c0_21 = arith.constant 0 : index
      %c0_22 = arith.constant 0 : index
      %41 = vector.load %arg3[%c2, %c0_21, %c0_22] : memref<8x32x96xbf16, #tpu.memory_space<vmem>>, vector<1x32x96xbf16>
      %42 = vector.shape_cast %41 : vector<1x32x96xbf16> to vector<32x96xbf16>
      %cst_23 = arith.constant dense<0.000000e+00> : vector<32x128xf32>
      %43 = tpu.matmul %42, %40, %cst_23 {dimension_numbers = #tpu.dot_dimension_numbers<[1], [0], [0], [1], [0, 0, 1, 1], [], []>} : vector<32x96xbf16>, vector<96x128xbf16>, vector<32x128xf32> -> vector<32x128xf32>
      %44 = vector.extract_strided_slice %13 {offsets = [96, 0], sizes = [32, 384], strides = [1, 1]} : vector<256x384xbf16> to vector<32x384xbf16>
      %45 = vector.extract_strided_slice %44 {offsets = [0, 0], sizes = [32, 128], strides = [1, 1]} : vector<32x384xbf16> to vector<32x128xbf16>
      %46 = vector.extract_strided_slice %44 {offsets = [0, 128], sizes = [32, 128], strides = [1, 1]} : vector<32x384xbf16> to vector<32x128xbf16>
      %47 = vector.extract_strided_slice %44 {offsets = [0, 256], sizes = [32, 128], strides = [1, 1]} : vector<32x384xbf16> to vector<32x128xbf16>
      %48 = tpu.concatenate %45, %46, %47 in 0 : vector<32x128xbf16>, vector<32x128xbf16>, vector<32x128xbf16> -> vector<96x128xbf16>
      %c3 = arith.constant 3 : index
      %c0_24 = arith.constant 0 : index
      %c0_25 = arith.constant 0 : index
      %49 = vector.load %arg3[%c3, %c0_24, %c0_25] : memref<8x32x96xbf16, #tpu.memory_space<vmem>>, vector<1x32x96xbf16>
      %50 = vector.shape_cast %49 : vector<1x32x96xbf16> to vector<32x96xbf16>
      %cst_26 = arith.constant dense<0.000000e+00> : vector<32x128xf32>
      %51 = tpu.matmul %50, %48, %cst_26 {dimension_numbers = #tpu.dot_dimension_numbers<[1], [0], [0], [1], [0, 0, 1, 1], [], []>} : vector<32x96xbf16>, vector<96x128xbf16>, vector<32x128xf32> -> vector<32x128xf32>
      %52 = vector.extract_strided_slice %13 {offsets = [128, 0], sizes = [32, 384], strides = [1, 1]} : vector<256x384xbf16> to vector<32x384xbf16>
      %53 = vector.extract_strided_slice %52 {offsets = [0, 0], sizes = [32, 128], strides = [1, 1]} : vector<32x384xbf16> to vector<32x128xbf16>
      %54 = vector.extract_strided_slice %52 {offsets = [0, 128], sizes = [32, 128], strides = [1, 1]} : vector<32x384xbf16> to vector<32x128xbf16>
      %55 = vector.extract_strided_slice %52 {offsets = [0, 256], sizes = [32, 128], strides = [1, 1]} : vector<32x384xbf16> to vector<32x128xbf16>
      %56 = tpu.concatenate %53, %54, %55 in 0 : vector<32x128xbf16>, vector<32x128xbf16>, vector<32x128xbf16> -> vector<96x128xbf16>
      %c4 = arith.constant 4 : index
      %c0_27 = arith.constant 0 : index
      %c0_28 = arith.constant 0 : index
      %57 = vector.load %arg3[%c4, %c0_27, %c0_28] : memref<8x32x96xbf16, #tpu.memory_space<vmem>>, vector<1x32x96xbf16>
      %58 = vector.shape_cast %57 : vector<1x32x96xbf16> to vector<32x96xbf16>
      %cst_29 = arith.constant dense<0.000000e+00> : vector<32x128xf32>
      %59 = tpu.matmul %58, %56, %cst_29 {dimension_numbers = #tpu.dot_dimension_numbers<[1], [0], [0], [1], [0, 0, 1, 1], [], []>} : vector<32x96xbf16>, vector<96x128xbf16>, vector<32x128xf32> -> vector<32x128xf32>
      %60 = vector.extract_strided_slice %13 {offsets = [160, 0], sizes = [32, 384], strides = [1, 1]} : vector<256x384xbf16> to vector<32x384xbf16>
      %61 = vector.extract_strided_slice %60 {offsets = [0, 0], sizes = [32, 128], strides = [1, 1]} : vector<32x384xbf16> to vector<32x128xbf16>
      %62 = vector.extract_strided_slice %60 {offsets = [0, 128], sizes = [32, 128], strides = [1, 1]} : vector<32x384xbf16> to vector<32x128xbf16>
      %63 = vector.extract_strided_slice %60 {offsets = [0, 256], sizes = [32, 128], strides = [1, 1]} : vector<32x384xbf16> to vector<32x128xbf16>
      %64 = tpu.concatenate %61, %62, %63 in 0 : vector<32x128xbf16>, vector<32x128xbf16>, vector<32x128xbf16> -> vector<96x128xbf16>
      %c5 = arith.constant 5 : index
      %c0_30 = arith.constant 0 : index
      %c0_31 = arith.constant 0 : index
      %65 = vector.load %arg3[%c5, %c0_30, %c0_31] : memref<8x32x96xbf16, #tpu.memory_space<vmem>>, vector<1x32x96xbf16>
      %66 = vector.shape_cast %65 : vector<1x32x96xbf16> to vector<32x96xbf16>
      %cst_32 = arith.constant dense<0.000000e+00> : vector<32x128xf32>
      %67 = tpu.matmul %66, %64, %cst_32 {dimension_numbers = #tpu.dot_dimension_numbers<[1], [0], [0], [1], [0, 0, 1, 1], [], []>} : vector<32x96xbf16>, vector<96x128xbf16>, vector<32x128xf32> -> vector<32x128xf32>
      %68 = vector.extract_strided_slice %13 {offsets = [192, 0], sizes = [32, 384], strides = [1, 1]} : vector<256x384xbf16> to vector<32x384xbf16>
      %69 = vector.extract_strided_slice %68 {offsets = [0, 0], sizes = [32, 128], strides = [1, 1]} : vector<32x384xbf16> to vector<32x128xbf16>
      %70 = vector.extract_strided_slice %68 {offsets = [0, 128], sizes = [32, 128], strides = [1, 1]} : vector<32x384xbf16> to vector<32x128xbf16>
      %71 = vector.extract_strided_slice %68 {offsets = [0, 256], sizes = [32, 128], strides = [1, 1]} : vector<32x384xbf16> to vector<32x128xbf16>
      %72 = tpu.concatenate %69, %70, %71 in 0 : vector<32x128xbf16>, vector<32x128xbf16>, vector<32x128xbf16> -> vector<96x128xbf16>
      %c6 = arith.constant 6 : index
      %c0_33 = arith.constant 0 : index
      %c0_34 = arith.constant 0 : index
      %73 = vector.load %arg3[%c6, %c0_33, %c0_34] : memref<8x32x96xbf16, #tpu.memory_space<vmem>>, vector<1x32x96xbf16>
      %74 = vector.shape_cast %73 : vector<1x32x96xbf16> to vector<32x96xbf16>
      %cst_35 = arith.constant dense<0.000000e+00> : vector<32x128xf32>
      %75 = tpu.matmul %74, %72, %cst_35 {dimension_numbers = #tpu.dot_dimension_numbers<[1], [0], [0], [1], [0, 0, 1, 1], [], []>} : vector<32x96xbf16>, vector<96x128xbf16>, vector<32x128xf32> -> vector<32x128xf32>
      %76 = vector.extract_strided_slice %13 {offsets = [224, 0], sizes = [32, 384], strides = [1, 1]} : vector<256x384xbf16> to vector<32x384xbf16>
      %77 = vector.extract_strided_slice %76 {offsets = [0, 0], sizes = [32, 128], strides = [1, 1]} : vector<32x384xbf16> to vector<32x128xbf16>
      %78 = vector.extract_strided_slice %76 {offsets = [0, 128], sizes = [32, 128], strides = [1, 1]} : vector<32x384xbf16> to vector<32x128xbf16>
      %79 = vector.extract_strided_slice %76 {offsets = [0, 256], sizes = [32, 128], strides = [1, 1]} : vector<32x384xbf16> to vector<32x128xbf16>
      %80 = tpu.concatenate %77, %78, %79 in 0 : vector<32x128xbf16>, vector<32x128xbf16>, vector<32x128xbf16> -> vector<96x128xbf16>
      %c7 = arith.constant 7 : index
      %c0_36 = arith.constant 0 : index
      %c0_37 = arith.constant 0 : index
      %81 = vector.load %arg3[%c7, %c0_36, %c0_37] : memref<8x32x96xbf16, #tpu.memory_space<vmem>>, vector<1x32x96xbf16>
      %82 = vector.shape_cast %81 : vector<1x32x96xbf16> to vector<32x96xbf16>
      %cst_38 = arith.constant dense<0.000000e+00> : vector<32x128xf32>
      %83 = tpu.matmul %82, %80, %cst_38 {dimension_numbers = #tpu.dot_dimension_numbers<[1], [0], [0], [1], [0, 0, 1, 1], [], []>} : vector<32x96xbf16>, vector<96x128xbf16>, vector<32x128xf32> -> vector<32x128xf32>
      %84 = tpu.concatenate %27, %35, %43, %51, %59, %67, %75, %83 in 0 : vector<32x128xf32>, vector<32x128xf32>, vector<32x128xf32>, vector<32x128xf32>, vector<32x128xf32>, vector<32x128xf32>, vector<32x128xf32>, vector<32x128xf32> -> vector<256x128xf32>
      %85 = arith.addf %84, %19 : vector<256x128xf32>
      %86 = arith.truncf %85 : vector<256x128xf32> to vector<256x128xbf16>
      %87 = tpu.concatenate %86, %7 in 1 : vector<256x128xbf16>, vector<256x128xbf16> -> vector<256x256xbf16>
      %c0_39 = arith.constant 0 : index
      %c0_40 = arith.constant 0 : index
      %88 = vector.load %arg8[%c0_39, %c0_40] : memref<256x128xbf16, #tpu.memory_space<vmem>>, vector<256x128xbf16>
      %cst_41 = arith.constant dense<0.000000e+00> : vector<256x128xf32>
      %89 = tpu.matmul %87, %88, %cst_41 {dimension_numbers = #tpu.dot_dimension_numbers<[1], [0], [0], [1], [0, 0, 1, 1], [], []>} : vector<256x256xbf16>, vector<256x128xbf16>, vector<256x128xf32> -> vector<256x128xf32>
      %c0_42 = arith.constant 0 : index
      %c0_43 = arith.constant 0 : index
      %90 = vector.load %arg9[%c0_42, %c0_43] : memref<1x128xf32, #tpu.memory_space<vmem>>, vector<1x128xf32>
      %91 = vector.broadcast %90 : vector<1x128xf32> to vector<256x128xf32>
      %92 = arith.addf %89, %91 : vector<256x128xf32>
      %93 = arith.negf %92 : vector<256x128xf32>
      %94 = math.exp %93 : vector<256x128xf32>
      %cst_44 = arith.constant 1.000000e+00 : f32
      %95 = vector.broadcast %cst_44 : f32 to vector<256x128xf32>
      %96 = arith.addf %95, %94 : vector<256x128xf32>
      %97 = arith.divf %95, %96 : vector<256x128xf32>
      %98 = arith.mulf %97, %2 : vector<256x128xf32>
      %cst_45 = arith.constant 5.000000e-01 : f32
      %99 = vector.broadcast %cst_45 : f32 to vector<256x128xf32>
      %100 = arith.mulf %99, %85 : vector<256x128xf32>
      %cst_46 = arith.constant 4.471500e-02 : f32
      %101 = vector.broadcast %cst_46 : f32 to vector<256x128xf32>
      %102 = arith.mulf %101, %85 : vector<256x128xf32>
      %103 = arith.mulf %102, %85 : vector<256x128xf32>
      %104 = arith.mulf %103, %85 : vector<256x128xf32>
      %105 = arith.addf %85, %104 : vector<256x128xf32>
      %cst_47 = arith.constant 0.797884583 : f32
      %106 = vector.broadcast %cst_47 : f32 to vector<256x128xf32>
      %107 = arith.mulf %106, %105 : vector<256x128xf32>
      %108 = math.tanh %107 : vector<256x128xf32>
      %cst_48 = arith.constant 1.000000e+00 : f32
      %109 = vector.broadcast %cst_48 : f32 to vector<256x128xf32>
      %110 = arith.addf %109, %108 : vector<256x128xf32>
      %111 = arith.mulf %100, %110 : vector<256x128xf32>
      %112 = arith.mulf %98, %111 : vector<256x128xf32>
      %cst_49 = arith.constant 1.000000e+00 : f32
      %113 = vector.broadcast %cst_49 : f32 to vector<256x128xf32>
      %114 = arith.subf %113, %98 : vector<256x128xf32>
      %115 = arith.mulf %114, %arg12 : vector<256x128xf32>
      %116 = arith.addf %112, %115 : vector<256x128xf32>
      scf.yield %116 : vector<256x128xf32>
    }
    %c0_3 = arith.constant 0 : index
    %c0_4 = arith.constant 0 : index
    %6 = vector.load %arg10[%c0_3, %c0_4] : memref<256x128xf32, #tpu.memory_space<vmem>>, vector<256x128xf32>
    tpu.vector_store %arg10[%c0_3, %c0_4], %5 {strides = array<i32>} : memref<256x128xf32, #tpu.memory_space<vmem>>, vector<256x128xf32>,
    return
  }
  func.func @transform_0(%arg0: i32) -> (i32, i32) {
    %c0_i32 = arith.constant 0 : i32
    %c0_i32_0 = arith.constant 0 : i32
    return %arg0, %c0_i32 : i32, i32
  }
  func.func @transform_1(%arg0: i32) -> (i32, i32) {
    %c0_i32 = arith.constant 0 : i32
    %c0_i32_0 = arith.constant 0 : i32
    return %arg0, %c0_i32 : i32, i32
  }
  func.func @transform_2(%arg0: i32) -> (i32, i32, i32) {
    %c0_i32 = arith.constant 0 : i32
    %c0_i32_0 = arith.constant 0 : i32
    %c0_i32_1 = arith.constant 0 : i32
    return %arg0, %c0_i32, %c0_i32_0 : i32, i32, i32
  }
  func.func @transform_3(%arg0: i32) -> (i32, i32) {
    %c0_i32 = arith.constant 0 : i32
    %c0_i32_0 = arith.constant 0 : i32
    %c0_i32_1 = arith.constant 0 : i32
    return %c0_i32, %c0_i32_0 : i32, i32
  }
  func.func @transform_4(%arg0: i32) -> (i32, i32) {
    %c0_i32 = arith.constant 0 : i32
    %c0_i32_0 = arith.constant 0 : i32
    %c0_i32_1 = arith.constant 0 : i32
    return %c0_i32, %c0_i32_0 : i32, i32
  }
  func.func @transform_5(%arg0: i32) -> (i32, i32) {
    %c0_i32 = arith.constant 0 : i32
    %c0_i32_0 = arith.constant 0 : i32
    %c0_i32_1 = arith.constant 0 : i32
    return %c0_i32, %c0_i32_0 : i32, i32
  }
  func.func @transform_6(%arg0: i32) -> (i32, i32) {
    %c0_i32 = arith.constant 0 : i32
    %c0_i32_0 = arith.constant 0 : i32
    %c0_i32_1 = arith.constant 0 : i32
    return %c0_i32, %c0_i32_0 : i32, i32
  }
  func.func @transform_7(%arg0: i32) -> (i32, i32) {
    %c0_i32 = arith.constant 0 : i32
    %c0_i32_0 = arith.constant 0 : i32
    %c0_i32_1 = arith.constant 0 : i32
    return %c0_i32, %c0_i32_0 : i32, i32
  }
  func.func @transform_8(%arg0: i32) -> (i32, i32) {
    %c0_i32 = arith.constant 0 : i32
    %c0_i32_0 = arith.constant 0 : i32
    %c0_i32_1 = arith.constant 0 : i32
    return %c0_i32, %c0_i32_0 : i32, i32
  }
  func.func @transform_9(%arg0: i32) -> (i32, i32) {
    %c0_i32 = arith.constant 0 : i32
    %c0_i32_0 = arith.constant 0 : i32
    return %arg0, %c0_i32 : i32, i32
  }
}

</mosaic_0001>

<llo_original>
// kernel: tpu_custom_call.1
$region0: #{tpu_custom_call.1}
  #allocation0 [shape = 'u32[]', space=smem, size = 0x4, offset = 0x4, fixed_abs, tag = 'smem constant byte address 0x4 - core index']
  #allocation1 [shape = 'u32[72,128]{1,0:T(1,128)}', space=vmem, size = 0x9000, scoped, tag = 'internal scratch']
  %s0 = inlined_call_operand.vmem [shape: f32[512,128], index: 0, kind: input, shape index: {}]
  %s1 = inlined_call_operand.vmem [shape: f32[512,1], index: 1, kind: input, shape index: {}]
  %s2 = inlined_call_operand.hbm [shape: bf16[16,32,96], index: 2, kind: input, shape index: {}]
  %s3 = inlined_call_operand.hbm [shape: bf16[128,384], index: 3, kind: input, shape index: {}]
  %s4 = inlined_call_operand.vmem [shape: f32[1,384], index: 4, kind: input, shape index: {}]
  %s5 = inlined_call_operand.hbm [shape: bf16[128,128], index: 5, kind: input, shape index: {}]
  %s6 = inlined_call_operand.vmem [shape: f32[1,128], index: 6, kind: input, shape index: {}]
  %s7 = inlined_call_operand.hbm [shape: bf16[256,128], index: 7, kind: input, shape index: {}]
  %s8 = inlined_call_operand.vmem [shape: f32[1,128], index: 8, kind: input, shape index: {}]
  %s9 = inlined_call_operand.hbm [shape: f32[512,128], index: 9, kind: output, shape index: {}]
  %s10 = sld [smem:[#allocation0]]
  $region92: #{tpu_custom_call.1} parent=0
    _
  %s12 = ssub.s32 1, %s10
  %s13 = scalar_select 0, %s12, %s10
  $region1: #{tpu_custom_call.1} parent=0
    #allocation2 [shape = 'u8[131072]{0}', space=vmem, size = 0x20000, scoped, tag = 'input window, operand 2']
    #allocation3 [shape = 's32[2]{0}', space=sflag, size = 0x8, scoped, tag = 'scoped memory for tpu_custom_call.1']
    #allocation4 [shape = 's32[2]{0}', space=sflag, size = 0x8, scoped, tag = 'scoped memory for tpu_custom_call.1']
    #allocation5 [shape = 'u8[98304]{0}', space=vmem, size = 0x18000, scoped, tag = 'input window, operand 3, single buffered']
    #allocation6 [shape = 's32[1]{0}', space=sflag, size = 0x4, scoped, tag = 'scoped memory for tpu_custom_call.1']
    #allocation7 [shape = 'u8[32768]{0}', space=vmem, size = 0x8000, scoped, tag = 'input window, operand 5, single buffered']
    #allocation8 [shape = 'u8[65536]{0}', space=vmem, size = 0x10000, scoped, tag = 'input window, operand 7, single buffered']
    #allocation9 [shape = 's32[1]{0}', space=sflag, size = 0x4, scoped, tag = 'scoped memory for tpu_custom_call.1']
    #allocation10 [shape = 'u8[262144]{0}', space=vmem, size = 0x40000, scoped, tag = 'output window, operand 0']
    %14 = vsyncpa [#allocation3], 0
    %s15 = scalar_lea.sflag [#allocation3], 1
    %16 = vsyncpa %s15, 0
    %17 = vsyncpa [#allocation6], 0
    %18 = vsyncpa [#allocation9], 0
    %19 = vsyncpa [#allocation4], 0
    %s20 = scalar_lea.sflag [#allocation4], 1
    %21 = vsyncpa %s20, 0
    loop: start=0, step=1, limit=4
    $region2: #{tpu_custom_call.1} parent=1 // loop_pre_header
      _
    $region3: #{tpu_custom_call.1} parent=1 // loop_header
      %s23 = sphi 0, %s27
      %p24 = scmp.ge.s32.totalorder %s23, 4
      %s33 = sphi 0, %s35
      %s36 = sphi 0, %s33
      %s37 = sphi 0, %s36
      %s53 = sphi 0, %s37
      %s59 = sphi 0, %s61
      %s62 = sphi 0, %s59
      %s63 = sphi 0, %s62
      %s79 = sphi 0, %s63
      %s85 = sphi 0, %s87
      %s88 = sphi 0, %s85
      %s89 = sphi 0, %s88
      %s105 = sphi 0, %s89
      %s109 = sphi 0, %s109
      %s111 = sphi 0, %s109
      %s112 = sphi 0, %s111
      %s126 = sphi 0, %s112
      %s130 = sphi 0, %s130
      %s132 = sphi 0, %s130
      %s133 = sphi 0, %s132
      %s147 = sphi 0, %s133
      %s151 = sphi 0, %s151
      %s153 = sphi 0, %s151
      %s154 = sphi 0, %s153
      %s168 = sphi 0, %s154
      %s172 = sphi 0, %s172
      %s174 = sphi 0, %s172
      %s175 = sphi 0, %s174
      %s189 = sphi 0, %s175
      %s193 = sphi 0, %s193
      %s195 = sphi 0, %s193
      %s196 = sphi 0, %s195
      %s210 = sphi 0, %s196
      %s214 = sphi 0, %s214
      %s216 = sphi 0, %s214
      %s217 = sphi 0, %s216
      %s231 = sphi 0, %s217
      %s237 = sphi 0, %s239
      %s240 = sphi 0, %s237
      %s241 = sphi 0, %s240
      %s257 = sphi 0, %s241
    $region4: #{tpu_custom_call.1} parent=1 // loop_header_branch
      %26 = sbr.rel (%p24) target = $region8
    $region5: #{tpu_custom_call.1} parent=1 // loop_body
      %s28 = ssub.s32 %s23, 1
      %s29 = ssub.s32 %s23, 2
      %s30 = sadd.s32 %s23, 1
      %s31 = ssub.s32 %s23, %s30
      %p32 = scmp.eq.s32.totalorder %s31, 0
      %s34 = sadd.s32 %s33, 1
      %s35 = scalar_select %p32, %s33, %s34
      %p38 = pneg %p32
      %p39 = scmp.eq.s32.totalorder %s23, 1
      %p40 = por %p38, %p39
      %p41 = scmp.ne.s32.totalorder %s33, %s36
      %p42 = scmp.eq.s32.totalorder %s23, 0
      %p43 = por %p41, %p42
      %p44 = scmp.ne.s32.totalorder %s33, %s36
      %p45 = scmp.eq.s32.totalorder %s28, 1
      %p46 = por %p44, %p45
      %p47 = scmp.ne.s32.totalorder %s36, %s37
      %p48 = scmp.eq.s32.totalorder %s28, 0
      %p49 = por %p47, %p48
      %p50 = scmp.ne.s32.totalorder %s36, %s37
      %p51 = scmp.eq.s32.totalorder %s29, 1
      %p52 = por %p50, %p51
      %p54 = scmp.ne.s32.totalorder %s37, %s53
      %p55 = scmp.eq.s32.totalorder %s29, 0
      %p56 = por %p54, %p55
      %s57 = ssub.s32 %s23, %s30
      %p58 = scmp.eq.s32.totalorder %s57, 0
      %s60 = sadd.s32 %s59, 1
      %s61 = scalar_select %p58, %s59, %s60
      %p64 = pneg %p58
      %p65 = scmp.eq.s32.totalorder %s23, 1
      %p66 = por %p64, %p65
      %p67 = scmp.ne.s32.totalorder %s59, %s62
      %p68 = scmp.eq.s32.totalorder %s23, 0
      %p69 = por %p67, %p68
      %p70 = scmp.ne.s32.totalorder %s59, %s62
      %p71 = scmp.eq.s32.totalorder %s28, 1
      %p72 = por %p70, %p71
      %p73 = scmp.ne.s32.totalorder %s62, %s63
      %p74 = scmp.eq.s32.totalorder %s28, 0
      %p75 = por %p73, %p74
      %p76 = scmp.ne.s32.totalorder %s62, %s63
      %p77 = scmp.eq.s32.totalorder %s29, 1
      %p78 = por %p76, %p77
      %p80 = scmp.ne.s32.totalorder %s63, %s79
      %p81 = scmp.eq.s32.totalorder %s29, 0
      %p82 = por %p80, %p81
      %s83 = ssub.s32 %s23, %s30
      %p84 = scmp.eq.s32.totalorder %s83, 0
      %s86 = sadd.s32 %s85, 1
      %s87 = scalar_select %p84, %s85, %s86
      %p90 = pneg %p84
      %p91 = scmp.eq.s32.totalorder %s23, 1
      %p92 = por %p90, %p91
      %p93 = scmp.ne.s32.totalorder %s85, %s88
      %p94 = scmp.eq.s32.totalorder %s23, 0
      %p95 = por %p93, %p94
      %p96 = scmp.ne.s32.totalorder %s85, %s88
      %p97 = scmp.eq.s32.totalorder %s28, 1
      %p98 = por %p96, %p97
      %p99 = scmp.ne.s32.totalorder %s88, %s89
      %p100 = scmp.eq.s32.totalorder %s28, 0
      %p101 = por %p99, %p100
      %p102 = scmp.ne.s32.totalorder %s88, %s89
      %p103 = scmp.eq.s32.totalorder %s29, 1
      %p104 = por %p102, %p103
      %p106 = scmp.ne.s32.totalorder %s89, %s105
      %p107 = scmp.eq.s32.totalorder %s29, 0
      %p108 = por %p106, %p107
      %s110 = sadd.s32 %s109, 1
      %p113 = scmp.eq.s32.totalorder %s23, 1
      %p114 = scmp.ne.s32.totalorder %s109, %s111
      %p115 = scmp.eq.s32.totalorder %s23, 0
      %p116 = por %p114, %p115
      %p117 = scmp.ne.s32.totalorder %s109, %s111
      %p118 = scmp.eq.s32.totalorder %s28, 1
      %p119 = por %p117, %p118
      %p120 = scmp.ne.s32.totalorder %s111, %s112
      %p121 = scmp.eq.s32.totalorder %s28, 0
      %p122 = por %p120, %p121
      %p123 = scmp.ne.s32.totalorder %s111, %s112
      %p124 = scmp.eq.s32.totalorder %s29, 1
      %p125 = por %p123, %p124
      %p127 = scmp.ne.s32.totalorder %s112, %s126
      %p128 = scmp.eq.s32.totalorder %s29, 0
      %p129 = por %p127, %p128
      %s131 = sadd.s32 %s130, 1
      %p134 = scmp.eq.s32.totalorder %s23, 1
      %p135 = scmp.ne.s32.totalorder %s130, %s132
      %p136 = scmp.eq.s32.totalorder %s23, 0
      %p137 = por %p135, %p136
      %p138 = scmp.ne.s32.totalorder %s130, %s132
      %p139 = scmp.eq.s32.totalorder %s28, 1
      %p140 = por %p138, %p139
      %p141 = scmp.ne.s32.totalorder %s132, %s133
      %p142 = scmp.eq.s32.totalorder %s28, 0
      %p143 = por %p141, %p142
      %p144 = scmp.ne.s32.totalorder %s132, %s133
      %p145 = scmp.eq.s32.totalorder %s29, 1
      %p146 = por %p144, %p145
      %p148 = scmp.ne.s32.totalorder %s133, %s147
      %p149 = scmp.eq.s32.totalorder %s29, 0
      %p150 = por %p148, %p149
      %s152 = sadd.s32 %s151, 1
      %p155 = scmp.eq.s32.totalorder %s23, 1
      %p156 = scmp.ne.s32.totalorder %s151, %s153
      %p157 = scmp.eq.s32.totalorder %s23, 0
      %p158 = por %p156, %p157
      %p159 = scmp.ne.s32.totalorder %s151, %s153
      %p160 = scmp.eq.s32.totalorder %s28, 1
      %p161 = por %p159, %p160
      %p162 = scmp.ne.s32.totalorder %s153, %s154
      %p163 = scmp.eq.s32.totalorder %s28, 0
      %p164 = por %p162, %p163
      %p165 = scmp.ne.s32.totalorder %s153, %s154
      %p166 = scmp.eq.s32.totalorder %s29, 1
      %p167 = por %p165, %p166
      %p169 = scmp.ne.s32.totalorder %s154, %s168
      %p170 = scmp.eq.s32.totalorder %s29, 0
      %p171 = por %p169, %p170
      %s173 = sadd.s32 %s172, 1
      %p176 = scmp.eq.s32.totalorder %s23, 1
      %p177 = scmp.ne.s32.totalorder %s172, %s174
      %p178 = scmp.eq.s32.totalorder %s23, 0
      %p179 = por %p177, %p178
      %p180 = scmp.ne.s32.totalorder %s172, %s174
      %p181 = scmp.eq.s32.totalorder %s28, 1
      %p182 = por %p180, %p181
      %p183 = scmp.ne.s32.totalorder %s174, %s175
      %p184 = scmp.eq.s32.totalorder %s28, 0
      %p185 = por %p183, %p184
      %p186 = scmp.ne.s32.totalorder %s174, %s175
      %p187 = scmp.eq.s32.totalorder %s29, 1
      %p188 = por %p186, %p187
      %p190 = scmp.ne.s32.totalorder %s175, %s189
      %p191 = scmp.eq.s32.totalorder %s29, 0
      %p192 = por %p190, %p191
      %s194 = sadd.s32 %s193, 1
      %p197 = scmp.eq.s32.totalorder %s23, 1
      %p198 = scmp.ne.s32.totalorder %s193, %s195
      %p199 = scmp.eq.s32.totalorder %s23, 0
      %p200 = por %p198, %p199
      %p201 = scmp.ne.s32.totalorder %s193, %s195
      %p202 = scmp.eq.s32.totalorder %s28, 1
      %p203 = por %p201, %p202
      %p204 = scmp.ne.s32.totalorder %s195, %s196
      %p205 = scmp.eq.s32.totalorder %s28, 0
      %p206 = por %p204, %p205
      %p207 = scmp.ne.s32.totalorder %s195, %s196
      %p208 = scmp.eq.s32.totalorder %s29, 1
      %p209 = por %p207, %p208
      %p211 = scmp.ne.s32.totalorder %s196, %s210
      %p212 = scmp.eq.s32.totalorder %s29, 0
      %p213 = por %p211, %p212
      %s215 = sadd.s32 %s214, 1
      %p218 = scmp.eq.s32.totalorder %s23, 1
      %p219 = scmp.ne.s32.totalorder %s214, %s216
      %p220 = scmp.eq.s32.totalorder %s23, 0
      %p221 = por %p219, %p220
      %p222 = scmp.ne.s32.totalorder %s214, %s216
      %p223 = scmp.eq.s32.totalorder %s28, 1
      %p224 = por %p222, %p223
      %p225 = scmp.ne.s32.totalorder %s216, %s217
      %p226 = scmp.eq.s32.totalorder %s28, 0
      %p227 = por %p225, %p226
      %p228 = scmp.ne.s32.totalorder %s216, %s217
      %p229 = scmp.eq.s32.totalorder %s29, 1
      %p230 = por %p228, %p229
      %p232 = scmp.ne.s32.totalorder %s217, %s231
      %p233 = scmp.eq.s32.totalorder %s29, 0
      %p234 = por %p232, %p233
      %s235 = ssub.s32 %s23, %s30
      %p236 = scmp.eq.s32.totalorder %s235, 0
      %s238 = sadd.s32 %s237, 1
      %s239 = scalar_select %p236, %s237, %s238
      %p242 = pneg %p236
      %p243 = scmp.eq.s32.totalorder %s23, 1
      %p244 = por %p242, %p243
      %p245 = scmp.ne.s32.totalorder %s237, %s240
      %p246 = scmp.eq.s32.totalorder %s23, 0
      %p247 = por %p245, %p246
      %p248 = scmp.ne.s32.totalorder %s237, %s240
      %p249 = scmp.eq.s32.totalorder %s28, 1
      %p250 = por %p248, %p249
      %p251 = scmp.ne.s32.totalorder %s240, %s241
      %p252 = scmp.eq.s32.totalorder %s28, 0
      %p253 = por %p251, %p252
      %p254 = scmp.ne.s32.totalorder %s240, %s241
      %p255 = scmp.eq.s32.totalorder %s29, 1
      %p256 = por %p254, %p255
      %p258 = scmp.ne.s32.totalorder %s241, %s257
      %p259 = scmp.eq.s32.totalorder %s29, 0
      %p260 = por %p258, %p259
      %p261 = scmp.le.s32.totalorder 1, %s23
      %p262 = scmp.lt.s32.totalorder %s23, 3
      %p263 = pnand %p261, %p262
      %p264 = pneg %p263
      // Predicated region
      $region9: #{tpu_custom_call.1} parent=5 // pred_check
        _
      $region10: #{tpu_custom_call.1} parent=5 // pred_check_branch
        %266 = sbr.rel (%p263) target = $region12
      $region11: #{tpu_custom_call.1} parent=5 // pred_region
        %s267 = ssub.s32 %s23, 1
        // Predicated region
        $region13: #{tpu_custom_call.1} parent=11 // pred_check
          %p268 = pneg %p122
        $region14: #{tpu_custom_call.1} parent=11 // pred_check_branch
          %270 = sbr.rel (%p268) target = $region16
        $region15: #{tpu_custom_call.1} parent=11 // pred_region
          %272 = vsyncadd [#allocation6], 0
          %s273 = sshll.u32 %s3, 4
          %s274 = int_to_ptr.hbm [resolvable:$true] %s273
          %s275 = sshll.u32 [#allocation5], 4
          %s276 = int_to_ptr.vmem [resolvable:$true] %s275
          %281 = dma.hbm_to_vmem [thread:$0]  %s274, 3072, %s276, [#allocation6], 192, 192, 12
        $region16: #{tpu_custom_call.1} parent=11 // pred_fallthru
          _
        // Predicated region
        $region17: #{tpu_custom_call.1} parent=11 // pred_check
          %p282 = pneg %p143
        $region18: #{tpu_custom_call.1} parent=11 // pred_check_branch
          %284 = sbr.rel (%p282) target = $region20
        $region19: #{tpu_custom_call.1} parent=11 // pred_region
          _
        $region20: #{tpu_custom_call.1} parent=11 // pred_fallthru
          _
        // Predicated region
        $region21: #{tpu_custom_call.1} parent=11 // pred_check
          %p285 = pneg %p164
        $region22: #{tpu_custom_call.1} parent=11 // pred_check_branch
          %287 = sbr.rel (%p285) target = $region24
        $region23: #{tpu_custom_call.1} parent=11 // pred_region
          %289 = vsyncadd [#allocation6], 0
          %s290 = sshll.u32 %s5, 4
          %s291 = int_to_ptr.hbm [resolvable:$true] %s290
          %s292 = sshll.u32 [#allocation7], 4
          %s293 = int_to_ptr.vmem [resolvable:$true] %s292
          %298 = dma.hbm_to_vmem [thread:$0]  %s291, 1024, %s293, [#allocation6], 64, 64, 4
        $region24: #{tpu_custom_call.1} parent=11 // pred_fallthru
          _
        // Predicated region
        $region25: #{tpu_custom_call.1} parent=11 // pred_check
          %p299 = pneg %p185
        $region26: #{tpu_custom_call.1} parent=11 // pred_check_branch
          %301 = sbr.rel (%p299) target = $region28
        $region27: #{tpu_custom_call.1} parent=11 // pred_region
          _
        $region28: #{tpu_custom_call.1} parent=11 // pred_fallthru
          _
        // Predicated region
        $region29: #{tpu_custom_call.1} parent=11 // pred_check
          %p302 = pneg %p206
        $region30: #{tpu_custom_call.1} parent=11 // pred_check_branch
          %304 = sbr.rel (%p302) target = $region32
        $region31: #{tpu_custom_call.1} parent=11 // pred_region
          %306 = vsyncadd [#allocation9], 0
          %s307 = sshll.u32 %s7, 4
          %s308 = int_to_ptr.hbm [resolvable:$true] %s307
          %s309 = sshll.u32 [#allocation8], 4
          %s310 = int_to_ptr.vmem [resolvable:$true] %s309
          %315 = dma.hbm_to_vmem [thread:$0]  %s308, 2048, %s310, [#allocation9], 64, 64, 4
        $region32: #{tpu_custom_call.1} parent=11 // pred_fallthru
          _
        // Predicated region
        $region33: #{tpu_custom_call.1} parent=11 // pred_check
          %p316 = pneg %p227
        $region34: #{tpu_custom_call.1} parent=11 // pred_check_branch
          %318 = sbr.rel (%p316) target = $region36
        $region35: #{tpu_custom_call.1} parent=11 // pred_region
          _
        $region36: #{tpu_custom_call.1} parent=11 // pred_fallthru
          _
      $region12: #{tpu_custom_call.1} parent=5 // pred_fallthru
        _
      %p319 = scmp.lt.s32.totalorder %s23, 2
      // Predicated region
      $region37: #{tpu_custom_call.1} parent=5 // pred_check
        %p320 = pneg %p319
      $region38: #{tpu_custom_call.1} parent=5 // pred_check_branch
        %322 = sbr.rel (%p320) target = $region40
      $region39: #{tpu_custom_call.1} parent=5 // pred_region
        // Predicated region
        $region41: #{tpu_custom_call.1} parent=39 // pred_check
          %p323 = pneg %p43
        $region42: #{tpu_custom_call.1} parent=39 // pred_check_branch
          %325 = sbr.rel (%p323) target = $region44
        $region43: #{tpu_custom_call.1} parent=39 // pred_region
          %s326 = smul.u32 32, %s23
          %p327 = scmp.lt.s32.totalorder %s326, 63
          %s328 = scalar_select %p327, %s326, 63
          %s329 = smul.addr %s328, 8
          %s330 = scalar_lea.vmem %s0, %s329
          %s331 = smul.u32 32, %s23
        $region44: #{tpu_custom_call.1} parent=39 // pred_fallthru
          _
        // Predicated region
        $region45: #{tpu_custom_call.1} parent=39 // pred_check
          %p332 = pneg %p69
        $region46: #{tpu_custom_call.1} parent=39 // pred_check_branch
          %334 = sbr.rel (%p332) target = $region48
        $region47: #{tpu_custom_call.1} parent=39 // pred_region
          %s335 = smul.u32 32, %s23
          %p336 = scmp.lt.s32.totalorder %s335, 63
          %s337 = scalar_select %p336, %s335, 63
          %s338 = smul.addr %s337, 8
          %s339 = scalar_lea.vmem %s1, %s338
          %s340 = smul.u32 32, %s23
        $region48: #{tpu_custom_call.1} parent=39 // pred_fallthru
          _
        // Predicated region
        $region49: #{tpu_custom_call.1} parent=39 // pred_check
          %p341 = pneg %p95
        $region50: #{tpu_custom_call.1} parent=39 // pred_check_branch
          %343 = sbr.rel (%p341) target = $region52
        $region51: #{tpu_custom_call.1} parent=39 // pred_region
          %s344 = sand.u32 %s85, 1
          %s345 = scalar_lea.sflag [#allocation3], %s344
          %s346 = sand.u32 %s85, 1
          %s347 = smul.addr %s346, 128
          %s348 = scalar_lea.vmem [#allocation2], %s347
          %s349 = smul.u32 8, %s23
          %351 = vsyncadd %s345, 0
          %s352 = smul.addr %s349, 4
          %s353 = smul.addr %s352, 4
          %s354 = scalar_lea.hbm %s2, %s353
          %s355 = sshll.u32 %s354, 4
          %s356 = int_to_ptr.hbm [resolvable:$true] %s355
          %s357 = sshll.u32 %s348, 4
          %s358 = int_to_ptr.vmem [resolvable:$true] %s357
          %363 = dma.hbm_to_vmem [thread:$0]  %s356, 2048, %s358, %s345, 64, 64, 4
        $region52: #{tpu_custom_call.1} parent=39 // pred_fallthru
          _
      $region40: #{tpu_custom_call.1} parent=5 // pred_fallthru
        _
      %p364 = scmp.le.s32.totalorder 1, %s23
      %p365 = scmp.lt.s32.totalorder %s23, 3
      %p366 = pnand %p364, %p365
      %p367 = pneg %p366
      // Predicated region
      $region53: #{tpu_custom_call.1} parent=5 // pred_check
        _
      $region54: #{tpu_custom_call.1} parent=5 // pred_check_branch
        %369 = sbr.rel (%p366) target = $region56
      $region55: #{tpu_custom_call.1} parent=5 // pred_region
        %s370 = ssub.s32 %s23, 1
        %s371 = sand.u32 %s88, 1
        %s372 = scalar_lea.sflag [#allocation3], %s371
        %s373 = sand.u32 %s88, 1
        %s374 = smul.addr %s373, 128
        %s375 = scalar_lea.vmem [#allocation2], %s374
        // Predicated region
        $region57: #{tpu_custom_call.1} parent=55 // pred_check
          %p376 = pneg %p101
        $region58: #{tpu_custom_call.1} parent=55 // pred_check_branch
          %378 = sbr.rel (%p376) target = $region60
        $region59: #{tpu_custom_call.1} parent=55 // pred_region
          %380 = dma.done %s372, 2048
        $region60: #{tpu_custom_call.1} parent=55 // pred_fallthru
          _
        // Predicated region
        $region61: #{tpu_custom_call.1} parent=55 // pred_check
          %p381 = pneg %p122
        $region62: #{tpu_custom_call.1} parent=55 // pred_check_branch
          %383 = sbr.rel (%p381) target = $region64
        $region63: #{tpu_custom_call.1} parent=55 // pred_region
          %385 = dma.done [#allocation6], 3072
        $region64: #{tpu_custom_call.1} parent=55 // pred_fallthru
          _
        // Predicated region
        $region65: #{tpu_custom_call.1} parent=55 // pred_check
          %p386 = pneg %p164
        $region66: #{tpu_custom_call.1} parent=55 // pred_check_branch
          %388 = sbr.rel (%p386) target = $region68
        $region67: #{tpu_custom_call.1} parent=55 // pred_region
          %390 = dma.done [#allocation6], 1024
        $region68: #{tpu_custom_call.1} parent=55 // pred_fallthru
          _
        // Predicated region
        $region69: #{tpu_custom_call.1} parent=55 // pred_check
          %p391 = pneg %p206
        $region70: #{tpu_custom_call.1} parent=55 // pred_check_branch
          %393 = sbr.rel (%p391) target = $region72
        $region71: #{tpu_custom_call.1} parent=55 // pred_region
          %395 = dma.done [#allocation9], 2048
        $region72: #{tpu_custom_call.1} parent=55 // pred_fallthru
          _
        %s396 = smul.u32 32, %s28
        %p397 = scmp.lt.s32.totalorder %s396, 63
        %s398 = scalar_select %p397, %s396, 63
        %s399 = smul.addr %s398, 8
        %s400 = scalar_lea.vmem %s0, %s399
        %p401 = pneg %p49
        %p402 = pneg %p46
        %s403 = smul.u32 32, %s28
        %p404 = scmp.lt.s32.totalorder %s403, 63
        %s405 = scalar_select %p404, %s403, 63
        %s406 = smul.addr %s405, 8
        %s407 = scalar_lea.vmem %s1, %s406
        %p408 = pneg %p75
        %p409 = pneg %p72
        %s410 = sand.u32 %s88, 1
        %s411 = scalar_lea.sflag [#allocation3], %s410
        %s412 = sand.u32 %s88, 1
        %s413 = smul.addr %s412, 128
        %s414 = scalar_lea.vmem [#allocation2], %s413
        %p415 = pneg %p101
        %p416 = pneg %p98
        %p417 = pneg %p122
        %p418 = pneg %p119
        %p419 = pneg %p143
        %p420 = pneg %p140
        %p421 = pneg %p164
        %p422 = pneg %p161
        %p423 = pneg %p185
        %p424 = pneg %p182
        %p425 = pneg %p206
        %p426 = pneg %p203
        %p427 = pneg %p227
        %p428 = pneg %p224
        %p429 = pneg %p253
        %p430 = pneg %p250
        %s431 = sand.u32 %s240, 1
        %s432 = scalar_lea.sflag [#allocation4], %s431
        %s433 = sand.u32 %s240, 1
        %s434 = smul.addr %s433, 256
        %s435 = scalar_lea.vmem [#allocation10], %s434
        %s436 = smul.u32 32, %s28
        %p437 = scmp.lt.s32.totalorder %s436, 63
        %s438 = scalar_select %p437, %s436, 63
        %s439 = smul.addr %s438, 8
        %s440 = scalar_lea.vmem %s0, %s439
        %s441 = smul.u32 32, %s28
        %s442 = smul.u32 32, %s28
        %p443 = scmp.lt.s32.totalorder %s442, 63
        %s444 = scalar_select %p443, %s442, 63
        %s445 = smul.addr %s444, 8
        %s446 = scalar_lea.vmem %s1, %s445
        %s447 = smul.u32 32, %s28
        %s448 = smul.u32 8, %s28
        %s449 = smul.u32 32, %s28
        %v451 = vld [vmem:[%s446] sm:$0xff]
        %v452 = vld [vmem:[%s446 + $0x8] sm:$0xff]
        %v453 = vld [vmem:[%s446 + $0x10] sm:$0xff]
        %v454 = vld [vmem:[%s446 + $0x18] sm:$0xff]
        %v455 = vld [vmem:[%s446 + $0x20] sm:$0xff]
        %v456 = vld [vmem:[%s446 + $0x28] sm:$0xff]
        %v457 = vld [vmem:[%s446 + $0x30] sm:$0xff]
        %v458 = vld [vmem:[%s446 + $0x38] sm:$0xff]
        %v459 = vld [vmem:[%s446 + $0x40] sm:$0xff]
        %v460 = vld [vmem:[%s446 + $0x48] sm:$0xff]
        %v461 = vld [vmem:[%s446 + $0x50] sm:$0xff]
        %v462 = vld [vmem:[%s446 + $0x58] sm:$0xff]
        %v463 = vld [vmem:[%s446 + $0x60] sm:$0xff]
        %v464 = vld [vmem:[%s446 + $0x68] sm:$0xff]
        %v465 = vld [vmem:[%s446 + $0x70] sm:$0xff]
        %v466 = vld [vmem:[%s446 + $0x78] sm:$0xff]
        %v467 = vld [vmem:[%s446 + $0x80] sm:$0xff]
        %v468 = vld [vmem:[%s446 + $0x88] sm:$0xff]
        %v469 = vld [vmem:[%s446 + $0x90] sm:$0xff]
        %v470 = vld [vmem:[%s446 + $0x98] sm:$0xff]
        %v471 = vld [vmem:[%s446 + $0xa0] sm:$0xff]
        %v472 = vld [vmem:[%s446 + $0xa8] sm:$0xff]
        %v473 = vld [vmem:[%s446 + $0xb0] sm:$0xff]
        %v474 = vld [vmem:[%s446 + $0xb8] sm:$0xff]
        %v475 = vld [vmem:[%s446 + $0xc0] sm:$0xff]
        %v476 = vld [vmem:[%s446 + $0xc8] sm:$0xff]
        %v477 = vld [vmem:[%s446 + $0xd0] sm:$0xff]
        %v478 = vld [vmem:[%s446 + $0xd8] sm:$0xff]
        %v479 = vld [vmem:[%s446 + $0xe0] sm:$0xff]
        %v480 = vld [vmem:[%s446 + $0xe8] sm:$0xff]
        %v481 = vld [vmem:[%s446 + $0xf0] sm:$0xff]
        %v482 = vld [vmem:[%s446 + $0xf8] sm:$0xff]
        %484 = vset.pattern.permute.xlu0 0
        %485 = vperm.xlu0 %484, %v451
        %v486 = vpop.permute.xlu0 %485
        %489 = vset.pattern.permute.xlu0 0
        %490 = vperm.xlu0 %489, %v452
        %v491 = vpop.permute.xlu0 %490
        %494 = vset.pattern.permute.xlu0 0
        %495 = vperm.xlu0 %494, %v453
        %v496 = vpop.permute.xlu0 %495
        %499 = vset.pattern.permute.xlu0 0
        %500 = vperm.xlu0 %499, %v454
        %v501 = vpop.permute.xlu0 %500
        %504 = vset.pattern.permute.xlu0 0
        %505 = vperm.xlu0 %504, %v455
        %v506 = vpop.permute.xlu0 %505
        %509 = vset.pattern.permute.xlu0 0
        %510 = vperm.xlu0 %509, %v456
        %v511 = vpop.permute.xlu0 %510
        %514 = vset.pattern.permute.xlu0 0
        %515 = vperm.xlu0 %514, %v457
        %v516 = vpop.permute.xlu0 %515
        %519 = vset.pattern.permute.xlu0 0
        %520 = vperm.xlu0 %519, %v458
        %v521 = vpop.permute.xlu0 %520
        %524 = vset.pattern.permute.xlu0 0
        %525 = vperm.xlu0 %524, %v459
        %v526 = vpop.permute.xlu0 %525
        %529 = vset.pattern.permute.xlu0 0
        %530 = vperm.xlu0 %529, %v460
        %v531 = vpop.permute.xlu0 %530
        %534 = vset.pattern.permute.xlu0 0
        %535 = vperm.xlu0 %534, %v461
        %v536 = vpop.permute.xlu0 %535
        %539 = vset.pattern.permute.xlu0 0
        %540 = vperm.xlu0 %539, %v462
        %v541 = vpop.permute.xlu0 %540
        %544 = vset.pattern.permute.xlu0 0
        %545 = vperm.xlu0 %544, %v463
        %v546 = vpop.permute.xlu0 %545
        %549 = vset.pattern.permute.xlu0 0
        %550 = vperm.xlu0 %549, %v464
        %v551 = vpop.permute.xlu0 %550
        %554 = vset.pattern.permute.xlu0 0
        %555 = vperm.xlu0 %554, %v465
        %v556 = vpop.permute.xlu0 %555
        %559 = vset.pattern.permute.xlu0 0
        %560 = vperm.xlu0 %559, %v466
        %v561 = vpop.permute.xlu0 %560
        %564 = vset.pattern.permute.xlu0 0
        %565 = vperm.xlu0 %564, %v467
        %v566 = vpop.permute.xlu0 %565
        %569 = vset.pattern.permute.xlu0 0
        %570 = vperm.xlu0 %569, %v468
        %v571 = vpop.permute.xlu0 %570
        %574 = vset.pattern.permute.xlu0 0
        %575 = vperm.xlu0 %574, %v469
        %v576 = vpop.permute.xlu0 %575
        %579 = vset.pattern.permute.xlu0 0
        %580 = vperm.xlu0 %579, %v470
        %v581 = vpop.permute.xlu0 %580
        %584 = vset.pattern.permute.xlu0 0
        %585 = vperm.xlu0 %584, %v471
        %v586 = vpop.permute.xlu0 %585
        %589 = vset.pattern.permute.xlu0 0
        %590 = vperm.xlu0 %589, %v472
        %v591 = vpop.permute.xlu0 %590
        %594 = vset.pattern.permute.xlu0 0
        %595 = vperm.xlu0 %594, %v473
        %v596 = vpop.permute.xlu0 %595
        %599 = vset.pattern.permute.xlu0 0
        %600 = vperm.xlu0 %599, %v474
        %v601 = vpop.permute.xlu0 %600
        %604 = vset.pattern.permute.xlu0 0
        %605 = vperm.xlu0 %604, %v475
        %v606 = vpop.permute.xlu0 %605
        %609 = vset.pattern.permute.xlu0 0
        %610 = vperm.xlu0 %609, %v476
        %v611 = vpop.permute.xlu0 %610
        %614 = vset.pattern.permute.xlu0 0
        %615 = vperm.xlu0 %614, %v477
        %v616 = vpop.permute.xlu0 %615
        %619 = vset.pattern.permute.xlu0 0
        %620 = vperm.xlu0 %619, %v478
        %v621 = vpop.permute.xlu0 %620
        %624 = vset.pattern.permute.xlu0 0
        %625 = vperm.xlu0 %624, %v479
        %v626 = vpop.permute.xlu0 %625
        %629 = vset.pattern.permute.xlu0 0
        %630 = vperm.xlu0 %629, %v480
        %v631 = vpop.permute.xlu0 %630
        %634 = vset.pattern.permute.xlu0 0
        %635 = vperm.xlu0 %634, %v481
        %v636 = vpop.permute.xlu0 %635
        %639 = vset.pattern.permute.xlu0 0
        %640 = vperm.xlu0 %639, %v482
        %v641 = vpop.permute.xlu0 %640
        %v643 = vld [vmem:[%s440] sm:$0xff]
        %v644 = vld [vmem:[%s440 + $0x8] sm:$0xff]
        %v645 = vld [vmem:[%s440 + $0x10] sm:$0xff]
        %v646 = vld [vmem:[%s440 + $0x18] sm:$0xff]
        %v647 = vld [vmem:[%s440 + $0x20] sm:$0xff]
        %v648 = vld [vmem:[%s440 + $0x28] sm:$0xff]
        %v649 = vld [vmem:[%s440 + $0x30] sm:$0xff]
        %v650 = vld [vmem:[%s440 + $0x38] sm:$0xff]
        %v651 = vld [vmem:[%s440 + $0x40] sm:$0xff]
        %v652 = vld [vmem:[%s440 + $0x48] sm:$0xff]
        %v653 = vld [vmem:[%s440 + $0x50] sm:$0xff]
        %v654 = vld [vmem:[%s440 + $0x58] sm:$0xff]
        %v655 = vld [vmem:[%s440 + $0x60] sm:$0xff]
        %v656 = vld [vmem:[%s440 + $0x68] sm:$0xff]
        %v657 = vld [vmem:[%s440 + $0x70] sm:$0xff]
        %v658 = vld [vmem:[%s440 + $0x78] sm:$0xff]
        %v659 = vld [vmem:[%s440 + $0x80] sm:$0xff]
        %v660 = vld [vmem:[%s440 + $0x88] sm:$0xff]
        %v661 = vld [vmem:[%s440 + $0x90] sm:$0xff]
        %v662 = vld [vmem:[%s440 + $0x98] sm:$0xff]
        %v663 = vld [vmem:[%s440 + $0xa0] sm:$0xff]
        %v664 = vld [vmem:[%s440 + $0xa8] sm:$0xff]
        %v665 = vld [vmem:[%s440 + $0xb0] sm:$0xff]
        %v666 = vld [vmem:[%s440 + $0xb8] sm:$0xff]
        %v667 = vld [vmem:[%s440 + $0xc0] sm:$0xff]
        %v668 = vld [vmem:[%s440 + $0xc8] sm:$0xff]
        %v669 = vld [vmem:[%s440 + $0xd0] sm:$0xff]
        %v670 = vld [vmem:[%s440 + $0xd8] sm:$0xff]
        %v671 = vld [vmem:[%s440 + $0xe0] sm:$0xff]
        %v672 = vld [vmem:[%s440 + $0xe8] sm:$0xff]
        %v673 = vld [vmem:[%s440 + $0xf0] sm:$0xff]
        %v674 = vld [vmem:[%s440 + $0xf8] sm:$0xff]
        loop: start=0, step=1, limit=3
        $region73: #{tpu_custom_call.1} parent=55 // loop_pre_header
          _
        $region74: #{tpu_custom_call.1} parent=55 // loop_header
          %s676 = sphi 0, %s680
          %p677 = scmp.ge.s32.totalorder %s676, 3
          %v681 = vphi %v643, %v3599
          %v682 = vphi %v644, %v3600
          %v683 = vphi %v645, %v3601
          %v684 = vphi %v646, %v3602
          %v685 = vphi %v647, %v3603
          %v686 = vphi %v648, %v3604
          %v687 = vphi %v649, %v3605
          %v688 = vphi %v650, %v3606
          %v689 = vphi %v651, %v3607
          %v690 = vphi %v652, %v3608
          %v691 = vphi %v653, %v3609
          %v692 = vphi %v654, %v3610
          %v693 = vphi %v655, %v3611
          %v694 = vphi %v656, %v3612
          %v695 = vphi %v657, %v3613
          %v696 = vphi %v658, %v3614
          %v697 = vphi %v659, %v3615
          %v698 = vphi %v660, %v3616
          %v699 = vphi %v661, %v3617
          %v700 = vphi %v662, %v3618
          %v701 = vphi %v663, %v3619
          %v702 = vphi %v664, %v3620
          %v703 = vphi %v665, %v3621
          %v704 = vphi %v666, %v3622
          %v705 = vphi %v667, %v3623
          %v706 = vphi %v668, %v3624
          %v707 = vphi %v669, %v3625
          %v708 = vphi %v670, %v3626
          %v709 = vphi %v671, %v3627
          %v710 = vphi %v672, %v3628
          %v711 = vphi %v673, %v3629
          %v712 = vphi %v674, %v3630
        $region75: #{tpu_custom_call.1} parent=55 // loop_header_branch
          %679 = sbr.rel (%p677) target = $region79
        $region76: #{tpu_custom_call.1} parent=55 // loop_body
          %v713 = vpack.c.bf16 %v681, %v681
          %v714 = vpack.c.bf16 %v682, %v682
          %v715 = vpack.c.bf16 %v683, %v683
          %v716 = vpack.c.bf16 %v684, %v684
          %v717 = vpack.c.bf16 %v685, %v685
          %v718 = vpack.c.bf16 %v686, %v686
          %v719 = vpack.c.bf16 %v687, %v687
          %v720 = vpack.c.bf16 %v688, %v688
          %v721 = vpack.c.bf16 %v689, %v689
          %v722 = vpack.c.bf16 %v690, %v690
          %v723 = vpack.c.bf16 %v691, %v691
          %v724 = vpack.c.bf16 %v692, %v692
          %v725 = vpack.c.bf16 %v693, %v693
          %v726 = vpack.c.bf16 %v694, %v694
          %v727 = vpack.c.bf16 %v695, %v695
          %v728 = vpack.c.bf16 %v696, %v696
          %v729 = vpack.c.bf16 %v697, %v697
          %v730 = vpack.c.bf16 %v698, %v698
          %v731 = vpack.c.bf16 %v699, %v699
          %v732 = vpack.c.bf16 %v700, %v700
          %v733 = vpack.c.bf16 %v701, %v701
          %v734 = vpack.c.bf16 %v702, %v702
          %v735 = vpack.c.bf16 %v703, %v703
          %v736 = vpack.c.bf16 %v704, %v704
          %v737 = vpack.c.bf16 %v705, %v705
          %v738 = vpack.c.bf16 %v706, %v706
          %v739 = vpack.c.bf16 %v707, %v707
          %v740 = vpack.c.bf16 %v708, %v708
          %v741 = vpack.c.bf16 %v709, %v709
          %v742 = vpack.c.bf16 %v710, %v710
          %v743 = vpack.c.bf16 %v711, %v711
          %v744 = vpack.c.bf16 %v712, %v712
          %v745 = vld [vmem:[#allocation5] sm:$0xff]
          %v746 = vld [vmem:[#allocation5 + $0x8] sm:$0xf]
          %v747 = vld [vmem:[#allocation5 + $0xc] sm:$0xff]
          %v748 = vld [vmem:[#allocation5 + $0x14] sm:$0xf]
          %v749 = vld [vmem:[#allocation5 + $0x18] sm:$0xff]
          %v750 = vld [vmem:[#allocation5 + $0x20] sm:$0xf]
          %v751 = vld [vmem:[#allocation5 + $0x24] sm:$0xff]
          %v752 = vld [vmem:[#allocation5 + $0x2c] sm:$0xf]
          %v753 = vld [vmem:[#allocation5 + $0x30] sm:$0xff]
          %v754 = vld [vmem:[#allocation5 + $0x38] sm:$0xf]
          %v755 = vld [vmem:[#allocation5 + $0x3c] sm:$0xff]
          %v756 = vld [vmem:[#allocation5 + $0x44] sm:$0xf]
          %v757 = vld [vmem:[#allocation5 + $0x48] sm:$0xff]
          %v758 = vld [vmem:[#allocation5 + $0x50] sm:$0xf]
          %v759 = vld [vmem:[#allocation5 + $0x54] sm:$0xff]
          %v760 = vld [vmem:[#allocation5 + $0x5c] sm:$0xf]
          %v761 = vld [vmem:[#allocation5 + $0x60] sm:$0xff]
          %v762 = vld [vmem:[#allocation5 + $0x68] sm:$0xf]
          %v763 = vld [vmem:[#allocation5 + $0x6c] sm:$0xff]
          %v764 = vld [vmem:[#allocation5 + $0x74] sm:$0xf]
          %v765 = vld [vmem:[#allocation5 + $0x78] sm:$0xff]
          %v766 = vld [vmem:[#allocation5 + $0x80] sm:$0xf]
          %v767 = vld [vmem:[#allocation5 + $0x84] sm:$0xff]
          %v768 = vld [vmem:[#allocation5 + $0x8c] sm:$0xf]
          %v769 = vld [vmem:[#allocation5 + $0x90] sm:$0xff]
          %v770 = vld [vmem:[#allocation5 + $0x98] sm:$0xf]
          %v771 = vld [vmem:[#allocation5 + $0x9c] sm:$0xff]
          %v772 = vld [vmem:[#allocation5 + $0xa4] sm:$0xf]
          %v773 = vld [vmem:[#allocation5 + $0xa8] sm:$0xff]
          %v774 = vld [vmem:[#allocation5 + $0xb0] sm:$0xf]
          %v775 = vld [vmem:[#allocation5 + $0xb4] sm:$0xff]
          %v776 = vld [vmem:[#allocation5 + $0xbc] sm:$0xf]
          %v777 = vld [vmem:[%s4] sm:$0x7]
          %v779 = vperm.slane %v777, 0
          %v780 = vperm.slane %v777, 1
          %v781 = vperm.slane %v777, 2
          %v817 = vunpack.c.l.b16 %v713
          %v818 = vunpack.c.l.b16 %v714
          %v819 = vunpack.c.l.b16 %v715
          %v820 = vunpack.c.l.b16 %v716
          %v821 = vunpack.c.l.b16 %v717
          %v822 = vunpack.c.l.b16 %v718
          %v823 = vunpack.c.l.b16 %v719
          %v824 = vunpack.c.l.b16 %v720
          %v825 = vunpack.c.l.b16 %v721
          %v826 = vunpack.c.l.b16 %v722
          %v827 = vunpack.c.l.b16 %v723
          %v828 = vunpack.c.l.b16 %v724
          %v829 = vunpack.c.l.b16 %v725
          %v830 = vunpack.c.l.b16 %v726
          %v831 = vunpack.c.l.b16 %v727
          %v832 = vunpack.c.l.b16 %v728
          %v833 = vunpack.c.l.b16 %v729
          %v834 = vunpack.c.l.b16 %v730
          %v835 = vunpack.c.l.b16 %v731
          %v836 = vunpack.c.l.b16 %v732
          %v837 = vunpack.c.l.b16 %v733
          %v838 = vunpack.c.l.b16 %v734
          %v839 = vunpack.c.l.b16 %v735
          %v840 = vunpack.c.l.b16 %v736
          %v841 = vunpack.c.l.b16 %v737
          %v842 = vunpack.c.l.b16 %v738
          %v843 = vunpack.c.l.b16 %v739
          %v844 = vunpack.c.l.b16 %v740
          %v845 = vunpack.c.l.b16 %v741
          %v846 = vunpack.c.l.b16 %v742
          %v847 = vunpack.c.l.b16 %v743
          %v848 = vunpack.c.l.b16 %v744
          %v849 = vpack.c.b16 %v818, %v817
          %v850 = vpack.c.b16 %v820, %v819
          %v851 = vpack.c.b16 %v822, %v821
          %v852 = vpack.c.b16 %v824, %v823
          %v853 = vpack.c.b16 %v826, %v825
          %v854 = vpack.c.b16 %v828, %v827
          %v855 = vpack.c.b16 %v830, %v829
          %v856 = vpack.c.b16 %v832, %v831
          %v857 = vpack.c.b16 %v834, %v833
          %v858 = vpack.c.b16 %v836, %v835
          %v859 = vpack.c.b16 %v838, %v837
          %v860 = vpack.c.b16 %v840, %v839
          %v861 = vpack.c.b16 %v842, %v841
          %v862 = vpack.c.b16 %v844, %v843
          %v863 = vpack.c.b16 %v846, %v845
          %v864 = vpack.c.b16 %v848, %v847
          %v913 = vunpack.c.l.b16 %v745
          %v914 = vunpack.c.h.b16 %v745
          %v915 = vunpack.c.l.b16 %v746
          %v916 = vunpack.c.l.b16 %v747
          %v917 = vunpack.c.h.b16 %v747
          %v918 = vunpack.c.l.b16 %v748
          %v919 = vunpack.c.l.b16 %v749
          %v920 = vunpack.c.h.b16 %v749
          %v921 = vunpack.c.l.b16 %v750
          %v922 = vunpack.c.l.b16 %v751
          %v923 = vunpack.c.h.b16 %v751
          %v924 = vunpack.c.l.b16 %v752
          %v925 = vunpack.c.l.b16 %v753
          %v926 = vunpack.c.h.b16 %v753
          %v927 = vunpack.c.l.b16 %v754
          %v928 = vunpack.c.l.b16 %v755
          %v929 = vunpack.c.h.b16 %v755
          %v930 = vunpack.c.l.b16 %v756
          %v931 = vunpack.c.l.b16 %v757
          %v932 = vunpack.c.h.b16 %v757
          %v933 = vunpack.c.l.b16 %v758
          %v934 = vunpack.c.l.b16 %v759
          %v935 = vunpack.c.h.b16 %v759
          %v936 = vunpack.c.l.b16 %v760
          %v937 = vunpack.c.l.b16 %v761
          %v938 = vunpack.c.h.b16 %v761
          %v939 = vunpack.c.l.b16 %v762
          %v940 = vunpack.c.l.b16 %v763
          %v941 = vunpack.c.h.b16 %v763
          %v942 = vunpack.c.l.b16 %v764
          %v943 = vunpack.c.l.b16 %v765
          %v944 = vunpack.c.h.b16 %v765
          %v945 = vunpack.c.l.b16 %v766
          %v946 = vunpack.c.l.b16 %v767
          %v947 = vunpack.c.h.b16 %v767
          %v948 = vunpack.c.l.b16 %v768
          %v949 = vunpack.c.l.b16 %v769
          %v950 = vunpack.c.h.b16 %v769
          %v951 = vunpack.c.l.b16 %v770
          %v952 = vunpack.c.l.b16 %v771
          %v953 = vunpack.c.h.b16 %v771
          %v954 = vunpack.c.l.b16 %v772
          %v955 = vunpack.c.l.b16 %v773
          %v956 = vunpack.c.h.b16 %v773
          %v957 = vunpack.c.l.b16 %v774
          %v958 = vunpack.c.l.b16 %v775
          %v959 = vunpack.c.h.b16 %v775
          %v960 = vunpack.c.l.b16 %v776
          %v961 = vpack.c.b16 %v916, %v913
          %v962 = vpack.c.b16 %v917, %v914
          %v963 = vpack.c.b16 %v918, %v915
          %v964 = vpack.c.b16 %v922, %v919
          %v965 = vpack.c.b16 %v923, %v920
          %v966 = vpack.c.b16 %v924, %v921
          %v967 = vpack.c.b16 %v928, %v925
          %v968 = vpack.c.b16 %v929, %v926
          %v969 = vpack.c.b16 %v930, %v927
          %v970 = vpack.c.b16 %v934, %v931
          %v971 = vpack.c.b16 %v935, %v932
          %v972 = vpack.c.b16 %v936, %v933
          %v973 = vpack.c.b16 %v940, %v937
          %v974 = vpack.c.b16 %v941, %v938
          %v975 = vpack.c.b16 %v942, %v939
          %v976 = vpack.c.b16 %v946, %v943
          %v977 = vpack.c.b16 %v947, %v944
          %v978 = vpack.c.b16 %v948, %v945
          %v979 = vpack.c.b16 %v952, %v949
          %v980 = vpack.c.b16 %v953, %v950
          %v981 = vpack.c.b16 %v954, %v951
          %v982 = vpack.c.b16 %v958, %v955
          %v983 = vpack.c.b16 %v959, %v956
          %v984 = vpack.c.b16 %v960, %v957
          %1009 = vmatpush.bf16.msra.mxu0 %v982
          %1010 = vmatpush.bf16.msra.mxu0 %v979
          %1011 = vmatpush.bf16.msra.mxu0 %v976
          %1012 = vmatpush.bf16.msra.mxu0 %v973
          %1013 = vmatpush.bf16.msra.mxu0 %v970
          %1014 = vmatpush.bf16.msra.mxu0 %v967
          %1015 = vmatpush.bf16.msra.mxu0 %v964
          %1016 = vmatpush.bf16.msra.mxu0 %v961
          %1017 = vmatmul.bf16.gmra.mxu0 %v849
          %v1018 = vpop.f32.mrf.mxu0
          %v1019 = vadd.f32 %v779, %v1018
          %v1020 = vpop.f32.mrf.mxu0
          %v1021 = vadd.f32 %v779, %v1020
          %1022 = vmatmul.bf16.gmra.mxu0 %v850
          %v1023 = vpop.f32.mrf.mxu0
          %v1024 = vadd.f32 %v779, %v1023
          %v1025 = vpop.f32.mrf.mxu0
          %v1026 = vadd.f32 %v779, %v1025
          %1027 = vmatmul.bf16.gmra.mxu0 %v851
          %v1028 = vpop.f32.mrf.mxu0
          %v1029 = vadd.f32 %v779, %v1028
          %v1030 = vpop.f32.mrf.mxu0
          %v1031 = vadd.f32 %v779, %v1030
          %1032 = vmatmul.bf16.gmra.mxu0 %v852
          %v1033 = vpop.f32.mrf.mxu0
          %v1034 = vadd.f32 %v779, %v1033
          %v1035 = vpop.f32.mrf.mxu0
          %v1036 = vadd.f32 %v779, %v1035
          %1037 = vmatmul.bf16.gmra.mxu0 %v853
          %v1038 = vpop.f32.mrf.mxu0
          %v1039 = vadd.f32 %v779, %v1038
          %v1040 = vpop.f32.mrf.mxu0
          %v1041 = vadd.f32 %v779, %v1040
          %1042 = vmatmul.bf16.gmra.mxu0 %v854
          %v1043 = vpop.f32.mrf.mxu0
          %v1044 = vadd.f32 %v779, %v1043
          %v1045 = vpop.f32.mrf.mxu0
          %v1046 = vadd.f32 %v779, %v1045
          %1047 = vmatmul.bf16.gmra.mxu0 %v855
          %v1048 = vpop.f32.mrf.mxu0
          %v1049 = vadd.f32 %v779, %v1048
          %v1050 = vpop.f32.mrf.mxu0
          %v1051 = vadd.f32 %v779, %v1050
          %1052 = vmatmul.bf16.gmra.mxu0 %v856
          %v1053 = vpop.f32.mrf.mxu0
          %v1054 = vadd.f32 %v779, %v1053
          %v1055 = vpop.f32.mrf.mxu0
          %v1056 = vadd.f32 %v779, %v1055
          %1057 = vmatmul.bf16.gmra.mxu0 %v857
          %v1058 = vpop.f32.mrf.mxu0
          %v1059 = vadd.f32 %v779, %v1058
          %v1060 = vpop.f32.mrf.mxu0
          %v1061 = vadd.f32 %v779, %v1060
          %1062 = vmatmul.bf16.gmra.mxu0 %v858
          %v1063 = vpop.f32.mrf.mxu0
          %v1064 = vadd.f32 %v779, %v1063
          %v1065 = vpop.f32.mrf.mxu0
          %v1066 = vadd.f32 %v779, %v1065
          %1067 = vmatmul.bf16.gmra.mxu0 %v859
          %v1068 = vpop.f32.mrf.mxu0
          %v1069 = vadd.f32 %v779, %v1068
          %v1070 = vpop.f32.mrf.mxu0
          %v1071 = vadd.f32 %v779, %v1070
          %1072 = vmatmul.bf16.gmra.mxu0 %v860
          %v1073 = vpop.f32.mrf.mxu0
          %v1074 = vadd.f32 %v779, %v1073
          %v1075 = vpop.f32.mrf.mxu0
          %v1076 = vadd.f32 %v779, %v1075
          %1077 = vmatmul.bf16.gmra.mxu0 %v861
          %v1078 = vpop.f32.mrf.mxu0
          %v1079 = vadd.f32 %v779, %v1078
          %v1080 = vpop.f32.mrf.mxu0
          %v1081 = vadd.f32 %v779, %v1080
          %1082 = vmatmul.bf16.gmra.mxu0 %v862
          %v1083 = vpop.f32.mrf.mxu0
          %v1084 = vadd.f32 %v779, %v1083
          %v1085 = vpop.f32.mrf.mxu0
          %v1086 = vadd.f32 %v779, %v1085
          %1087 = vmatmul.bf16.gmra.mxu0 %v863
          %v1088 = vpop.f32.mrf.mxu0
          %v1089 = vadd.f32 %v779, %v1088
          %v1090 = vpop.f32.mrf.mxu0
          %v1091 = vadd.f32 %v779, %v1090
          %1092 = vmatmul.bf16.gmra.mxu0 %v864
          %v1093 = vpop.f32.mrf.mxu0
          %v1094 = vadd.f32 %v779, %v1093
          %v1095 = vpop.f32.mrf.mxu0
          %v1096 = vadd.f32 %v779, %v1095
          %1097 = vdwg.mxu0
          %1098 = vmatpush.bf16.msra.mxu0 %v983
          %1099 = vmatpush.bf16.msra.mxu0 %v980
          %1100 = vmatpush.bf16.msra.mxu0 %v977
          %1101 = vmatpush.bf16.msra.mxu0 %v974
          %1102 = vmatpush.bf16.msra.mxu0 %v971
          %1103 = vmatpush.bf16.msra.mxu0 %v968
          %1104 = vmatpush.bf16.msra.mxu0 %v965
          %1105 = vmatpush.bf16.msra.mxu0 %v962
          %1106 = vmatmul.bf16.gmra.mxu0 %v849
          %v1107 = vpop.f32.mrf.mxu0
          %v1108 = vadd.f32 %v780, %v1107
          %v1109 = vpop.f32.mrf.mxu0
          %v1110 = vadd.f32 %v780, %v1109
          %1111 = vmatmul.bf16.gmra.mxu0 %v850
          %v1112 = vpop.f32.mrf.mxu0
          %v1113 = vadd.f32 %v780, %v1112
          %v1114 = vpop.f32.mrf.mxu0
          %v1115 = vadd.f32 %v780, %v1114
          %1116 = vmatmul.bf16.gmra.mxu0 %v851
          %v1117 = vpop.f32.mrf.mxu0
          %v1118 = vadd.f32 %v780, %v1117
          %v1119 = vpop.f32.mrf.mxu0
          %v1120 = vadd.f32 %v780, %v1119
          %1121 = vmatmul.bf16.gmra.mxu0 %v852
          %v1122 = vpop.f32.mrf.mxu0
          %v1123 = vadd.f32 %v780, %v1122
          %v1124 = vpop.f32.mrf.mxu0
          %v1125 = vadd.f32 %v780, %v1124
          %1126 = vmatmul.bf16.gmra.mxu0 %v853
          %v1127 = vpop.f32.mrf.mxu0
          %v1128 = vadd.f32 %v780, %v1127
          %v1129 = vpop.f32.mrf.mxu0
          %v1130 = vadd.f32 %v780, %v1129
          %1131 = vmatmul.bf16.gmra.mxu0 %v854
          %v1132 = vpop.f32.mrf.mxu0
          %v1133 = vadd.f32 %v780, %v1132
          %v1134 = vpop.f32.mrf.mxu0
          %v1135 = vadd.f32 %v780, %v1134
          %1136 = vmatmul.bf16.gmra.mxu0 %v855
          %v1137 = vpop.f32.mrf.mxu0
          %v1138 = vadd.f32 %v780, %v1137
          %v1139 = vpop.f32.mrf.mxu0
          %v1140 = vadd.f32 %v780, %v1139
          %1141 = vmatmul.bf16.gmra.mxu0 %v856
          %v1142 = vpop.f32.mrf.mxu0
          %v1143 = vadd.f32 %v780, %v1142
          %v1144 = vpop.f32.mrf.mxu0
          %v1145 = vadd.f32 %v780, %v1144
          %1146 = vmatmul.bf16.gmra.mxu0 %v857
          %v1147 = vpop.f32.mrf.mxu0
          %v1148 = vadd.f32 %v780, %v1147
          %v1149 = vpop.f32.mrf.mxu0
          %v1150 = vadd.f32 %v780, %v1149
          %1151 = vmatmul.bf16.gmra.mxu0 %v858
          %v1152 = vpop.f32.mrf.mxu0
          %v1153 = vadd.f32 %v780, %v1152
          %v1154 = vpop.f32.mrf.mxu0
          %v1155 = vadd.f32 %v780, %v1154
          %1156 = vmatmul.bf16.gmra.mxu0 %v859
          %v1157 = vpop.f32.mrf.mxu0
          %v1158 = vadd.f32 %v780, %v1157
          %v1159 = vpop.f32.mrf.mxu0
          %v1160 = vadd.f32 %v780, %v1159
          %1161 = vmatmul.bf16.gmra.mxu0 %v860
          %v1162 = vpop.f32.mrf.mxu0
          %v1163 = vadd.f32 %v780, %v1162
          %v1164 = vpop.f32.mrf.mxu0
          %v1165 = vadd.f32 %v780, %v1164
          %1166 = vmatmul.bf16.gmra.mxu0 %v861
          %v1167 = vpop.f32.mrf.mxu0
          %v1168 = vadd.f32 %v780, %v1167
          %v1169 = vpop.f32.mrf.mxu0
          %v1170 = vadd.f32 %v780, %v1169
          %1171 = vmatmul.bf16.gmra.mxu0 %v862
          %v1172 = vpop.f32.mrf.mxu0
          %v1173 = vadd.f32 %v780, %v1172
          %v1174 = vpop.f32.mrf.mxu0
          %v1175 = vadd.f32 %v780, %v1174
          %1176 = vmatmul.bf16.gmra.mxu0 %v863
          %v1177 = vpop.f32.mrf.mxu0
          %v1178 = vadd.f32 %v780, %v1177
          %v1179 = vpop.f32.mrf.mxu0
          %v1180 = vadd.f32 %v780, %v1179
          %1181 = vmatmul.bf16.gmra.mxu0 %v864
          %v1182 = vpop.f32.mrf.mxu0
          %v1183 = vadd.f32 %v780, %v1182
          %v1184 = vpop.f32.mrf.mxu0
          %v1185 = vadd.f32 %v780, %v1184
          %1186 = vdwg.mxu0
          %1187 = vmatpush.bf16.msra.mxu0 %v984
          %1188 = vmatpush.bf16.msra.mxu0 %v981
          %1189 = vmatpush.bf16.msra.mxu0 %v978
          %1190 = vmatpush.bf16.msra.mxu0 %v975
          %1191 = vmatpush.bf16.msra.mxu0 %v972
          %1192 = vmatpush.bf16.msra.mxu0 %v969
          %1193 = vmatpush.bf16.msra.mxu0 %v966
          %1194 = vmatpush.bf16.msra.mxu0 %v963
          %1195 = vmatmul.bf16.gmra.mxu0 %v849
          %v1196 = vpop.f32.mrf.mxu0
          %v1197 = vadd.f32 %v781, %v1196
          %v1198 = vpop.f32.mrf.mxu0
          %v1199 = vadd.f32 %v781, %v1198
          %1200 = vmatmul.bf16.gmra.mxu0 %v850
          %v1201 = vpop.f32.mrf.mxu0
          %v1202 = vadd.f32 %v781, %v1201
          %v1203 = vpop.f32.mrf.mxu0
          %v1204 = vadd.f32 %v781, %v1203
          %1205 = vmatmul.bf16.gmra.mxu0 %v851
          %v1206 = vpop.f32.mrf.mxu0
          %v1207 = vadd.f32 %v781, %v1206
          %v1208 = vpop.f32.mrf.mxu0
          %v1209 = vadd.f32 %v781, %v1208
          %1210 = vmatmul.bf16.gmra.mxu0 %v852
          %v1211 = vpop.f32.mrf.mxu0
          %v1212 = vadd.f32 %v781, %v1211
          %v1213 = vpop.f32.mrf.mxu0
          %v1214 = vadd.f32 %v781, %v1213
          %1215 = vmatmul.bf16.gmra.mxu0 %v853
          %v1216 = vpop.f32.mrf.mxu0
          %v1217 = vadd.f32 %v781, %v1216
          %v1218 = vpop.f32.mrf.mxu0
          %v1219 = vadd.f32 %v781, %v1218
          %1220 = vmatmul.bf16.gmra.mxu0 %v854
          %v1221 = vpop.f32.mrf.mxu0
          %v1222 = vadd.f32 %v781, %v1221
          %v1223 = vpop.f32.mrf.mxu0
          %v1224 = vadd.f32 %v781, %v1223
          %1225 = vmatmul.bf16.gmra.mxu0 %v855
          %v1226 = vpop.f32.mrf.mxu0
          %v1227 = vadd.f32 %v781, %v1226
          %v1228 = vpop.f32.mrf.mxu0
          %v1229 = vadd.f32 %v781, %v1228
          %1230 = vmatmul.bf16.gmra.mxu0 %v856
          %v1231 = vpop.f32.mrf.mxu0
          %v1232 = vadd.f32 %v781, %v1231
          %v1233 = vpop.f32.mrf.mxu0
          %v1234 = vadd.f32 %v781, %v1233
          %1235 = vmatmul.bf16.gmra.mxu0 %v857
          %v1236 = vpop.f32.mrf.mxu0
          %v1237 = vadd.f32 %v781, %v1236
          %v1238 = vpop.f32.mrf.mxu0
          %v1239 = vadd.f32 %v781, %v1238
          %1240 = vmatmul.bf16.gmra.mxu0 %v858
          %v1241 = vpop.f32.mrf.mxu0
          %v1242 = vadd.f32 %v781, %v1241
          %v1243 = vpop.f32.mrf.mxu0
          %v1244 = vadd.f32 %v781, %v1243
          %1245 = vmatmul.bf16.gmra.mxu0 %v859
          %v1246 = vpop.f32.mrf.mxu0
          %v1247 = vadd.f32 %v781, %v1246
          %v1248 = vpop.f32.mrf.mxu0
          %v1249 = vadd.f32 %v781, %v1248
          %1250 = vmatmul.bf16.gmra.mxu0 %v860
          %v1251 = vpop.f32.mrf.mxu0
          %v1252 = vadd.f32 %v781, %v1251
          %v1253 = vpop.f32.mrf.mxu0
          %v1254 = vadd.f32 %v781, %v1253
          %1255 = vmatmul.bf16.gmra.mxu0 %v861
          %v1256 = vpop.f32.mrf.mxu0
          %v1257 = vadd.f32 %v781, %v1256
          %v1258 = vpop.f32.mrf.mxu0
          %v1259 = vadd.f32 %v781, %v1258
          %1260 = vmatmul.bf16.gmra.mxu0 %v862
          %v1261 = vpop.f32.mrf.mxu0
          %v1262 = vadd.f32 %v781, %v1261
          %v1263 = vpop.f32.mrf.mxu0
          %v1264 = vadd.f32 %v781, %v1263
          %1265 = vmatmul.bf16.gmra.mxu0 %v863
          %v1266 = vpop.f32.mrf.mxu0
          %v1267 = vadd.f32 %v781, %v1266
          %v1268 = vpop.f32.mrf.mxu0
          %v1269 = vadd.f32 %v781, %v1268
          %1270 = vmatmul.bf16.gmra.mxu0 %v864
          %v1271 = vpop.f32.mrf.mxu0
          %v1272 = vadd.f32 %v781, %v1271
          %v1273 = vpop.f32.mrf.mxu0
          %v1274 = vadd.f32 %v781, %v1273
          %1275 = vdwg.mxu0
          %v1276 = vpack.c.bf16 %v1108, %v1019
          %v1277 = vpack.c.bf16 %v1197, %v1197
          %v1278 = vpack.c.bf16 %v1110, %v1021
          %v1279 = vpack.c.bf16 %v1199, %v1199
          %v1280 = vpack.c.bf16 %v1113, %v1024
          %v1281 = vpack.c.bf16 %v1202, %v1202
          %v1282 = vpack.c.bf16 %v1115, %v1026
          %v1283 = vpack.c.bf16 %v1204, %v1204
          %v1284 = vpack.c.bf16 %v1118, %v1029
          %v1285 = vpack.c.bf16 %v1207, %v1207
          %v1286 = vpack.c.bf16 %v1120, %v1031
          %v1287 = vpack.c.bf16 %v1209, %v1209
          %v1288 = vpack.c.bf16 %v1123, %v1034
          %v1289 = vpack.c.bf16 %v1212, %v1212
          %v1290 = vpack.c.bf16 %v1125, %v1036
          %v1291 = vpack.c.bf16 %v1214, %v1214
          %v1292 = vpack.c.bf16 %v1128, %v1039
          %v1293 = vpack.c.bf16 %v1217, %v1217
          %v1294 = vpack.c.bf16 %v1130, %v1041
          %v1295 = vpack.c.bf16 %v1219, %v1219
          %v1296 = vpack.c.bf16 %v1133, %v1044
          %v1297 = vpack.c.bf16 %v1222, %v1222
          %v1298 = vpack.c.bf16 %v1135, %v1046
          %v1299 = vpack.c.bf16 %v1224, %v1224
          %v1300 = vpack.c.bf16 %v1138, %v1049
          %v1301 = vpack.c.bf16 %v1227, %v1227
          %v1302 = vpack.c.bf16 %v1140, %v1051
          %v1303 = vpack.c.bf16 %v1229, %v1229
          %v1304 = vpack.c.bf16 %v1143, %v1054
          %v1305 = vpack.c.bf16 %v1232, %v1232
          %v1306 = vpack.c.bf16 %v1145, %v1056
          %v1307 = vpack.c.bf16 %v1234, %v1234
          %v1308 = vpack.c.bf16 %v1148, %v1059
          %v1309 = vpack.c.bf16 %v1237, %v1237
          %v1310 = vpack.c.bf16 %v1150, %v1061
          %v1311 = vpack.c.bf16 %v1239, %v1239
          %v1312 = vpack.c.bf16 %v1153, %v1064
          %v1313 = vpack.c.bf16 %v1242, %v1242
          %v1314 = vpack.c.bf16 %v1155, %v1066
          %v1315 = vpack.c.bf16 %v1244, %v1244
          %v1316 = vpack.c.bf16 %v1158, %v1069
          %v1317 = vpack.c.bf16 %v1247, %v1247
          %v1318 = vpack.c.bf16 %v1160, %v1071
          %v1319 = vpack.c.bf16 %v1249, %v1249
          %v1320 = vpack.c.bf16 %v1163, %v1074
          %v1321 = vpack.c.bf16 %v1252, %v1252
          %v1322 = vpack.c.bf16 %v1165, %v1076
          %v1323 = vpack.c.bf16 %v1254, %v1254
          %v1324 = vpack.c.bf16 %v1168, %v1079
          %v1325 = vpack.c.bf16 %v1257, %v1257
          %v1326 = vpack.c.bf16 %v1170, %v1081
          %v1327 = vpack.c.bf16 %v1259, %v1259
          %v1328 = vpack.c.bf16 %v1173, %v1084
          %v1329 = vpack.c.bf16 %v1262, %v1262
          %v1330 = vpack.c.bf16 %v1175, %v1086
          %v1331 = vpack.c.bf16 %v1264, %v1264
          %v1332 = vpack.c.bf16 %v1178, %v1089
          %v1333 = vpack.c.bf16 %v1267, %v1267
          %v1334 = vpack.c.bf16 %v1180, %v1091
          %v1335 = vpack.c.bf16 %v1269, %v1269
          %v1336 = vpack.c.bf16 %v1183, %v1094
          %v1337 = vpack.c.bf16 %v1272, %v1272
          %v1338 = vpack.c.bf16 %v1185, %v1096
          %v1339 = vpack.c.bf16 %v1274, %v1274
          %v1340 = vld [vmem:[#allocation7] sm:$0xf]
          %v1341 = vld [vmem:[#allocation7 + $0x4] sm:$0xf]
          %v1342 = vld [vmem:[#allocation7 + $0x8] sm:$0xf]
          %v1343 = vld [vmem:[#allocation7 + $0xc] sm:$0xf]
          %v1344 = vld [vmem:[#allocation7 + $0x10] sm:$0xf]
          %v1345 = vld [vmem:[#allocation7 + $0x14] sm:$0xf]
          %v1346 = vld [vmem:[#allocation7 + $0x18] sm:$0xf]
          %v1347 = vld [vmem:[#allocation7 + $0x1c] sm:$0xf]
          %v1348 = vld [vmem:[#allocation7 + $0x20] sm:$0xf]
          %v1349 = vld [vmem:[#allocation7 + $0x24] sm:$0xf]
          %v1350 = vld [vmem:[#allocation7 + $0x28] sm:$0xf]
          %v1351 = vld [vmem:[#allocation7 + $0x2c] sm:$0xf]
          %v1352 = vld [vmem:[#allocation7 + $0x30] sm:$0xf]
          %v1353 = vld [vmem:[#allocation7 + $0x34] sm:$0xf]
          %v1354 = vld [vmem:[#allocation7 + $0x38] sm:$0xf]
          %v1355 = vld [vmem:[#allocation7 + $0x3c] sm:$0xf]
          %v1356 = vld [vmem:[%s6] sm:$0x1]
          %v1358 = vperm.slane %v1356, 0
          %v1376 = vunpack.c.l.b16 %v1340
          %v1377 = vunpack.c.l.b16 %v1341
          %v1378 = vunpack.c.l.b16 %v1342
          %v1379 = vunpack.c.l.b16 %v1343
          %v1380 = vunpack.c.l.b16 %v1344
          %v1381 = vunpack.c.l.b16 %v1345
          %v1382 = vunpack.c.l.b16 %v1346
          %v1383 = vunpack.c.l.b16 %v1347
          %v1384 = vunpack.c.l.b16 %v1348
          %v1385 = vunpack.c.l.b16 %v1349
          %v1386 = vunpack.c.l.b16 %v1350
          %v1387 = vunpack.c.l.b16 %v1351
          %v1388 = vunpack.c.l.b16 %v1352
          %v1389 = vunpack.c.l.b16 %v1353
          %v1390 = vunpack.c.l.b16 %v1354
          %v1391 = vunpack.c.l.b16 %v1355
          %v1392 = vpack.c.b16 %v1377, %v1376
          %v1393 = vpack.c.b16 %v1379, %v1378
          %v1394 = vpack.c.b16 %v1381, %v1380
          %v1395 = vpack.c.b16 %v1383, %v1382
          %v1396 = vpack.c.b16 %v1385, %v1384
          %v1397 = vpack.c.b16 %v1387, %v1386
          %v1398 = vpack.c.b16 %v1389, %v1388
          %v1399 = vpack.c.b16 %v1391, %v1390
          %1408 = vmatpush.bf16.msra.mxu0 %v1399
          %1409 = vmatpush.bf16.msra.mxu0 %v1398
          %1410 = vmatpush.bf16.msra.mxu0 %v1397
          %1411 = vmatpush.bf16.msra.mxu0 %v1396
          %1412 = vmatpush.bf16.msra.mxu0 %v1395
          %1413 = vmatpush.bf16.msra.mxu0 %v1394
          %1414 = vmatpush.bf16.msra.mxu0 %v1393
          %1415 = vmatpush.bf16.msra.mxu0 %v1392
          %1416 = vmatmul.bf16.gmra.mxu0 %v849
          %v1417 = vpop.f32.mrf.mxu0
          %v1418 = vadd.f32 %v1358, %v1417
          %v1419 = vpop.f32.mrf.mxu0
          %v1420 = vadd.f32 %v1358, %v1419
          %1421 = vmatmul.bf16.gmra.mxu0 %v850
          %v1422 = vpop.f32.mrf.mxu0
          %v1423 = vadd.f32 %v1358, %v1422
          %v1424 = vpop.f32.mrf.mxu0
          %v1425 = vadd.f32 %v1358, %v1424
          %1426 = vmatmul.bf16.gmra.mxu0 %v851
          %v1427 = vpop.f32.mrf.mxu0
          %v1428 = vadd.f32 %v1358, %v1427
          %v1429 = vpop.f32.mrf.mxu0
          %v1430 = vadd.f32 %v1358, %v1429
          %1431 = vmatmul.bf16.gmra.mxu0 %v852
          %v1432 = vpop.f32.mrf.mxu0
          %v1433 = vadd.f32 %v1358, %v1432
          %v1434 = vpop.f32.mrf.mxu0
          %v1435 = vadd.f32 %v1358, %v1434
          %1436 = vmatmul.bf16.gmra.mxu0 %v853
          %v1437 = vpop.f32.mrf.mxu0
          %v1438 = vadd.f32 %v1358, %v1437
          %v1439 = vpop.f32.mrf.mxu0
          %v1440 = vadd.f32 %v1358, %v1439
          %1441 = vmatmul.bf16.gmra.mxu0 %v854
          %v1442 = vpop.f32.mrf.mxu0
          %v1443 = vadd.f32 %v1358, %v1442
          %v1444 = vpop.f32.mrf.mxu0
          %v1445 = vadd.f32 %v1358, %v1444
          %1446 = vmatmul.bf16.gmra.mxu0 %v855
          %v1447 = vpop.f32.mrf.mxu0
          %v1448 = vadd.f32 %v1358, %v1447
          %v1449 = vpop.f32.mrf.mxu0
          %v1450 = vadd.f32 %v1358, %v1449
          %1451 = vmatmul.bf16.gmra.mxu0 %v856
          %v1452 = vpop.f32.mrf.mxu0
          %v1453 = vadd.f32 %v1358, %v1452
          %v1454 = vpop.f32.mrf.mxu0
          %v1455 = vadd.f32 %v1358, %v1454
          %1456 = vmatmul.bf16.gmra.mxu0 %v857
          %v1457 = vpop.f32.mrf.mxu0
          %v1458 = vadd.f32 %v1358, %v1457
          %v1459 = vpop.f32.mrf.mxu0
          %v1460 = vadd.f32 %v1358, %v1459
          %1461 = vmatmul.bf16.gmra.mxu0 %v858
          %v1462 = vpop.f32.mrf.mxu0
          %v1463 = vadd.f32 %v1358, %v1462
          %v1464 = vpop.f32.mrf.mxu0
          %v1465 = vadd.f32 %v1358, %v1464
          %1466 = vmatmul.bf16.gmra.mxu0 %v859
          %v1467 = vpop.f32.mrf.mxu0
          %v1468 = vadd.f32 %v1358, %v1467
          %v1469 = vpop.f32.mrf.mxu0
          %v1470 = vadd.f32 %v1358, %v1469
          %1471 = vmatmul.bf16.gmra.mxu0 %v860
          %v1472 = vpop.f32.mrf.mxu0
          %v1473 = vadd.f32 %v1358, %v1472
          %v1474 = vpop.f32.mrf.mxu0
          %v1475 = vadd.f32 %v1358, %v1474
          %1476 = vmatmul.bf16.gmra.mxu0 %v861
          %v1477 = vpop.f32.mrf.mxu0
          %v1478 = vadd.f32 %v1358, %v1477
          %v1479 = vpop.f32.mrf.mxu0
          %v1480 = vadd.f32 %v1358, %v1479
          %1481 = vmatmul.bf16.gmra.mxu0 %v862
          %v1482 = vpop.f32.mrf.mxu0
          %v1483 = vadd.f32 %v1358, %v1482
          %v1484 = vpop.f32.mrf.mxu0
          %v1485 = vadd.f32 %v1358, %v1484
          %1486 = vmatmul.bf16.gmra.mxu0 %v863
          %v1487 = vpop.f32.mrf.mxu0
          %v1488 = vadd.f32 %v1358, %v1487
          %v1489 = vpop.f32.mrf.mxu0
          %v1490 = vadd.f32 %v1358, %v1489
          %1491 = vmatmul.bf16.gmra.mxu0 %v864
          %v1492 = vpop.f32.mrf.mxu0
          %v1493 = vadd.f32 %v1358, %v1492
          %v1494 = vpop.f32.mrf.mxu0
          %v1495 = vadd.f32 %v1358, %v1494
          %1496 = vdwg.mxu0
          %v1497 = vmul.f32 %v1418, %v486
          %v1498 = vmul.f32 %v1420, %v491
          %v1499 = vmul.f32 %v1423, %v496
          %v1500 = vmul.f32 %v1425, %v501
          %v1501 = vmul.f32 %v1428, %v506
          %v1502 = vmul.f32 %v1430, %v511
          %v1503 = vmul.f32 %v1433, %v516
          %v1504 = vmul.f32 %v1435, %v521
          %v1505 = vmul.f32 %v1438, %v526
          %v1506 = vmul.f32 %v1440, %v531
          %v1507 = vmul.f32 %v1443, %v536
          %v1508 = vmul.f32 %v1445, %v541
          %v1509 = vmul.f32 %v1448, %v546
          %v1510 = vmul.f32 %v1450, %v551
          %v1511 = vmul.f32 %v1453, %v556
          %v1512 = vmul.f32 %v1455, %v561
          %v1513 = vmul.f32 %v1458, %v566
          %v1514 = vmul.f32 %v1460, %v571
          %v1515 = vmul.f32 %v1463, %v576
          %v1516 = vmul.f32 %v1465, %v581
          %v1517 = vmul.f32 %v1468, %v586
          %v1518 = vmul.f32 %v1470, %v591
          %v1519 = vmul.f32 %v1473, %v596
          %v1520 = vmul.f32 %v1475, %v601
          %v1521 = vmul.f32 %v1478, %v606
          %v1522 = vmul.f32 %v1480, %v611
          %v1523 = vmul.f32 %v1483, %v616
          %v1524 = vmul.f32 %v1485, %v621
          %v1525 = vmul.f32 %v1488, %v626
          %v1526 = vmul.f32 %v1490, %v631
          %v1527 = vmul.f32 %v1493, %v636
          %v1528 = vmul.f32 %v1495, %v641
          %v1533 = vunpack.c.l.b16 %v1276
          %v1534 = vunpack.c.l.b16 %v1278
          %v1535 = vunpack.c.l.b16 %v1280
          %v1536 = vunpack.c.l.b16 %v1282
          %v1537 = vpack.c.b16 %v1534, %v1533
          %v1538 = vpack.c.b16 %v1536, %v1535
          %v1541 = vunpack.c.h.b16 %v1276
          %v1542 = vunpack.c.h.b16 %v1278
          %v1543 = vunpack.c.h.b16 %v1280
          %v1544 = vunpack.c.h.b16 %v1282
          %v1545 = vpack.c.b16 %v1542, %v1541
          %v1546 = vpack.c.b16 %v1544, %v1543
          %v1553 = vunpack.c.l.b16 %v1277
          %v1554 = vunpack.c.l.b16 %v1279
          %v1555 = vunpack.c.l.b16 %v1281
          %v1556 = vunpack.c.l.b16 %v1283
          %v1557 = vpack.c.b16 %v1554, %v1553
          %v1558 = vpack.c.b16 %v1556, %v1555
          %v1561 = vld [vmem:[%s375] sm:$0xf]
          %v1562 = vld [vmem:[%s375 + $0x4] sm:$0xf]
          %v1563 = vld [vmem:[%s375 + $0x8] sm:$0xf]
          %v1564 = vld [vmem:[%s375 + $0xc] sm:$0xf]
          %v1569 = vunpack.c.l.b16 %v1561
          %v1570 = vunpack.c.l.b16 %v1562
          %v1571 = vunpack.c.l.b16 %v1563
          %v1572 = vunpack.c.l.b16 %v1564
          %v1573 = vpack.c.b16 %v1570, %v1569
          %v1574 = vpack.c.b16 %v1572, %v1571
          %vm1575 = vcmask 785408
          %v1577 = vsel %vm1575, %v1573, 0
          %v1580 = vsel %vm1575, %v1574, 0
          %1582 = vmatpush.bf16.msra.mxu0 0
          %1583 = vmatpush.bf16.msra.mxu0 0
          %1584 = vmatpush.bf16.msra.mxu0 %v1558
          %1585 = vmatpush.bf16.msra.mxu0 %v1557
          %1586 = vmatpush.bf16.msra.mxu0 %v1546
          %1587 = vmatpush.bf16.msra.mxu0 %v1545
          %1588 = vmatpush.bf16.msra.mxu0 %v1538
          %1589 = vmatpush.bf16.msra.mxu0 %v1537
          %1590 = vmatmul.bf16.gmra.mxu0 %v1577
          %v1591 = vpop.f32.mrf.mxu0
          %v1592 = vadd.f32 0.0, %v1591
          %v1593 = vpop.f32.mrf.mxu0
          %v1594 = vadd.f32 0.0, %v1593
          %1595 = vmatmul.bf16.gmra.mxu0 %v1580
          %v1596 = vpop.f32.mrf.mxu0
          %v1597 = vadd.f32 0.0, %v1596
          %v1598 = vpop.f32.mrf.mxu0
          %v1599 = vadd.f32 0.0, %v1598
          %1600 = vdwg.mxu0
          %v1605 = vunpack.c.l.b16 %v1284
          %v1606 = vunpack.c.l.b16 %v1286
          %v1607 = vunpack.c.l.b16 %v1288
          %v1608 = vunpack.c.l.b16 %v1290
          %v1609 = vpack.c.b16 %v1606, %v1605
          %v1610 = vpack.c.b16 %v1608, %v1607
          %v1613 = vunpack.c.h.b16 %v1284
          %v1614 = vunpack.c.h.b16 %v1286
          %v1615 = vunpack.c.h.b16 %v1288
          %v1616 = vunpack.c.h.b16 %v1290
          %v1617 = vpack.c.b16 %v1614, %v1613
          %v1618 = vpack.c.b16 %v1616, %v1615
          %v1625 = vunpack.c.l.b16 %v1285
          %v1626 = vunpack.c.l.b16 %v1287
          %v1627 = vunpack.c.l.b16 %v1289
          %v1628 = vunpack.c.l.b16 %v1291
          %v1629 = vpack.c.b16 %v1626, %v1625
          %v1630 = vpack.c.b16 %v1628, %v1627
          %s1633 = scalar_lea.vmem %s375, 16 [#allocation2]
          %v1634 = vld [vmem:[%s1633] sm:$0xf]
          %v1635 = vld [vmem:[%s1633 + $0x4] sm:$0xf]
          %v1636 = vld [vmem:[%s1633 + $0x8] sm:$0xf]
          %v1637 = vld [vmem:[%s1633 + $0xc] sm:$0xf]
          %v1642 = vunpack.c.l.b16 %v1634
          %v1643 = vunpack.c.l.b16 %v1635
          %v1644 = vunpack.c.l.b16 %v1636
          %v1645 = vunpack.c.l.b16 %v1637
          %v1646 = vpack.c.b16 %v1643, %v1642
          %v1647 = vpack.c.b16 %v1645, %v1644
          %v1649 = vsel %vm1575, %v1646, 0
          %v1652 = vsel %vm1575, %v1647, 0
          %1654 = vmatpush.bf16.msra.mxu0 0
          %1655 = vmatpush.bf16.msra.mxu0 0
          %1656 = vmatpush.bf16.msra.mxu0 %v1630
          %1657 = vmatpush.bf16.msra.mxu0 %v1629
          %1658 = vmatpush.bf16.msra.mxu0 %v1618
          %1659 = vmatpush.bf16.msra.mxu0 %v1617
          %1660 = vmatpush.bf16.msra.mxu0 %v1610
          %1661 = vmatpush.bf16.msra.mxu0 %v1609
          %1662 = vmatmul.bf16.gmra.mxu0 %v1649
          %v1663 = vpop.f32.mrf.mxu0
          %v1664 = vadd.f32 0.0, %v1663
          %v1665 = vpop.f32.mrf.mxu0
          %v1666 = vadd.f32 0.0, %v1665
          %1667 = vmatmul.bf16.gmra.mxu0 %v1652
          %v1668 = vpop.f32.mrf.mxu0
          %v1669 = vadd.f32 0.0, %v1668
          %v1670 = vpop.f32.mrf.mxu0
          %v1671 = vadd.f32 0.0, %v1670
          %1672 = vdwg.mxu0
          %v1677 = vunpack.c.l.b16 %v1292
          %v1678 = vunpack.c.l.b16 %v1294
          %v1679 = vunpack.c.l.b16 %v1296
          %v1680 = vunpack.c.l.b16 %v1298
          %v1681 = vpack.c.b16 %v1678, %v1677
          %v1682 = vpack.c.b16 %v1680, %v1679
          %v1685 = vunpack.c.h.b16 %v1292
          %v1686 = vunpack.c.h.b16 %v1294
          %v1687 = vunpack.c.h.b16 %v1296
          %v1688 = vunpack.c.h.b16 %v1298
          %v1689 = vpack.c.b16 %v1686, %v1685
          %v1690 = vpack.c.b16 %v1688, %v1687
          %v1697 = vunpack.c.l.b16 %v1293
          %v1698 = vunpack.c.l.b16 %v1295
          %v1699 = vunpack.c.l.b16 %v1297
          %v1700 = vunpack.c.l.b16 %v1299
          %v1701 = vpack.c.b16 %v1698, %v1697
          %v1702 = vpack.c.b16 %v1700, %v1699
          %s1705 = scalar_lea.vmem %s375, 32 [#allocation2]
          %v1706 = vld [vmem:[%s1705] sm:$0xf]
          %v1707 = vld [vmem:[%s1705 + $0x4] sm:$0xf]
          %v1708 = vld [vmem:[%s1705 + $0x8] sm:$0xf]
          %v1709 = vld [vmem:[%s1705 + $0xc] sm:$0xf]
          %v1714 = vunpack.c.l.b16 %v1706
          %v1715 = vunpack.c.l.b16 %v1707
          %v1716 = vunpack.c.l.b16 %v1708
          %v1717 = vunpack.c.l.b16 %v1709
          %v1718 = vpack.c.b16 %v1715, %v1714
          %v1719 = vpack.c.b16 %v1717, %v1716
          %v1721 = vsel %vm1575, %v1718, 0
          %v1724 = vsel %vm1575, %v1719, 0
          %1726 = vmatpush.bf16.msra.mxu0 0
          %1727 = vmatpush.bf16.msra.mxu0 0
          %1728 = vmatpush.bf16.msra.mxu0 %v1702
          %1729 = vmatpush.bf16.msra.mxu0 %v1701
          %1730 = vmatpush.bf16.msra.mxu0 %v1690
          %1731 = vmatpush.bf16.msra.mxu0 %v1689
          %1732 = vmatpush.bf16.msra.mxu0 %v1682
          %1733 = vmatpush.bf16.msra.mxu0 %v1681
          %1734 = vmatmul.bf16.gmra.mxu0 %v1721
          %v1735 = vpop.f32.mrf.mxu0
          %v1736 = vadd.f32 0.0, %v1735
          %v1737 = vpop.f32.mrf.mxu0
          %v1738 = vadd.f32 0.0, %v1737
          %1739 = vmatmul.bf16.gmra.mxu0 %v1724
          %v1740 = vpop.f32.mrf.mxu0
          %v1741 = vadd.f32 0.0, %v1740
          %v1742 = vpop.f32.mrf.mxu0
          %v1743 = vadd.f32 0.0, %v1742
          %1744 = vdwg.mxu0
          %v1749 = vunpack.c.l.b16 %v1300
          %v1750 = vunpack.c.l.b16 %v1302
          %v1751 = vunpack.c.l.b16 %v1304
          %v1752 = vunpack.c.l.b16 %v1306
          %v1753 = vpack.c.b16 %v1750, %v1749
          %v1754 = vpack.c.b16 %v1752, %v1751
          %v1757 = vunpack.c.h.b16 %v1300
          %v1758 = vunpack.c.h.b16 %v1302
          %v1759 = vunpack.c.h.b16 %v1304
          %v1760 = vunpack.c.h.b16 %v1306
          %v1761 = vpack.c.b16 %v1758, %v1757
          %v1762 = vpack.c.b16 %v1760, %v1759
          %v1769 = vunpack.c.l.b16 %v1301
          %v1770 = vunpack.c.l.b16 %v1303
          %v1771 = vunpack.c.l.b16 %v1305
          %v1772 = vunpack.c.l.b16 %v1307
          %v1773 = vpack.c.b16 %v1770, %v1769
          %v1774 = vpack.c.b16 %v1772, %v1771
          %s1777 = scalar_lea.vmem %s375, 48 [#allocation2]
          %v1778 = vld [vmem:[%s1777] sm:$0xf]
          %v1779 = vld [vmem:[%s1777 + $0x4] sm:$0xf]
          %v1780 = vld [vmem:[%s1777 + $0x8] sm:$0xf]
          %v1781 = vld [vmem:[%s1777 + $0xc] sm:$0xf]
          %v1786 = vunpack.c.l.b16 %v1778
          %v1787 = vunpack.c.l.b16 %v1779
          %v1788 = vunpack.c.l.b16 %v1780
          %v1789 = vunpack.c.l.b16 %v1781
          %v1790 = vpack.c.b16 %v1787, %v1786
          %v1791 = vpack.c.b16 %v1789, %v1788
          %v1793 = vsel %vm1575, %v1790, 0
          %v1796 = vsel %vm1575, %v1791, 0
          %1798 = vmatpush.bf16.msra.mxu0 0
          %1799 = vmatpush.bf16.msra.mxu0 0
          %1800 = vmatpush.bf16.msra.mxu0 %v1774
          %1801 = vmatpush.bf16.msra.mxu0 %v1773
          %1802 = vmatpush.bf16.msra.mxu0 %v1762
          %1803 = vmatpush.bf16.msra.mxu0 %v1761
          %1804 = vmatpush.bf16.msra.mxu0 %v1754
          %1805 = vmatpush.bf16.msra.mxu0 %v1753
          %1806 = vmatmul.bf16.gmra.mxu0 %v1793
          %v1807 = vpop.f32.mrf.mxu0
          %v1808 = vadd.f32 0.0, %v1807
          %v1809 = vpop.f32.mrf.mxu0
          %v1810 = vadd.f32 0.0, %v1809
          %1811 = vmatmul.bf16.gmra.mxu0 %v1796
          %v1812 = vpop.f32.mrf.mxu0
          %v1813 = vadd.f32 0.0, %v1812
          %v1814 = vpop.f32.mrf.mxu0
          %v1815 = vadd.f32 0.0, %v1814
          %1816 = vdwg.mxu0
          %v1821 = vunpack.c.l.b16 %v1308
          %v1822 = vunpack.c.l.b16 %v1310
          %v1823 = vunpack.c.l.b16 %v1312
          %v1824 = vunpack.c.l.b16 %v1314
          %v1825 = vpack.c.b16 %v1822, %v1821
          %v1826 = vpack.c.b16 %v1824, %v1823
          %v1829 = vunpack.c.h.b16 %v1308
          %v1830 = vunpack.c.h.b16 %v1310
          %v1831 = vunpack.c.h.b16 %v1312
          %v1832 = vunpack.c.h.b16 %v1314
          %v1833 = vpack.c.b16 %v1830, %v1829
          %v1834 = vpack.c.b16 %v1832, %v1831
          %v1841 = vunpack.c.l.b16 %v1309
          %v1842 = vunpack.c.l.b16 %v1311
          %v1843 = vunpack.c.l.b16 %v1313
          %v1844 = vunpack.c.l.b16 %v1315
          %v1845 = vpack.c.b16 %v1842, %v1841
          %v1846 = vpack.c.b16 %v1844, %v1843
          %s1849 = scalar_lea.vmem %s375, 64 [#allocation2]
          %v1850 = vld [vmem:[%s1849] sm:$0xf]
          %v1851 = vld [vmem:[%s1849 + $0x4] sm:$0xf]
          %v1852 = vld [vmem:[%s1849 + $0x8] sm:$0xf]
          %v1853 = vld [vmem:[%s1849 + $0xc] sm:$0xf]
          %v1858 = vunpack.c.l.b16 %v1850
          %v1859 = vunpack.c.l.b16 %v1851
          %v1860 = vunpack.c.l.b16 %v1852
          %v1861 = vunpack.c.l.b16 %v1853
          %v1862 = vpack.c.b16 %v1859, %v1858
          %v1863 = vpack.c.b16 %v1861, %v1860
          %v1865 = vsel %vm1575, %v1862, 0
          %v1868 = vsel %vm1575, %v1863, 0
          %1870 = vmatpush.bf16.msra.mxu0 0
          %1871 = vmatpush.bf16.msra.mxu0 0
          %1872 = vmatpush.bf16.msra.mxu0 %v1846
          %1873 = vmatpush.bf16.msra.mxu0 %v1845
          %1874 = vmatpush.bf16.msra.mxu0 %v1834
          %1875 = vmatpush.bf16.msra.mxu0 %v1833
          %1876 = vmatpush.bf16.msra.mxu0 %v1826
          %1877 = vmatpush.bf16.msra.mxu0 %v1825
          %1878 = vmatmul.bf16.gmra.mxu0 %v1865
          %v1879 = vpop.f32.mrf.mxu0
          %v1880 = vadd.f32 0.0, %v1879
          %v1881 = vpop.f32.mrf.mxu0
          %v1882 = vadd.f32 0.0, %v1881
          %1883 = vmatmul.bf16.gmra.mxu0 %v1868
          %v1884 = vpop.f32.mrf.mxu0
          %v1885 = vadd.f32 0.0, %v1884
          %v1886 = vpop.f32.mrf.mxu0
          %v1887 = vadd.f32 0.0, %v1886
          %1888 = vdwg.mxu0
          %v1893 = vunpack.c.l.b16 %v1316
          %v1894 = vunpack.c.l.b16 %v1318
          %v1895 = vunpack.c.l.b16 %v1320
          %v1896 = vunpack.c.l.b16 %v1322
          %v1897 = vpack.c.b16 %v1894, %v1893
          %v1898 = vpack.c.b16 %v1896, %v1895
          %v1901 = vunpack.c.h.b16 %v1316
          %v1902 = vunpack.c.h.b16 %v1318
          %v1903 = vunpack.c.h.b16 %v1320
          %v1904 = vunpack.c.h.b16 %v1322
          %v1905 = vpack.c.b16 %v1902, %v1901
          %v1906 = vpack.c.b16 %v1904, %v1903
          %v1913 = vunpack.c.l.b16 %v1317
          %v1914 = vunpack.c.l.b16 %v1319
          %v1915 = vunpack.c.l.b16 %v1321
          %v1916 = vunpack.c.l.b16 %v1323
          %v1917 = vpack.c.b16 %v1914, %v1913
          %v1918 = vpack.c.b16 %v1916, %v1915
          %s1921 = scalar_lea.vmem %s375, 80 [#allocation2]
          %v1922 = vld [vmem:[%s1921] sm:$0xf]
          %v1923 = vld [vmem:[%s1921 + $0x4] sm:$0xf]
          %v1924 = vld [vmem:[%s1921 + $0x8] sm:$0xf]
          %v1925 = vld [vmem:[%s1921 + $0xc] sm:$0xf]
          %v1930 = vunpack.c.l.b16 %v1922
          %v1931 = vunpack.c.l.b16 %v1923
          %v1932 = vunpack.c.l.b16 %v1924
          %v1933 = vunpack.c.l.b16 %v1925
          %v1934 = vpack.c.b16 %v1931, %v1930
          %v1935 = vpack.c.b16 %v1933, %v1932
          %v1937 = vsel %vm1575, %v1934, 0
          %v1940 = vsel %vm1575, %v1935, 0
          %1942 = vmatpush.bf16.msra.mxu0 0
          %1943 = vmatpush.bf16.msra.mxu0 0
          %1944 = vmatpush.bf16.msra.mxu0 %v1918
          %1945 = vmatpush.bf16.msra.mxu0 %v1917
          %1946 = vmatpush.bf16.msra.mxu0 %v1906
          %1947 = vmatpush.bf16.msra.mxu0 %v1905
          %1948 = vmatpush.bf16.msra.mxu0 %v1898
          %1949 = vmatpush.bf16.msra.mxu0 %v1897
          %1950 = vmatmul.bf16.gmra.mxu0 %v1937
          %v1951 = vpop.f32.mrf.mxu0
          %v1952 = vadd.f32 0.0, %v1951
          %v1953 = vpop.f32.mrf.mxu0
          %v1954 = vadd.f32 0.0, %v1953
          %1955 = vmatmul.bf16.gmra.mxu0 %v1940
          %v1956 = vpop.f32.mrf.mxu0
          %v1957 = vadd.f32 0.0, %v1956
          %v1958 = vpop.f32.mrf.mxu0
          %v1959 = vadd.f32 0.0, %v1958
          %1960 = vdwg.mxu0
          %v1965 = vunpack.c.l.b16 %v1324
          %v1966 = vunpack.c.l.b16 %v1326
          %v1967 = vunpack.c.l.b16 %v1328
          %v1968 = vunpack.c.l.b16 %v1330
          %v1969 = vpack.c.b16 %v1966, %v1965
          %v1970 = vpack.c.b16 %v1968, %v1967
          %v1973 = vunpack.c.h.b16 %v1324
          %v1974 = vunpack.c.h.b16 %v1326
          %v1975 = vunpack.c.h.b16 %v1328
          %v1976 = vunpack.c.h.b16 %v1330
          %v1977 = vpack.c.b16 %v1974, %v1973
          %v1978 = vpack.c.b16 %v1976, %v1975
          %v1985 = vunpack.c.l.b16 %v1325
          %v1986 = vunpack.c.l.b16 %v1327
          %v1987 = vunpack.c.l.b16 %v1329
          %v1988 = vunpack.c.l.b16 %v1331
          %v1989 = vpack.c.b16 %v1986, %v1985
          %v1990 = vpack.c.b16 %v1988, %v1987
          %s1993 = scalar_lea.vmem %s375, 96 [#allocation2]
          %v1994 = vld [vmem:[%s1993] sm:$0xf]
          %v1995 = vld [vmem:[%s1993 + $0x4] sm:$0xf]
          %v1996 = vld [vmem:[%s1993 + $0x8] sm:$0xf]
          %v1997 = vld [vmem:[%s1993 + $0xc] sm:$0xf]
          %v2002 = vunpack.c.l.b16 %v1994
          %v2003 = vunpack.c.l.b16 %v1995
          %v2004 = vunpack.c.l.b16 %v1996
          %v2005 = vunpack.c.l.b16 %v1997
          %v2006 = vpack.c.b16 %v2003, %v2002
          %v2007 = vpack.c.b16 %v2005, %v2004
          %v2009 = vsel %vm1575, %v2006, 0
          %v2012 = vsel %vm1575, %v2007, 0
          %2014 = vmatpush.bf16.msra.mxu0 0
          %2015 = vmatpush.bf16.msra.mxu0 0
          %2016 = vmatpush.bf16.msra.mxu0 %v1990
          %2017 = vmatpush.bf16.msra.mxu0 %v1989
          %2018 = vmatpush.bf16.msra.mxu0 %v1978
          %2019 = vmatpush.bf16.msra.mxu0 %v1977
          %2020 = vmatpush.bf16.msra.mxu0 %v1970
          %2021 = vmatpush.bf16.msra.mxu0 %v1969
          %2022 = vmatmul.bf16.gmra.mxu0 %v2009
          %v2023 = vpop.f32.mrf.mxu0
          %v2024 = vadd.f32 0.0, %v2023
          %v2025 = vpop.f32.mrf.mxu0
          %v2026 = vadd.f32 0.0, %v2025
          %2027 = vmatmul.bf16.gmra.mxu0 %v2012
          %v2028 = vpop.f32.mrf.mxu0
          %v2029 = vadd.f32 0.0, %v2028
          %v2030 = vpop.f32.mrf.mxu0
          %v2031 = vadd.f32 0.0, %v2030
          %2032 = vdwg.mxu0
          %v2037 = vunpack.c.l.b16 %v1332
          %v2038 = vunpack.c.l.b16 %v1334
          %v2039 = vunpack.c.l.b16 %v1336
          %v2040 = vunpack.c.l.b16 %v1338
          %v2041 = vpack.c.b16 %v2038, %v2037
          %v2042 = vpack.c.b16 %v2040, %v2039
          %v2045 = vunpack.c.h.b16 %v1332
          %v2046 = vunpack.c.h.b16 %v1334
          %v2047 = vunpack.c.h.b16 %v1336
          %v2048 = vunpack.c.h.b16 %v1338
          %v2049 = vpack.c.b16 %v2046, %v2045
          %v2050 = vpack.c.b16 %v2048, %v2047
          %v2057 = vunpack.c.l.b16 %v1333
          %v2058 = vunpack.c.l.b16 %v1335
          %v2059 = vunpack.c.l.b16 %v1337
          %v2060 = vunpack.c.l.b16 %v1339
          %v2061 = vpack.c.b16 %v2058, %v2057
          %v2062 = vpack.c.b16 %v2060, %v2059
          %s2065 = scalar_lea.vmem %s375, 112 [#allocation2]
          %v2066 = vld [vmem:[%s2065] sm:$0xf]
          %v2067 = vld [vmem:[%s2065 + $0x4] sm:$0xf]
          %v2068 = vld [vmem:[%s2065 + $0x8] sm:$0xf]
          %v2069 = vld [vmem:[%s2065 + $0xc] sm:$0xf]
          %v2074 = vunpack.c.l.b16 %v2066
          %v2075 = vunpack.c.l.b16 %v2067
          %v2076 = vunpack.c.l.b16 %v2068
          %v2077 = vunpack.c.l.b16 %v2069
          %v2078 = vpack.c.b16 %v2075, %v2074
          %v2079 = vpack.c.b16 %v2077, %v2076
          %v2081 = vsel %vm1575, %v2078, 0
          %v2084 = vsel %vm1575, %v2079, 0
          %2086 = vmatpush.bf16.msra.mxu0 0
          %2087 = vmatpush.bf16.msra.mxu0 0
          %2088 = vmatpush.bf16.msra.mxu0 %v2062
          %2089 = vmatpush.bf16.msra.mxu0 %v2061
          %2090 = vmatpush.bf16.msra.mxu0 %v2050
          %2091 = vmatpush.bf16.msra.mxu0 %v2049
          %2092 = vmatpush.bf16.msra.mxu0 %v2042
          %2093 = vmatpush.bf16.msra.mxu0 %v2041
          %2094 = vmatmul.bf16.gmra.mxu0 %v2081
          %v2095 = vpop.f32.mrf.mxu0
          %v2096 = vadd.f32 0.0, %v2095
          %v2097 = vpop.f32.mrf.mxu0
          %v2098 = vadd.f32 0.0, %v2097
          %2099 = vmatmul.bf16.gmra.mxu0 %v2084
          %v2100 = vpop.f32.mrf.mxu0
          %v2101 = vadd.f32 0.0, %v2100
          %v2102 = vpop.f32.mrf.mxu0
          %v2103 = vadd.f32 0.0, %v2102
          %2104 = vdwg.mxu0
          %v2105 = vadd.f32 %v1592, %v1497
          %v2106 = vadd.f32 %v1594, %v1498
          %v2107 = vadd.f32 %v1597, %v1499
          %v2108 = vadd.f32 %v1599, %v1500
          %v2109 = vadd.f32 %v1664, %v1501
          %v2110 = vadd.f32 %v1666, %v1502
          %v2111 = vadd.f32 %v1669, %v1503
          %v2112 = vadd.f32 %v1671, %v1504
          %v2113 = vadd.f32 %v1736, %v1505
          %v2114 = vadd.f32 %v1738, %v1506
          %v2115 = vadd.f32 %v1741, %v1507
          %v2116 = vadd.f32 %v1743, %v1508
          %v2117 = vadd.f32 %v1808, %v1509
          %v2118 = vadd.f32 %v1810, %v1510
          %v2119 = vadd.f32 %v1813, %v1511
          %v2120 = vadd.f32 %v1815, %v1512
          %v2121 = vadd.f32 %v1880, %v1513
          %v2122 = vadd.f32 %v1882, %v1514
          %v2123 = vadd.f32 %v1885, %v1515
          %v2124 = vadd.f32 %v1887, %v1516
          %v2125 = vadd.f32 %v1952, %v1517
          %v2126 = vadd.f32 %v1954, %v1518
          %v2127 = vadd.f32 %v1957, %v1519
          %v2128 = vadd.f32 %v1959, %v1520
          %v2129 = vadd.f32 %v2024, %v1521
          %v2130 = vadd.f32 %v2026, %v1522
          %v2131 = vadd.f32 %v2029, %v1523
          %v2132 = vadd.f32 %v2031, %v1524
          %v2133 = vadd.f32 %v2096, %v1525
          %v2134 = vadd.f32 %v2098, %v1526
          %v2135 = vadd.f32 %v2101, %v1527
          %v2136 = vadd.f32 %v2103, %v1528
          %v2137 = vpack.c.bf16 %v2105, %v2105
          %v2138 = vpack.c.bf16 %v2106, %v2106
          %v2139 = vpack.c.bf16 %v2107, %v2107
          %v2140 = vpack.c.bf16 %v2108, %v2108
          %v2141 = vpack.c.bf16 %v2109, %v2109
          %v2142 = vpack.c.bf16 %v2110, %v2110
          %v2143 = vpack.c.bf16 %v2111, %v2111
          %v2144 = vpack.c.bf16 %v2112, %v2112
          %v2145 = vpack.c.bf16 %v2113, %v2113
          %v2146 = vpack.c.bf16 %v2114, %v2114
          %v2147 = vpack.c.bf16 %v2115, %v2115
          %v2148 = vpack.c.bf16 %v2116, %v2116
          %v2149 = vpack.c.bf16 %v2117, %v2117
          %v2150 = vpack.c.bf16 %v2118, %v2118
          %v2151 = vpack.c.bf16 %v2119, %v2119
          %v2152 = vpack.c.bf16 %v2120, %v2120
          %v2153 = vpack.c.bf16 %v2121, %v2121
          %v2154 = vpack.c.bf16 %v2122, %v2122
          %v2155 = vpack.c.bf16 %v2123, %v2123
          %v2156 = vpack.c.bf16 %v2124, %v2124
          %v2157 = vpack.c.bf16 %v2125, %v2125
          %v2158 = vpack.c.bf16 %v2126, %v2126
          %v2159 = vpack.c.bf16 %v2127, %v2127
          %v2160 = vpack.c.bf16 %v2128, %v2128
          %v2161 = vpack.c.bf16 %v2129, %v2129
          %v2162 = vpack.c.bf16 %v2130, %v2130
          %v2163 = vpack.c.bf16 %v2131, %v2131
          %v2164 = vpack.c.bf16 %v2132, %v2132
          %v2165 = vpack.c.bf16 %v2133, %v2133
          %v2166 = vpack.c.bf16 %v2134, %v2134
          %v2167 = vpack.c.bf16 %v2135, %v2135
          %v2168 = vpack.c.bf16 %v2136, %v2136
          %v2201 = vunpack.c.l.b16 %v2137
          %v2202 = vunpack.c.l.b16 %v2138
          %v2203 = vunpack.c.l.b16 %v2139
          %v2204 = vunpack.c.l.b16 %v2140
          %v2205 = vunpack.c.l.b16 %v2141
          %v2206 = vunpack.c.l.b16 %v2142
          %v2207 = vunpack.c.l.b16 %v2143
          %v2208 = vunpack.c.l.b16 %v2144
          %v2209 = vunpack.c.l.b16 %v2145
          %v2210 = vunpack.c.l.b16 %v2146
          %v2211 = vunpack.c.l.b16 %v2147
          %v2212 = vunpack.c.l.b16 %v2148
          %v2213 = vunpack.c.l.b16 %v2149
          %v2214 = vunpack.c.l.b16 %v2150
          %v2215 = vunpack.c.l.b16 %v2151
          %v2216 = vunpack.c.l.b16 %v2152
          %v2217 = vunpack.c.l.b16 %v2153
          %v2218 = vunpack.c.l.b16 %v2154
          %v2219 = vunpack.c.l.b16 %v2155
          %v2220 = vunpack.c.l.b16 %v2156
          %v2221 = vunpack.c.l.b16 %v2157
          %v2222 = vunpack.c.l.b16 %v2158
          %v2223 = vunpack.c.l.b16 %v2159
          %v2224 = vunpack.c.l.b16 %v2160
          %v2225 = vunpack.c.l.b16 %v2161
          %v2226 = vunpack.c.l.b16 %v2162
          %v2227 = vunpack.c.l.b16 %v2163
          %v2228 = vunpack.c.l.b16 %v2164
          %v2229 = vunpack.c.l.b16 %v2165
          %v2230 = vunpack.c.l.b16 %v2166
          %v2231 = vunpack.c.l.b16 %v2167
          %v2232 = vunpack.c.l.b16 %v2168
          %v2233 = vpack.c.b16 %v2202, %v2201
          %v2234 = vpack.c.b16 %v2204, %v2203
          %v2235 = vpack.c.b16 %v2206, %v2205
          %v2236 = vpack.c.b16 %v2208, %v2207
          %v2237 = vpack.c.b16 %v2210, %v2209
          %v2238 = vpack.c.b16 %v2212, %v2211
          %v2239 = vpack.c.b16 %v2214, %v2213
          %v2240 = vpack.c.b16 %v2216, %v2215
          %v2241 = vpack.c.b16 %v2218, %v2217
          %v2242 = vpack.c.b16 %v2220, %v2219
          %v2243 = vpack.c.b16 %v2222, %v2221
          %v2244 = vpack.c.b16 %v2224, %v2223
          %v2245 = vpack.c.b16 %v2226, %v2225
          %v2246 = vpack.c.b16 %v2228, %v2227
          %v2247 = vpack.c.b16 %v2230, %v2229
          %v2248 = vpack.c.b16 %v2232, %v2231
          %v2265 = vld [vmem:[#allocation8] sm:$0xf]
          %v2266 = vld [vmem:[#allocation8 + $0x4] sm:$0xf]
          %v2267 = vld [vmem:[#allocation8 + $0x8] sm:$0xf]
          %v2268 = vld [vmem:[#allocation8 + $0xc] sm:$0xf]
          %v2269 = vld [vmem:[#allocation8 + $0x10] sm:$0xf]
          %v2270 = vld [vmem:[#allocation8 + $0x14] sm:$0xf]
          %v2271 = vld [vmem:[#allocation8 + $0x18] sm:$0xf]
          %v2272 = vld [vmem:[#allocation8 + $0x1c] sm:$0xf]
          %v2273 = vld [vmem:[#allocation8 + $0x20] sm:$0xf]
          %v2274 = vld [vmem:[#allocation8 + $0x24] sm:$0xf]
          %v2275 = vld [vmem:[#allocation8 + $0x28] sm:$0xf]
          %v2276 = vld [vmem:[#allocation8 + $0x2c] sm:$0xf]
          %v2277 = vld [vmem:[#allocation8 + $0x30] sm:$0xf]
          %v2278 = vld [vmem:[#allocation8 + $0x34] sm:$0xf]
          %v2279 = vld [vmem:[#allocation8 + $0x38] sm:$0xf]
          %v2280 = vld [vmem:[#allocation8 + $0x3c] sm:$0xf]
          %v2281 = vld [vmem:[#allocation8 + $0x40] sm:$0xf]
          %v2282 = vld [vmem:[#allocation8 + $0x44] sm:$0xf]
          %v2283 = vld [vmem:[#allocation8 + $0x48] sm:$0xf]
          %v2284 = vld [vmem:[#allocation8 + $0x4c] sm:$0xf]
          %v2285 = vld [vmem:[#allocation8 + $0x50] sm:$0xf]
          %v2286 = vld [vmem:[#allocation8 + $0x54] sm:$0xf]
          %v2287 = vld [vmem:[#allocation8 + $0x58] sm:$0xf]
          %v2288 = vld [vmem:[#allocation8 + $0x5c] sm:$0xf]
          %v2289 = vld [vmem:[#allocation8 + $0x60] sm:$0xf]
          %v2290 = vld [vmem:[#allocation8 + $0x64] sm:$0xf]
          %v2291 = vld [vmem:[#allocation8 + $0x68] sm:$0xf]
          %v2292 = vld [vmem:[#allocation8 + $0x6c] sm:$0xf]
          %v2293 = vld [vmem:[#allocation8 + $0x70] sm:$0xf]
          %v2294 = vld [vmem:[#allocation8 + $0x74] sm:$0xf]
          %v2295 = vld [vmem:[#allocation8 + $0x78] sm:$0xf]
          %v2296 = vld [vmem:[#allocation8 + $0x7c] sm:$0xf]
          %v2297 = vld [vmem:[%s8] sm:$0x1]
          %v2299 = vperm.slane %v2297, 0
          %v2333 = vunpack.c.l.b16 %v2265
          %v2334 = vunpack.c.l.b16 %v2266
          %v2335 = vunpack.c.l.b16 %v2267
          %v2336 = vunpack.c.l.b16 %v2268
          %v2337 = vunpack.c.l.b16 %v2269
          %v2338 = vunpack.c.l.b16 %v2270
          %v2339 = vunpack.c.l.b16 %v2271
          %v2340 = vunpack.c.l.b16 %v2272
          %v2341 = vunpack.c.l.b16 %v2273
          %v2342 = vunpack.c.l.b16 %v2274
          %v2343 = vunpack.c.l.b16 %v2275
          %v2344 = vunpack.c.l.b16 %v2276
          %v2345 = vunpack.c.l.b16 %v2277
          %v2346 = vunpack.c.l.b16 %v2278
          %v2347 = vunpack.c.l.b16 %v2279
          %v2348 = vunpack.c.l.b16 %v2280
          %v2349 = vunpack.c.l.b16 %v2281
          %v2350 = vunpack.c.l.b16 %v2282
          %v2351 = vunpack.c.l.b16 %v2283
          %v2352 = vunpack.c.l.b16 %v2284
          %v2353 = vunpack.c.l.b16 %v2285
          %v2354 = vunpack.c.l.b16 %v2286
          %v2355 = vunpack.c.l.b16 %v2287
          %v2356 = vunpack.c.l.b16 %v2288
          %v2357 = vunpack.c.l.b16 %v2289
          %v2358 = vunpack.c.l.b16 %v2290
          %v2359 = vunpack.c.l.b16 %v2291
          %v2360 = vunpack.c.l.b16 %v2292
          %v2361 = vunpack.c.l.b16 %v2293
          %v2362 = vunpack.c.l.b16 %v2294
          %v2363 = vunpack.c.l.b16 %v2295
          %v2364 = vunpack.c.l.b16 %v2296
          %v2365 = vpack.c.b16 %v2334, %v2333
          %v2366 = vpack.c.b16 %v2336, %v2335
          %v2367 = vpack.c.b16 %v2338, %v2337
          %v2368 = vpack.c.b16 %v2340, %v2339
          %v2369 = vpack.c.b16 %v2342, %v2341
          %v2370 = vpack.c.b16 %v2344, %v2343
          %v2371 = vpack.c.b16 %v2346, %v2345
          %v2372 = vpack.c.b16 %v2348, %v2347
          %v2373 = vpack.c.b16 %v2350, %v2349
          %v2374 = vpack.c.b16 %v2352, %v2351
          %v2375 = vpack.c.b16 %v2354, %v2353
          %v2376 = vpack.c.b16 %v2356, %v2355
          %v2377 = vpack.c.b16 %v2358, %v2357
          %v2378 = vpack.c.b16 %v2360, %v2359
          %v2379 = vpack.c.b16 %v2362, %v2361
          %v2380 = vpack.c.b16 %v2364, %v2363
          %2397 = vmatpush.bf16.msra.mxu0 %v2372
          %2398 = vmatpush.bf16.msra.mxu0 %v2371
          %2399 = vmatpush.bf16.msra.mxu0 %v2370
          %2400 = vmatpush.bf16.msra.mxu0 %v2369
          %2401 = vmatpush.bf16.msra.mxu0 %v2368
          %2402 = vmatpush.bf16.msra.mxu0 %v2367
          %2403 = vmatpush.bf16.msra.mxu0 %v2366
          %2404 = vmatpush.bf16.msra.mxu0 %v2365
          %2405 = vmatmul.bf16.gmra.mxu0 %v2233
          %v2406 = vpop.f32.mrf.mxu0
          %v2407 = vadd.f32 %v2299, %v2406
          %v2408 = vpop.f32.mrf.mxu0
          %v2409 = vadd.f32 %v2299, %v2408
          %2410 = vmatmul.bf16.gmra.mxu0 %v2234
          %v2411 = vpop.f32.mrf.mxu0
          %v2412 = vadd.f32 %v2299, %v2411
          %v2413 = vpop.f32.mrf.mxu0
          %v2414 = vadd.f32 %v2299, %v2413
          %2415 = vmatmul.bf16.gmra.mxu0 %v2235
          %v2416 = vpop.f32.mrf.mxu0
          %v2417 = vadd.f32 %v2299, %v2416
          %v2418 = vpop.f32.mrf.mxu0
          %v2419 = vadd.f32 %v2299, %v2418
          %2420 = vmatmul.bf16.gmra.mxu0 %v2236
          %v2421 = vpop.f32.mrf.mxu0
          %v2422 = vadd.f32 %v2299, %v2421
          %v2423 = vpop.f32.mrf.mxu0
          %v2424 = vadd.f32 %v2299, %v2423
          %2425 = vmatmul.bf16.gmra.mxu0 %v2237
          %v2426 = vpop.f32.mrf.mxu0
          %v2427 = vadd.f32 %v2299, %v2426
          %v2428 = vpop.f32.mrf.mxu0
          %v2429 = vadd.f32 %v2299, %v2428
          %2430 = vmatmul.bf16.gmra.mxu0 %v2238
          %v2431 = vpop.f32.mrf.mxu0
          %v2432 = vadd.f32 %v2299, %v2431
          %v2433 = vpop.f32.mrf.mxu0
          %v2434 = vadd.f32 %v2299, %v2433
          %2435 = vmatmul.bf16.gmra.mxu0 %v2239
          %v2436 = vpop.f32.mrf.mxu0
          %v2437 = vadd.f32 %v2299, %v2436
          %v2438 = vpop.f32.mrf.mxu0
          %v2439 = vadd.f32 %v2299, %v2438
          %2440 = vmatmul.bf16.gmra.mxu0 %v2240
          %v2441 = vpop.f32.mrf.mxu0
          %v2442 = vadd.f32 %v2299, %v2441
          %v2443 = vpop.f32.mrf.mxu0
          %v2444 = vadd.f32 %v2299, %v2443
          %2445 = vmatmul.bf16.gmra.mxu0 %v2241
          %v2446 = vpop.f32.mrf.mxu0
          %v2447 = vadd.f32 %v2299, %v2446
          %v2448 = vpop.f32.mrf.mxu0
          %v2449 = vadd.f32 %v2299, %v2448
          %2450 = vmatmul.bf16.gmra.mxu0 %v2242
          %v2451 = vpop.f32.mrf.mxu0
          %v2452 = vadd.f32 %v2299, %v2451
          %v2453 = vpop.f32.mrf.mxu0
          %v2454 = vadd.f32 %v2299, %v2453
          %2455 = vmatmul.bf16.gmra.mxu0 %v2243
          %v2456 = vpop.f32.mrf.mxu0
          %v2457 = vadd.f32 %v2299, %v2456
          %v2458 = vpop.f32.mrf.mxu0
          %v2459 = vadd.f32 %v2299, %v2458
          %2460 = vmatmul.bf16.gmra.mxu0 %v2244
          %v2461 = vpop.f32.mrf.mxu0
          %v2462 = vadd.f32 %v2299, %v2461
          %v2463 = vpop.f32.mrf.mxu0
          %v2464 = vadd.f32 %v2299, %v2463
          %2465 = vmatmul.bf16.gmra.mxu0 %v2245
          %v2466 = vpop.f32.mrf.mxu0
          %v2467 = vadd.f32 %v2299, %v2466
          %v2468 = vpop.f32.mrf.mxu0
          %v2469 = vadd.f32 %v2299, %v2468
          %2470 = vmatmul.bf16.gmra.mxu0 %v2246
          %v2471 = vpop.f32.mrf.mxu0
          %v2472 = vadd.f32 %v2299, %v2471
          %v2473 = vpop.f32.mrf.mxu0
          %v2474 = vadd.f32 %v2299, %v2473
          %2475 = vmatmul.bf16.gmra.mxu0 %v2247
          %v2476 = vpop.f32.mrf.mxu0
          %v2477 = vadd.f32 %v2299, %v2476
          %v2478 = vpop.f32.mrf.mxu0
          %v2479 = vadd.f32 %v2299, %v2478
          %2480 = vmatmul.bf16.gmra.mxu0 %v2248
          %v2481 = vpop.f32.mrf.mxu0
          %v2482 = vadd.f32 %v2299, %v2481
          %v2483 = vpop.f32.mrf.mxu0
          %v2484 = vadd.f32 %v2299, %v2483
          %2485 = vdwg.mxu0
          %2486 = vmatpush.bf16.msra.mxu0 %v2380
          %2487 = vmatpush.bf16.msra.mxu0 %v2379
          %2488 = vmatpush.bf16.msra.mxu0 %v2378
          %2489 = vmatpush.bf16.msra.mxu0 %v2377
          %2490 = vmatpush.bf16.msra.mxu0 %v2376
          %2491 = vmatpush.bf16.msra.mxu0 %v2375
          %2492 = vmatpush.bf16.msra.mxu0 %v2374
          %2493 = vmatpush.bf16.msra.mxu0 %v2373
          %2494 = vmatmul.bf16.gmra.mxu0 %v849
          %v2495 = vpop.f32.mrf.mxu0
          %v2496 = vadd.f32 %v2407, %v2495
          %v2497 = vpop.f32.mrf.mxu0
          %v2498 = vadd.f32 %v2409, %v2497
          %2499 = vmatmul.bf16.gmra.mxu0 %v850
          %v2500 = vpop.f32.mrf.mxu0
          %v2501 = vadd.f32 %v2412, %v2500
          %v2502 = vpop.f32.mrf.mxu0
          %v2503 = vadd.f32 %v2414, %v2502
          %2504 = vmatmul.bf16.gmra.mxu0 %v851
          %v2505 = vpop.f32.mrf.mxu0
          %v2506 = vadd.f32 %v2417, %v2505
          %v2507 = vpop.f32.mrf.mxu0
          %v2508 = vadd.f32 %v2419, %v2507
          %2509 = vmatmul.bf16.gmra.mxu0 %v852
          %v2510 = vpop.f32.mrf.mxu0
          %v2511 = vadd.f32 %v2422, %v2510
          %v2512 = vpop.f32.mrf.mxu0
          %v2513 = vadd.f32 %v2424, %v2512
          %2514 = vmatmul.bf16.gmra.mxu0 %v853
          %v2515 = vpop.f32.mrf.mxu0
          %v2516 = vadd.f32 %v2427, %v2515
          %v2517 = vpop.f32.mrf.mxu0
          %v2518 = vadd.f32 %v2429, %v2517
          %2519 = vmatmul.bf16.gmra.mxu0 %v854
          %v2520 = vpop.f32.mrf.mxu0
          %v2521 = vadd.f32 %v2432, %v2520
          %v2522 = vpop.f32.mrf.mxu0
          %v2523 = vadd.f32 %v2434, %v2522
          %2524 = vmatmul.bf16.gmra.mxu0 %v855
          %v2525 = vpop.f32.mrf.mxu0
          %v2526 = vadd.f32 %v2437, %v2525
          %v2527 = vpop.f32.mrf.mxu0
          %v2528 = vadd.f32 %v2439, %v2527
          %2529 = vmatmul.bf16.gmra.mxu0 %v856
          %v2530 = vpop.f32.mrf.mxu0
          %v2531 = vadd.f32 %v2442, %v2530
          %v2532 = vpop.f32.mrf.mxu0
          %v2533 = vadd.f32 %v2444, %v2532
          %2534 = vmatmul.bf16.gmra.mxu0 %v857
          %v2535 = vpop.f32.mrf.mxu0
          %v2536 = vadd.f32 %v2447, %v2535
          %v2537 = vpop.f32.mrf.mxu0
          %v2538 = vadd.f32 %v2449, %v2537
          %2539 = vmatmul.bf16.gmra.mxu0 %v858
          %v2540 = vpop.f32.mrf.mxu0
          %v2541 = vadd.f32 %v2452, %v2540
          %v2542 = vpop.f32.mrf.mxu0
          %v2543 = vadd.f32 %v2454, %v2542
          %2544 = vmatmul.bf16.gmra.mxu0 %v859
          %v2545 = vpop.f32.mrf.mxu0
          %v2546 = vadd.f32 %v2457, %v2545
          %v2547 = vpop.f32.mrf.mxu0
          %v2548 = vadd.f32 %v2459, %v2547
          %2549 = vmatmul.bf16.gmra.mxu0 %v860
          %v2550 = vpop.f32.mrf.mxu0
          %v2551 = vadd.f32 %v2462, %v2550
          %v2552 = vpop.f32.mrf.mxu0
          %v2553 = vadd.f32 %v2464, %v2552
          %2554 = vmatmul.bf16.gmra.mxu0 %v861
          %v2555 = vpop.f32.mrf.mxu0
          %v2556 = vadd.f32 %v2467, %v2555
          %v2557 = vpop.f32.mrf.mxu0
          %v2558 = vadd.f32 %v2469, %v2557
          %2559 = vmatmul.bf16.gmra.mxu0 %v862
          %v2560 = vpop.f32.mrf.mxu0
          %v2561 = vadd.f32 %v2472, %v2560
          %v2562 = vpop.f32.mrf.mxu0
          %v2563 = vadd.f32 %v2474, %v2562
          %2564 = vmatmul.bf16.gmra.mxu0 %v863
          %v2565 = vpop.f32.mrf.mxu0
          %v2566 = vadd.f32 %v2477, %v2565
          %v2567 = vpop.f32.mrf.mxu0
          %v2568 = vadd.f32 %v2479, %v2567
          %2569 = vmatmul.bf16.gmra.mxu0 %v864
          %v2570 = vpop.f32.mrf.mxu0
          %v2571 = vadd.f32 %v2482, %v2570
          %v2572 = vpop.f32.mrf.mxu0
          %v2573 = vadd.f32 %v2484, %v2572
          %2574 = vdwg.mxu0
          %v2575 = vxor.u32 %v2496, 2147483648
          %v2576 = vxor.u32 %v2498, 2147483648
          %v2577 = vxor.u32 %v2501, 2147483648
          %v2578 = vxor.u32 %v2503, 2147483648
          %v2579 = vxor.u32 %v2506, 2147483648
          %v2580 = vxor.u32 %v2508, 2147483648
          %v2581 = vxor.u32 %v2511, 2147483648
          %v2582 = vxor.u32 %v2513, 2147483648
          %v2583 = vxor.u32 %v2516, 2147483648
          %v2584 = vxor.u32 %v2518, 2147483648
          %v2585 = vxor.u32 %v2521, 2147483648
          %v2586 = vxor.u32 %v2523, 2147483648
          %v2587 = vxor.u32 %v2526, 2147483648
          %v2588 = vxor.u32 %v2528, 2147483648
          %v2589 = vxor.u32 %v2531, 2147483648
          %v2590 = vxor.u32 %v2533, 2147483648
          %v2591 = vxor.u32 %v2536, 2147483648
          %v2592 = vxor.u32 %v2538, 2147483648
          %v2593 = vxor.u32 %v2541, 2147483648
          %v2594 = vxor.u32 %v2543, 2147483648
          %v2595 = vxor.u32 %v2546, 2147483648
          %v2596 = vxor.u32 %v2548, 2147483648
          %v2597 = vxor.u32 %v2551, 2147483648
          %v2598 = vxor.u32 %v2553, 2147483648
          %v2599 = vxor.u32 %v2556, 2147483648
          %v2600 = vxor.u32 %v2558, 2147483648
          %v2601 = vxor.u32 %v2561, 2147483648
          %v2602 = vxor.u32 %v2563, 2147483648
          %v2603 = vxor.u32 %v2566, 2147483648
          %v2604 = vxor.u32 %v2568, 2147483648
          %v2605 = vxor.u32 %v2571, 2147483648
          %v2606 = vxor.u32 %v2573, 2147483648
          %v2607 = vmul.f32 %v2575, 1.442695
          %v2608 = vpow.pop %v2607
          %v2609 = vmul.f32 %v2576, 1.442695
          %v2610 = vpow.pop %v2609
          %v2611 = vmul.f32 %v2577, 1.442695
          %v2612 = vpow.pop %v2611
          %v2613 = vmul.f32 %v2578, 1.442695
          %v2614 = vpow.pop %v2613
          %v2615 = vmul.f32 %v2579, 1.442695
          %v2616 = vpow.pop %v2615
          %v2617 = vmul.f32 %v2580, 1.442695
          %v2618 = vpow.pop %v2617
          %v2619 = vmul.f32 %v2581, 1.442695
          %v2620 = vpow.pop %v2619
          %v2621 = vmul.f32 %v2582, 1.442695
          %v2622 = vpow.pop %v2621
          %v2623 = vmul.f32 %v2583, 1.442695
          %v2624 = vpow.pop %v2623
          %v2625 = vmul.f32 %v2584, 1.442695
          %v2626 = vpow.pop %v2625
          %v2627 = vmul.f32 %v2585, 1.442695
          %v2628 = vpow.pop %v2627
          %v2629 = vmul.f32 %v2586, 1.442695
          %v2630 = vpow.pop %v2629
          %v2631 = vmul.f32 %v2587, 1.442695
          %v2632 = vpow.pop %v2631
          %v2633 = vmul.f32 %v2588, 1.442695
          %v2634 = vpow.pop %v2633
          %v2635 = vmul.f32 %v2589, 1.442695
          %v2636 = vpow.pop %v2635
          %v2637 = vmul.f32 %v2590, 1.442695
          %v2638 = vpow.pop %v2637
          %v2639 = vmul.f32 %v2591, 1.442695
          %v2640 = vpow.pop %v2639
          %v2641 = vmul.f32 %v2592, 1.442695
          %v2642 = vpow.pop %v2641
          %v2643 = vmul.f32 %v2593, 1.442695
          %v2644 = vpow.pop %v2643
          %v2645 = vmul.f32 %v2594, 1.442695
          %v2646 = vpow.pop %v2645
          %v2647 = vmul.f32 %v2595, 1.442695
          %v2648 = vpow.pop %v2647
          %v2649 = vmul.f32 %v2596, 1.442695
          %v2650 = vpow.pop %v2649
          %v2651 = vmul.f32 %v2597, 1.442695
          %v2652 = vpow.pop %v2651
          %v2653 = vmul.f32 %v2598, 1.442695
          %v2654 = vpow.pop %v2653
          %v2655 = vmul.f32 %v2599, 1.442695
          %v2656 = vpow.pop %v2655
          %v2657 = vmul.f32 %v2600, 1.442695
          %v2658 = vpow.pop %v2657
          %v2659 = vmul.f32 %v2601, 1.442695
          %v2660 = vpow.pop %v2659
          %v2661 = vmul.f32 %v2602, 1.442695
          %v2662 = vpow.pop %v2661
          %v2663 = vmul.f32 %v2603, 1.442695
          %v2664 = vpow.pop %v2663
          %v2665 = vmul.f32 %v2604, 1.442695
          %v2666 = vpow.pop %v2665
          %v2667 = vmul.f32 %v2605, 1.442695
          %v2668 = vpow.pop %v2667
          %v2669 = vmul.f32 %v2606, 1.442695
          %v2670 = vpow.pop %v2669
          %v2671 = vadd.f32 %v2608, 1.0
          %v2672 = vadd.f32 %v2610, 1.0
          %v2673 = vadd.f32 %v2612, 1.0
          %v2674 = vadd.f32 %v2614, 1.0
          %v2675 = vadd.f32 %v2616, 1.0
          %v2676 = vadd.f32 %v2618, 1.0
          %v2677 = vadd.f32 %v2620, 1.0
          %v2678 = vadd.f32 %v2622, 1.0
          %v2679 = vadd.f32 %v2624, 1.0
          %v2680 = vadd.f32 %v2626, 1.0
          %v2681 = vadd.f32 %v2628, 1.0
          %v2682 = vadd.f32 %v2630, 1.0
          %v2683 = vadd.f32 %v2632, 1.0
          %v2684 = vadd.f32 %v2634, 1.0
          %v2685 = vadd.f32 %v2636, 1.0
          %v2686 = vadd.f32 %v2638, 1.0
          %v2687 = vadd.f32 %v2640, 1.0
          %v2688 = vadd.f32 %v2642, 1.0
          %v2689 = vadd.f32 %v2644, 1.0
          %v2690 = vadd.f32 %v2646, 1.0
          %v2691 = vadd.f32 %v2648, 1.0
          %v2692 = vadd.f32 %v2650, 1.0
          %v2693 = vadd.f32 %v2652, 1.0
          %v2694 = vadd.f32 %v2654, 1.0
          %v2695 = vadd.f32 %v2656, 1.0
          %v2696 = vadd.f32 %v2658, 1.0
          %v2697 = vadd.f32 %v2660, 1.0
          %v2698 = vadd.f32 %v2662, 1.0
          %v2699 = vadd.f32 %v2664, 1.0
          %v2700 = vadd.f32 %v2666, 1.0
          %v2701 = vadd.f32 %v2668, 1.0
          %v2702 = vadd.f32 %v2670, 1.0
          %v2703 = vrcp.pop %v2671
          %v2704 = vmul.f32 %v2671, %v2703
          %v2705 = vsub.f32 1.0, %v2704
          %v2706 = vmul.f32 %v2703, %v2705
          %v2707 = vadd.f32 %v2703, %v2706
          %vm2708 = vweird.f32 %v2671
          %vm2709 = vweird.f32 %v2703
          %vm2710 = vmor %vm2708, %vm2709
          %v2711 = vsel %vm2710, %v2703, %v2707
          %v2712 = vand.u32 2147483647, %v2671
          %vm2713 = vcmp.eq.f32.partialorder %v2712, 8.507059e+37
          %v2714 = vand.u32 %v2671, 2147483648
          %v2715 = vor.u32 1.1754944e-38, %v2714
          %v2716 = vsel %vm2713, %v2715, %v2711
          %v2717 = vmul.f32 1.0, %v2716
          %v2718 = vrcp.pop %v2672
          %v2719 = vmul.f32 %v2672, %v2718
          %v2720 = vsub.f32 1.0, %v2719
          %v2721 = vmul.f32 %v2718, %v2720
          %v2722 = vadd.f32 %v2718, %v2721
          %vm2723 = vweird.f32 %v2672
          %vm2724 = vweird.f32 %v2718
          %vm2725 = vmor %vm2723, %vm2724
          %v2726 = vsel %vm2725, %v2718, %v2722
          %v2727 = vand.u32 2147483647, %v2672
          %vm2728 = vcmp.eq.f32.partialorder %v2727, 8.507059e+37
          %v2729 = vand.u32 %v2672, 2147483648
          %v2730 = vor.u32 1.1754944e-38, %v2729
          %v2731 = vsel %vm2728, %v2730, %v2726
          %v2732 = vmul.f32 1.0, %v2731
          %v2733 = vrcp.pop %v2673
          %v2734 = vmul.f32 %v2673, %v2733
          %v2735 = vsub.f32 1.0, %v2734
          %v2736 = vmul.f32 %v2733, %v2735
          %v2737 = vadd.f32 %v2733, %v2736
          %vm2738 = vweird.f32 %v2673
          %vm2739 = vweird.f32 %v2733
          %vm2740 = vmor %vm2738, %vm2739
          %v2741 = vsel %vm2740, %v2733, %v2737
          %v2742 = vand.u32 2147483647, %v2673
          %vm2743 = vcmp.eq.f32.partialorder %v2742, 8.507059e+37
          %v2744 = vand.u32 %v2673, 2147483648
          %v2745 = vor.u32 1.1754944e-38, %v2744
          %v2746 = vsel %vm2743, %v2745, %v2741
          %v2747 = vmul.f32 1.0, %v2746
          %v2748 = vrcp.pop %v2674
          %v2749 = vmul.f32 %v2674, %v2748
          %v2750 = vsub.f32 1.0, %v2749
          %v2751 = vmul.f32 %v2748, %v2750
          %v2752 = vadd.f32 %v2748, %v2751
          %vm2753 = vweird.f32 %v2674
          %vm2754 = vweird.f32 %v2748
          %vm2755 = vmor %vm2753, %vm2754
          %v2756 = vsel %vm2755, %v2748, %v2752
          %v2757 = vand.u32 2147483647, %v2674
          %vm2758 = vcmp.eq.f32.partialorder %v2757, 8.507059e+37
          %v2759 = vand.u32 %v2674, 2147483648
          %v2760 = vor.u32 1.1754944e-38, %v2759
          %v2761 = vsel %vm2758, %v2760, %v2756
          %v2762 = vmul.f32 1.0, %v2761
          %v2763 = vrcp.pop %v2675
          %v2764 = vmul.f32 %v2675, %v2763
          %v2765 = vsub.f32 1.0, %v2764
          %v2766 = vmul.f32 %v2763, %v2765
          %v2767 = vadd.f32 %v2763, %v2766
          %vm2768 = vweird.f32 %v2675
          %vm2769 = vweird.f32 %v2763
          %vm2770 = vmor %vm2768, %vm2769
          %v2771 = vsel %vm2770, %v2763, %v2767
          %v2772 = vand.u32 2147483647, %v2675
          %vm2773 = vcmp.eq.f32.partialorder %v2772, 8.507059e+37
          %v2774 = vand.u32 %v2675, 2147483648
          %v2775 = vor.u32 1.1754944e-38, %v2774
          %v2776 = vsel %vm2773, %v2775, %v2771
          %v2777 = vmul.f32 1.0, %v2776
          %v2778 = vrcp.pop %v2676
          %v2779 = vmul.f32 %v2676, %v2778
          %v2780 = vsub.f32 1.0, %v2779
          %v2781 = vmul.f32 %v2778, %v2780
          %v2782 = vadd.f32 %v2778, %v2781
          %vm2783 = vweird.f32 %v2676
          %vm2784 = vweird.f32 %v2778
          %vm2785 = vmor %vm2783, %vm2784
          %v2786 = vsel %vm2785, %v2778, %v2782
          %v2787 = vand.u32 2147483647, %v2676
          %vm2788 = vcmp.eq.f32.partialorder %v2787, 8.507059e+37
          %v2789 = vand.u32 %v2676, 2147483648
          %v2790 = vor.u32 1.1754944e-38, %v2789
          %v2791 = vsel %vm2788, %v2790, %v2786
          %v2792 = vmul.f32 1.0, %v2791
          %v2793 = vrcp.pop %v2677
          %v2794 = vmul.f32 %v2677, %v2793
          %v2795 = vsub.f32 1.0, %v2794
          %v2796 = vmul.f32 %v2793, %v2795
          %v2797 = vadd.f32 %v2793, %v2796
          %vm2798 = vweird.f32 %v2677
          %vm2799 = vweird.f32 %v2793
          %vm2800 = vmor %vm2798, %vm2799
          %v2801 = vsel %vm2800, %v2793, %v2797
          %v2802 = vand.u32 2147483647, %v2677
          %vm2803 = vcmp.eq.f32.partialorder %v2802, 8.507059e+37
          %v2804 = vand.u32 %v2677, 2147483648
          %v2805 = vor.u32 1.1754944e-38, %v2804
          %v2806 = vsel %vm2803, %v2805, %v2801
          %v2807 = vmul.f32 1.0, %v2806
          %v2808 = vrcp.pop %v2678
          %v2809 = vmul.f32 %v2678, %v2808
          %v2810 = vsub.f32 1.0, %v2809
          %v2811 = vmul.f32 %v2808, %v2810
          %v2812 = vadd.f32 %v2808, %v2811
          %vm2813 = vweird.f32 %v2678
          %vm2814 = vweird.f32 %v2808
          %vm2815 = vmor %vm2813, %vm2814
          %v2816 = vsel %vm2815, %v2808, %v2812
          %v2817 = vand.u32 2147483647, %v2678
          %vm2818 = vcmp.eq.f32.partialorder %v2817, 8.507059e+37
          %v2819 = vand.u32 %v2678, 2147483648
          %v2820 = vor.u32 1.1754944e-38, %v2819
          %v2821 = vsel %vm2818, %v2820, %v2816
          %v2822 = vmul.f32 1.0, %v2821
          %v2823 = vrcp.pop %v2679
          %v2824 = vmul.f32 %v2679, %v2823
          %v2825 = vsub.f32 1.0, %v2824
          %v2826 = vmul.f32 %v2823, %v2825
          %v2827 = vadd.f32 %v2823, %v2826
          %vm2828 = vweird.f32 %v2679
          %vm2829 = vweird.f32 %v2823
          %vm2830 = vmor %vm2828, %vm2829
          %v2831 = vsel %vm2830, %v2823, %v2827
          %v2832 = vand.u32 2147483647, %v2679
          %vm2833 = vcmp.eq.f32.partialorder %v2832, 8.507059e+37
          %v2834 = vand.u32 %v2679, 2147483648
          %v2835 = vor.u32 1.1754944e-38, %v2834
          %v2836 = vsel %vm2833, %v2835, %v2831
          %v2837 = vmul.f32 1.0, %v2836
          %v2838 = vrcp.pop %v2680
          %v2839 = vmul.f32 %v2680, %v2838
          %v2840 = vsub.f32 1.0, %v2839
          %v2841 = vmul.f32 %v2838, %v2840
          %v2842 = vadd.f32 %v2838, %v2841
          %vm2843 = vweird.f32 %v2680
          %vm2844 = vweird.f32 %v2838
          %vm2845 = vmor %vm2843, %vm2844
          %v2846 = vsel %vm2845, %v2838, %v2842
          %v2847 = vand.u32 2147483647, %v2680
          %vm2848 = vcmp.eq.f32.partialorder %v2847, 8.507059e+37
          %v2849 = vand.u32 %v2680, 2147483648
          %v2850 = vor.u32 1.1754944e-38, %v2849
          %v2851 = vsel %vm2848, %v2850, %v2846
          %v2852 = vmul.f32 1.0, %v2851
          %v2853 = vrcp.pop %v2681
          %v2854 = vmul.f32 %v2681, %v2853
          %v2855 = vsub.f32 1.0, %v2854
          %v2856 = vmul.f32 %v2853, %v2855
          %v2857 = vadd.f32 %v2853, %v2856
          %vm2858 = vweird.f32 %v2681
          %vm2859 = vweird.f32 %v2853
          %vm2860 = vmor %vm2858, %vm2859
          %v2861 = vsel %vm2860, %v2853, %v2857
          %v2862 = vand.u32 2147483647, %v2681
          %vm2863 = vcmp.eq.f32.partialorder %v2862, 8.507059e+37
          %v2864 = vand.u32 %v2681, 2147483648
          %v2865 = vor.u32 1.1754944e-38, %v2864
          %v2866 = vsel %vm2863, %v2865, %v2861
          %v2867 = vmul.f32 1.0, %v2866
          %v2868 = vrcp.pop %v2682
          %v2869 = vmul.f32 %v2682, %v2868
          %v2870 = vsub.f32 1.0, %v2869
          %v2871 = vmul.f32 %v2868, %v2870
          %v2872 = vadd.f32 %v2868, %v2871
          %vm2873 = vweird.f32 %v2682
          %vm2874 = vweird.f32 %v2868
          %vm2875 = vmor %vm2873, %vm2874
          %v2876 = vsel %vm2875, %v2868, %v2872
          %v2877 = vand.u32 2147483647, %v2682
          %vm2878 = vcmp.eq.f32.partialorder %v2877, 8.507059e+37
          %v2879 = vand.u32 %v2682, 2147483648
          %v2880 = vor.u32 1.1754944e-38, %v2879
          %v2881 = vsel %vm2878, %v2880, %v2876
          %v2882 = vmul.f32 1.0, %v2881
          %v2883 = vrcp.pop %v2683
          %v2884 = vmul.f32 %v2683, %v2883
          %v2885 = vsub.f32 1.0, %v2884
          %v2886 = vmul.f32 %v2883, %v2885
          %v2887 = vadd.f32 %v2883, %v2886
          %vm2888 = vweird.f32 %v2683
          %vm2889 = vweird.f32 %v2883
          %vm2890 = vmor %vm2888, %vm2889
          %v2891 = vsel %vm2890, %v2883, %v2887
          %v2892 = vand.u32 2147483647, %v2683
          %vm2893 = vcmp.eq.f32.partialorder %v2892, 8.507059e+37
          %v2894 = vand.u32 %v2683, 2147483648
          %v2895 = vor.u32 1.1754944e-38, %v2894
          %v2896 = vsel %vm2893, %v2895, %v2891
          %v2897 = vmul.f32 1.0, %v2896
          %v2898 = vrcp.pop %v2684
          %v2899 = vmul.f32 %v2684, %v2898
          %v2900 = vsub.f32 1.0, %v2899
          %v2901 = vmul.f32 %v2898, %v2900
          %v2902 = vadd.f32 %v2898, %v2901
          %vm2903 = vweird.f32 %v2684
          %vm2904 = vweird.f32 %v2898
          %vm2905 = vmor %vm2903, %vm2904
          %v2906 = vsel %vm2905, %v2898, %v2902
          %v2907 = vand.u32 2147483647, %v2684
          %vm2908 = vcmp.eq.f32.partialorder %v2907, 8.507059e+37
          %v2909 = vand.u32 %v2684, 2147483648
          %v2910 = vor.u32 1.1754944e-38, %v2909
          %v2911 = vsel %vm2908, %v2910, %v2906
          %v2912 = vmul.f32 1.0, %v2911
          %v2913 = vrcp.pop %v2685
          %v2914 = vmul.f32 %v2685, %v2913
          %v2915 = vsub.f32 1.0, %v2914
          %v2916 = vmul.f32 %v2913, %v2915
          %v2917 = vadd.f32 %v2913, %v2916
          %vm2918 = vweird.f32 %v2685
          %vm2919 = vweird.f32 %v2913
          %vm2920 = vmor %vm2918, %vm2919
          %v2921 = vsel %vm2920, %v2913, %v2917
          %v2922 = vand.u32 2147483647, %v2685
          %vm2923 = vcmp.eq.f32.partialorder %v2922, 8.507059e+37
          %v2924 = vand.u32 %v2685, 2147483648
          %v2925 = vor.u32 1.1754944e-38, %v2924
          %v2926 = vsel %vm2923, %v2925, %v2921
          %v2927 = vmul.f32 1.0, %v2926
          %v2928 = vrcp.pop %v2686
          %v2929 = vmul.f32 %v2686, %v2928
          %v2930 = vsub.f32 1.0, %v2929
          %v2931 = vmul.f32 %v2928, %v2930
          %v2932 = vadd.f32 %v2928, %v2931
          %vm2933 = vweird.f32 %v2686
          %vm2934 = vweird.f32 %v2928
          %vm2935 = vmor %vm2933, %vm2934
          %v2936 = vsel %vm2935, %v2928, %v2932
          %v2937 = vand.u32 2147483647, %v2686
          %vm2938 = vcmp.eq.f32.partialorder %v2937, 8.507059e+37
          %v2939 = vand.u32 %v2686, 2147483648
          %v2940 = vor.u32 1.1754944e-38, %v2939
          %v2941 = vsel %vm2938, %v2940, %v2936
          %v2942 = vmul.f32 1.0, %v2941
          %v2943 = vrcp.pop %v2687
          %v2944 = vmul.f32 %v2687, %v2943
          %v2945 = vsub.f32 1.0, %v2944
          %v2946 = vmul.f32 %v2943, %v2945
          %v2947 = vadd.f32 %v2943, %v2946
          %vm2948 = vweird.f32 %v2687
          %vm2949 = vweird.f32 %v2943
          %vm2950 = vmor %vm2948, %vm2949
          %v2951 = vsel %vm2950, %v2943, %v2947
          %v2952 = vand.u32 2147483647, %v2687
          %vm2953 = vcmp.eq.f32.partialorder %v2952, 8.507059e+37
          %v2954 = vand.u32 %v2687, 2147483648
          %v2955 = vor.u32 1.1754944e-38, %v2954
          %v2956 = vsel %vm2953, %v2955, %v2951
          %v2957 = vmul.f32 1.0, %v2956
          %v2958 = vrcp.pop %v2688
          %v2959 = vmul.f32 %v2688, %v2958
          %v2960 = vsub.f32 1.0, %v2959
          %v2961 = vmul.f32 %v2958, %v2960
          %v2962 = vadd.f32 %v2958, %v2961
          %vm2963 = vweird.f32 %v2688
          %vm2964 = vweird.f32 %v2958
          %vm2965 = vmor %vm2963, %vm2964
          %v2966 = vsel %vm2965, %v2958, %v2962
          %v2967 = vand.u32 2147483647, %v2688
          %vm2968 = vcmp.eq.f32.partialorder %v2967, 8.507059e+37
          %v2969 = vand.u32 %v2688, 2147483648
          %v2970 = vor.u32 1.1754944e-38, %v2969
          %v2971 = vsel %vm2968, %v2970, %v2966
          %v2972 = vmul.f32 1.0, %v2971
          %v2973 = vrcp.pop %v2689
          %v2974 = vmul.f32 %v2689, %v2973
          %v2975 = vsub.f32 1.0, %v2974
          %v2976 = vmul.f32 %v2973, %v2975
          %v2977 = vadd.f32 %v2973, %v2976
          %vm2978 = vweird.f32 %v2689
          %vm2979 = vweird.f32 %v2973
          %vm2980 = vmor %vm2978, %vm2979
          %v2981 = vsel %vm2980, %v2973, %v2977
          %v2982 = vand.u32 2147483647, %v2689
          %vm2983 = vcmp.eq.f32.partialorder %v2982, 8.507059e+37
          %v2984 = vand.u32 %v2689, 2147483648
          %v2985 = vor.u32 1.1754944e-38, %v2984
          %v2986 = vsel %vm2983, %v2985, %v2981
          %v2987 = vmul.f32 1.0, %v2986
          %v2988 = vrcp.pop %v2690
          %v2989 = vmul.f32 %v2690, %v2988
          %v2990 = vsub.f32 1.0, %v2989
          %v2991 = vmul.f32 %v2988, %v2990
          %v2992 = vadd.f32 %v2988, %v2991
          %vm2993 = vweird.f32 %v2690
          %vm2994 = vweird.f32 %v2988
          %vm2995 = vmor %vm2993, %vm2994
          %v2996 = vsel %vm2995, %v2988, %v2992
          %v2997 = vand.u32 2147483647, %v2690
          %vm2998 = vcmp.eq.f32.partialorder %v2997, 8.507059e+37
          %v2999 = vand.u32 %v2690, 2147483648
          %v3000 = vor.u32 1.1754944e-38, %v2999
          %v3001 = vsel %vm2998, %v3000, %v2996
          %v3002 = vmul.f32 1.0, %v3001
          %v3003 = vrcp.pop %v2691
          %v3004 = vmul.f32 %v2691, %v3003
          %v3005 = vsub.f32 1.0, %v3004
          %v3006 = vmul.f32 %v3003, %v3005
          %v3007 = vadd.f32 %v3003, %v3006
          %vm3008 = vweird.f32 %v2691
          %vm3009 = vweird.f32 %v3003
          %vm3010 = vmor %vm3008, %vm3009
          %v3011 = vsel %vm3010, %v3003, %v3007
          %v3012 = vand.u32 2147483647, %v2691
          %vm3013 = vcmp.eq.f32.partialorder %v3012, 8.507059e+37
          %v3014 = vand.u32 %v2691, 2147483648
          %v3015 = vor.u32 1.1754944e-38, %v3014
          %v3016 = vsel %vm3013, %v3015, %v3011
          %v3017 = vmul.f32 1.0, %v3016
          %v3018 = vrcp.pop %v2692
          %v3019 = vmul.f32 %v2692, %v3018
          %v3020 = vsub.f32 1.0, %v3019
          %v3021 = vmul.f32 %v3018, %v3020
          %v3022 = vadd.f32 %v3018, %v3021
          %vm3023 = vweird.f32 %v2692
          %vm3024 = vweird.f32 %v3018
          %vm3025 = vmor %vm3023, %vm3024
          %v3026 = vsel %vm3025, %v3018, %v3022
          %v3027 = vand.u32 2147483647, %v2692
          %vm3028 = vcmp.eq.f32.partialorder %v3027, 8.507059e+37
          %v3029 = vand.u32 %v2692, 2147483648
          %v3030 = vor.u32 1.1754944e-38, %v3029
          %v3031 = vsel %vm3028, %v3030, %v3026
          %v3032 = vmul.f32 1.0, %v3031
          %v3033 = vrcp.pop %v2693
          %v3034 = vmul.f32 %v2693, %v3033
          %v3035 = vsub.f32 1.0, %v3034
          %v3036 = vmul.f32 %v3033, %v3035
          %v3037 = vadd.f32 %v3033, %v3036
          %vm3038 = vweird.f32 %v2693
          %vm3039 = vweird.f32 %v3033
          %vm3040 = vmor %vm3038, %vm3039
          %v3041 = vsel %vm3040, %v3033, %v3037
          %v3042 = vand.u32 2147483647, %v2693
          %vm3043 = vcmp.eq.f32.partialorder %v3042, 8.507059e+37
          %v3044 = vand.u32 %v2693, 2147483648
          %v3045 = vor.u32 1.1754944e-38, %v3044
          %v3046 = vsel %vm3043, %v3045, %v3041
          %v3047 = vmul.f32 1.0, %v3046
          %v3048 = vrcp.pop %v2694
          %v3049 = vmul.f32 %v2694, %v3048
          %v3050 = vsub.f32 1.0, %v3049
          %v3051 = vmul.f32 %v3048, %v3050
          %v3052 = vadd.f32 %v3048, %v3051
          %vm3053 = vweird.f32 %v2694
          %vm3054 = vweird.f32 %v3048
          %vm3055 = vmor %vm3053, %vm3054
          %v3056 = vsel %vm3055, %v3048, %v3052
          %v3057 = vand.u32 2147483647, %v2694
          %vm3058 = vcmp.eq.f32.partialorder %v3057, 8.507059e+37
          %v3059 = vand.u32 %v2694, 2147483648
          %v3060 = vor.u32 1.1754944e-38, %v3059
          %v3061 = vsel %vm3058, %v3060, %v3056
          %v3062 = vmul.f32 1.0, %v3061
          %v3063 = vrcp.pop %v2695
          %v3064 = vmul.f32 %v2695, %v3063
          %v3065 = vsub.f32 1.0, %v3064
          %v3066 = vmul.f32 %v3063, %v3065
          %v3067 = vadd.f32 %v3063, %v3066
          %vm3068 = vweird.f32 %v2695
          %vm3069 = vweird.f32 %v3063
          %vm3070 = vmor %vm3068, %vm3069
          %v3071 = vsel %vm3070, %v3063, %v3067
          %v3072 = vand.u32 2147483647, %v2695
          %vm3073 = vcmp.eq.f32.partialorder %v3072, 8.507059e+37
          %v3074 = vand.u32 %v2695, 2147483648
          %v3075 = vor.u32 1.1754944e-38, %v3074
          %v3076 = vsel %vm3073, %v3075, %v3071
          %v3077 = vmul.f32 1.0, %v3076
          %v3078 = vrcp.pop %v2696
          %v3079 = vmul.f32 %v2696, %v3078
          %v3080 = vsub.f32 1.0, %v3079
          %v3081 = vmul.f32 %v3078, %v3080
          %v3082 = vadd.f32 %v3078, %v3081
          %vm3083 = vweird.f32 %v2696
          %vm3084 = vweird.f32 %v3078
          %vm3085 = vmor %vm3083, %vm3084
          %v3086 = vsel %vm3085, %v3078, %v3082
          %v3087 = vand.u32 2147483647, %v2696
          %vm3088 = vcmp.eq.f32.partialorder %v3087, 8.507059e+37
          %v3089 = vand.u32 %v2696, 2147483648
          %v3090 = vor.u32 1.1754944e-38, %v3089
          %v3091 = vsel %vm3088, %v3090, %v3086
          %v3092 = vmul.f32 1.0, %v3091
          %v3093 = vrcp.pop %v2697
          %v3094 = vmul.f32 %v2697, %v3093
          %v3095 = vsub.f32 1.0, %v3094
          %v3096 = vmul.f32 %v3093, %v3095
          %v3097 = vadd.f32 %v3093, %v3096
          %vm3098 = vweird.f32 %v2697
          %vm3099 = vweird.f32 %v3093
          %vm3100 = vmor %vm3098, %vm3099
          %v3101 = vsel %vm3100, %v3093, %v3097
          %v3102 = vand.u32 2147483647, %v2697
          %vm3103 = vcmp.eq.f32.partialorder %v3102, 8.507059e+37
          %v3104 = vand.u32 %v2697, 2147483648
          %v3105 = vor.u32 1.1754944e-38, %v3104
          %v3106 = vsel %vm3103, %v3105, %v3101
          %v3107 = vmul.f32 1.0, %v3106
          %v3108 = vrcp.pop %v2698
          %v3109 = vmul.f32 %v2698, %v3108
          %v3110 = vsub.f32 1.0, %v3109
          %v3111 = vmul.f32 %v3108, %v3110
          %v3112 = vadd.f32 %v3108, %v3111
          %vm3113 = vweird.f32 %v2698
          %vm3114 = vweird.f32 %v3108
          %vm3115 = vmor %vm3113, %vm3114
          %v3116 = vsel %vm3115, %v3108, %v3112
          %v3117 = vand.u32 2147483647, %v2698
          %vm3118 = vcmp.eq.f32.partialorder %v3117, 8.507059e+37
          %v3119 = vand.u32 %v2698, 2147483648
          %v3120 = vor.u32 1.1754944e-38, %v3119
          %v3121 = vsel %vm3118, %v3120, %v3116
          %v3122 = vmul.f32 1.0, %v3121
          %v3123 = vrcp.pop %v2699
          %v3124 = vmul.f32 %v2699, %v3123
          %v3125 = vsub.f32 1.0, %v3124
          %v3126 = vmul.f32 %v3123, %v3125
          %v3127 = vadd.f32 %v3123, %v3126
          %vm3128 = vweird.f32 %v2699
          %vm3129 = vweird.f32 %v3123
          %vm3130 = vmor %vm3128, %vm3129
          %v3131 = vsel %vm3130, %v3123, %v3127
          %v3132 = vand.u32 2147483647, %v2699
          %vm3133 = vcmp.eq.f32.partialorder %v3132, 8.507059e+37
          %v3134 = vand.u32 %v2699, 2147483648
          %v3135 = vor.u32 1.1754944e-38, %v3134
          %v3136 = vsel %vm3133, %v3135, %v3131
          %v3137 = vmul.f32 1.0, %v3136
          %v3138 = vrcp.pop %v2700
          %v3139 = vmul.f32 %v2700, %v3138
          %v3140 = vsub.f32 1.0, %v3139
          %v3141 = vmul.f32 %v3138, %v3140
          %v3142 = vadd.f32 %v3138, %v3141
          %vm3143 = vweird.f32 %v2700
          %vm3144 = vweird.f32 %v3138
          %vm3145 = vmor %vm3143, %vm3144
          %v3146 = vsel %vm3145, %v3138, %v3142
          %v3147 = vand.u32 2147483647, %v2700
          %vm3148 = vcmp.eq.f32.partialorder %v3147, 8.507059e+37
          %v3149 = vand.u32 %v2700, 2147483648
          %v3150 = vor.u32 1.1754944e-38, %v3149
          %v3151 = vsel %vm3148, %v3150, %v3146
          %v3152 = vmul.f32 1.0, %v3151
          %v3153 = vrcp.pop %v2701
          %v3154 = vmul.f32 %v2701, %v3153
          %v3155 = vsub.f32 1.0, %v3154
          %v3156 = vmul.f32 %v3153, %v3155
          %v3157 = vadd.f32 %v3153, %v3156
          %vm3158 = vweird.f32 %v2701
          %vm3159 = vweird.f32 %v3153
          %vm3160 = vmor %vm3158, %vm3159
          %v3161 = vsel %vm3160, %v3153, %v3157
          %v3162 = vand.u32 2147483647, %v2701
          %vm3163 = vcmp.eq.f32.partialorder %v3162, 8.507059e+37
          %v3164 = vand.u32 %v2701, 2147483648
          %v3165 = vor.u32 1.1754944e-38, %v3164
          %v3166 = vsel %vm3163, %v3165, %v3161
          %v3167 = vmul.f32 1.0, %v3166
          %v3168 = vrcp.pop %v2702
          %v3169 = vmul.f32 %v2702, %v3168
          %v3170 = vsub.f32 1.0, %v3169
          %v3171 = vmul.f32 %v3168, %v3170
          %v3172 = vadd.f32 %v3168, %v3171
          %vm3173 = vweird.f32 %v2702
          %vm3174 = vweird.f32 %v3168
          %vm3175 = vmor %vm3173, %vm3174
          %v3176 = vsel %vm3175, %v3168, %v3172
          %v3177 = vand.u32 2147483647, %v2702
          %vm3178 = vcmp.eq.f32.partialorder %v3177, 8.507059e+37
          %v3179 = vand.u32 %v2702, 2147483648
          %v3180 = vor.u32 1.1754944e-38, %v3179
          %v3181 = vsel %vm3178, %v3180, %v3176
          %v3182 = vmul.f32 1.0, %v3181
          %v3183 = vmul.f32 %v2717, %v486
          %v3184 = vmul.f32 %v2732, %v491
          %v3185 = vmul.f32 %v2747, %v496
          %v3186 = vmul.f32 %v2762, %v501
          %v3187 = vmul.f32 %v2777, %v506
          %v3188 = vmul.f32 %v2792, %v511
          %v3189 = vmul.f32 %v2807, %v516
          %v3190 = vmul.f32 %v2822, %v521
          %v3191 = vmul.f32 %v2837, %v526
          %v3192 = vmul.f32 %v2852, %v531
          %v3193 = vmul.f32 %v2867, %v536
          %v3194 = vmul.f32 %v2882, %v541
          %v3195 = vmul.f32 %v2897, %v546
          %v3196 = vmul.f32 %v2912, %v551
          %v3197 = vmul.f32 %v2927, %v556
          %v3198 = vmul.f32 %v2942, %v561
          %v3199 = vmul.f32 %v2957, %v566
          %v3200 = vmul.f32 %v2972, %v571
          %v3201 = vmul.f32 %v2987, %v576
          %v3202 = vmul.f32 %v3002, %v581
          %v3203 = vmul.f32 %v3017, %v586
          %v3204 = vmul.f32 %v3032, %v591
          %v3205 = vmul.f32 %v3047, %v596
          %v3206 = vmul.f32 %v3062, %v601
          %v3207 = vmul.f32 %v3077, %v606
          %v3208 = vmul.f32 %v3092, %v611
          %v3209 = vmul.f32 %v3107, %v616
          %v3210 = vmul.f32 %v3122, %v621
          %v3211 = vmul.f32 %v3137, %v626
          %v3212 = vmul.f32 %v3152, %v631
          %v3213 = vmul.f32 %v3167, %v636
          %v3214 = vmul.f32 %v3182, %v641
          %v3215 = vmul.f32 %v2105, 0.5
          %v3216 = vmul.f32 %v2106, 0.5
          %v3217 = vmul.f32 %v2107, 0.5
          %v3218 = vmul.f32 %v2108, 0.5
          %v3219 = vmul.f32 %v2109, 0.5
          %v3220 = vmul.f32 %v2110, 0.5
          %v3221 = vmul.f32 %v2111, 0.5
          %v3222 = vmul.f32 %v2112, 0.5
          %v3223 = vmul.f32 %v2113, 0.5
          %v3224 = vmul.f32 %v2114, 0.5
          %v3225 = vmul.f32 %v2115, 0.5
          %v3226 = vmul.f32 %v2116, 0.5
          %v3227 = vmul.f32 %v2117, 0.5
          %v3228 = vmul.f32 %v2118, 0.5
          %v3229 = vmul.f32 %v2119, 0.5
          %v3230 = vmul.f32 %v2120, 0.5
          %v3231 = vmul.f32 %v2121, 0.5
          %v3232 = vmul.f32 %v2122, 0.5
          %v3233 = vmul.f32 %v2123, 0.5
          %v3234 = vmul.f32 %v2124, 0.5
          %v3235 = vmul.f32 %v2125, 0.5
          %v3236 = vmul.f32 %v2126, 0.5
          %v3237 = vmul.f32 %v2127, 0.5
          %v3238 = vmul.f32 %v2128, 0.5
          %v3239 = vmul.f32 %v2129, 0.5
          %v3240 = vmul.f32 %v2130, 0.5
          %v3241 = vmul.f32 %v2131, 0.5
          %v3242 = vmul.f32 %v2132, 0.5
          %v3243 = vmul.f32 %v2133, 0.5
          %v3244 = vmul.f32 %v2134, 0.5
          %v3245 = vmul.f32 %v2135, 0.5
          %v3246 = vmul.f32 %v2136, 0.5
          %v3247 = vmul.f32 %v2105, 0.044715
          %v3248 = vmul.f32 %v2106, 0.044715
          %v3249 = vmul.f32 %v2107, 0.044715
          %v3250 = vmul.f32 %v2108, 0.044715
          %v3251 = vmul.f32 %v2109, 0.044715
          %v3252 = vmul.f32 %v2110, 0.044715
          %v3253 = vmul.f32 %v2111, 0.044715
          %v3254 = vmul.f32 %v2112, 0.044715
          %v3255 = vmul.f32 %v2113, 0.044715
          %v3256 = vmul.f32 %v2114, 0.044715
          %v3257 = vmul.f32 %v2115, 0.044715
          %v3258 = vmul.f32 %v2116, 0.044715
          %v3259 = vmul.f32 %v2117, 0.044715
          %v3260 = vmul.f32 %v2118, 0.044715
          %v3261 = vmul.f32 %v2119, 0.044715
          %v3262 = vmul.f32 %v2120, 0.044715
          %v3263 = vmul.f32 %v2121, 0.044715
          %v3264 = vmul.f32 %v2122, 0.044715
          %v3265 = vmul.f32 %v2123, 0.044715
          %v3266 = vmul.f32 %v2124, 0.044715
          %v3267 = vmul.f32 %v2125, 0.044715
          %v3268 = vmul.f32 %v2126, 0.044715
          %v3269 = vmul.f32 %v2127, 0.044715
          %v3270 = vmul.f32 %v2128, 0.044715
          %v3271 = vmul.f32 %v2129, 0.044715
          %v3272 = vmul.f32 %v2130, 0.044715
          %v3273 = vmul.f32 %v2131, 0.044715
          %v3274 = vmul.f32 %v2132, 0.044715
          %v3275 = vmul.f32 %v2133, 0.044715
          %v3276 = vmul.f32 %v2134, 0.044715
          %v3277 = vmul.f32 %v2135, 0.044715
          %v3278 = vmul.f32 %v2136, 0.044715
          %v3279 = vmul.f32 %v3247, %v2105
          %v3280 = vmul.f32 %v3248, %v2106
          %v3281 = vmul.f32 %v3249, %v2107
          %v3282 = vmul.f32 %v3250, %v2108
          %v3283 = vmul.f32 %v3251, %v2109
          %v3284 = vmul.f32 %v3252, %v2110
          %v3285 = vmul.f32 %v3253, %v2111
          %v3286 = vmul.f32 %v3254, %v2112
          %v3287 = vmul.f32 %v3255, %v2113
          %v3288 = vmul.f32 %v3256, %v2114
          %v3289 = vmul.f32 %v3257, %v2115
          %v3290 = vmul.f32 %v3258, %v2116
          %v3291 = vmul.f32 %v3259, %v2117
          %v3292 = vmul.f32 %v3260, %v2118
          %v3293 = vmul.f32 %v3261, %v2119
          %v3294 = vmul.f32 %v3262, %v2120
          %v3295 = vmul.f32 %v3263, %v2121
          %v3296 = vmul.f32 %v3264, %v2122
          %v3297 = vmul.f32 %v3265, %v2123
          %v3298 = vmul.f32 %v3266, %v2124
          %v3299 = vmul.f32 %v3267, %v2125
          %v3300 = vmul.f32 %v3268, %v2126
          %v3301 = vmul.f32 %v3269, %v2127
          %v3302 = vmul.f32 %v3270, %v2128
          %v3303 = vmul.f32 %v3271, %v2129
          %v3304 = vmul.f32 %v3272, %v2130
          %v3305 = vmul.f32 %v3273, %v2131
          %v3306 = vmul.f32 %v3274, %v2132
          %v3307 = vmul.f32 %v3275, %v2133
          %v3308 = vmul.f32 %v3276, %v2134
          %v3309 = vmul.f32 %v3277, %v2135
          %v3310 = vmul.f32 %v3278, %v2136
          %v3311 = vmul.f32 %v3279, %v2105
          %v3312 = vmul.f32 %v3280, %v2106
          %v3313 = vmul.f32 %v3281, %v2107
          %v3314 = vmul.f32 %v3282, %v2108
          %v3315 = vmul.f32 %v3283, %v2109
          %v3316 = vmul.f32 %v3284, %v2110
          %v3317 = vmul.f32 %v3285, %v2111
          %v3318 = vmul.f32 %v3286, %v2112
          %v3319 = vmul.f32 %v3287, %v2113
          %v3320 = vmul.f32 %v3288, %v2114
          %v3321 = vmul.f32 %v3289, %v2115
          %v3322 = vmul.f32 %v3290, %v2116
          %v3323 = vmul.f32 %v3291, %v2117
          %v3324 = vmul.f32 %v3292, %v2118
          %v3325 = vmul.f32 %v3293, %v2119
          %v3326 = vmul.f32 %v3294, %v2120
          %v3327 = vmul.f32 %v3295, %v2121
          %v3328 = vmul.f32 %v3296, %v2122
          %v3329 = vmul.f32 %v3297, %v2123
          %v3330 = vmul.f32 %v3298, %v2124
          %v3331 = vmul.f32 %v3299, %v2125
          %v3332 = vmul.f32 %v3300, %v2126
          %v3333 = vmul.f32 %v3301, %v2127
          %v3334 = vmul.f32 %v3302, %v2128
          %v3335 = vmul.f32 %v3303, %v2129
          %v3336 = vmul.f32 %v3304, %v2130
          %v3337 = vmul.f32 %v3305, %v2131
          %v3338 = vmul.f32 %v3306, %v2132
          %v3339 = vmul.f32 %v3307, %v2133
          %v3340 = vmul.f32 %v3308, %v2134
          %v3341 = vmul.f32 %v3309, %v2135
          %v3342 = vmul.f32 %v3310, %v2136
          %v3343 = vadd.f32 %v2105, %v3311
          %v3344 = vadd.f32 %v2106, %v3312
          %v3345 = vadd.f32 %v2107, %v3313
          %v3346 = vadd.f32 %v2108, %v3314
          %v3347 = vadd.f32 %v2109, %v3315
          %v3348 = vadd.f32 %v2110, %v3316
          %v3349 = vadd.f32 %v2111, %v3317
          %v3350 = vadd.f32 %v2112, %v3318
          %v3351 = vadd.f32 %v2113, %v3319
          %v3352 = vadd.f32 %v2114, %v3320
          %v3353 = vadd.f32 %v2115, %v3321
          %v3354 = vadd.f32 %v2116, %v3322
          %v3355 = vadd.f32 %v2117, %v3323
          %v3356 = vadd.f32 %v2118, %v3324
          %v3357 = vadd.f32 %v2119, %v3325
          %v3358 = vadd.f32 %v2120, %v3326
          %v3359 = vadd.f32 %v2121, %v3327
          %v3360 = vadd.f32 %v2122, %v3328
          %v3361 = vadd.f32 %v2123, %v3329
          %v3362 = vadd.f32 %v2124, %v3330
          %v3363 = vadd.f32 %v2125, %v3331
          %v3364 = vadd.f32 %v2126, %v3332
          %v3365 = vadd.f32 %v2127, %v3333
          %v3366 = vadd.f32 %v2128, %v3334
          %v3367 = vadd.f32 %v2129, %v3335
          %v3368 = vadd.f32 %v2130, %v3336
          %v3369 = vadd.f32 %v2131, %v3337
          %v3370 = vadd.f32 %v2132, %v3338
          %v3371 = vadd.f32 %v2133, %v3339
          %v3372 = vadd.f32 %v2134, %v3340
          %v3373 = vadd.f32 %v2135, %v3341
          %v3374 = vadd.f32 %v2136, %v3342
          %v3375 = vmul.f32 %v3343, 0.7978846
          %v3376 = vmul.f32 %v3344, 0.7978846
          %v3377 = vmul.f32 %v3345, 0.7978846
          %v3378 = vmul.f32 %v3346, 0.7978846
          %v3379 = vmul.f32 %v3347, 0.7978846
          %v3380 = vmul.f32 %v3348, 0.7978846
          %v3381 = vmul.f32 %v3349, 0.7978846
          %v3382 = vmul.f32 %v3350, 0.7978846
          %v3383 = vmul.f32 %v3351, 0.7978846
          %v3384 = vmul.f32 %v3352, 0.7978846
          %v3385 = vmul.f32 %v3353, 0.7978846
          %v3386 = vmul.f32 %v3354, 0.7978846
          %v3387 = vmul.f32 %v3355, 0.7978846
          %v3388 = vmul.f32 %v3356, 0.7978846
          %v3389 = vmul.f32 %v3357, 0.7978846
          %v3390 = vmul.f32 %v3358, 0.7978846
          %v3391 = vmul.f32 %v3359, 0.7978846
          %v3392 = vmul.f32 %v3360, 0.7978846
          %v3393 = vmul.f32 %v3361, 0.7978846
          %v3394 = vmul.f32 %v3362, 0.7978846
          %v3395 = vmul.f32 %v3363, 0.7978846
          %v3396 = vmul.f32 %v3364, 0.7978846
          %v3397 = vmul.f32 %v3365, 0.7978846
          %v3398 = vmul.f32 %v3366, 0.7978846
          %v3399 = vmul.f32 %v3367, 0.7978846
          %v3400 = vmul.f32 %v3368, 0.7978846
          %v3401 = vmul.f32 %v3369, 0.7978846
          %v3402 = vmul.f32 %v3370, 0.7978846
          %v3403 = vmul.f32 %v3371, 0.7978846
          %v3404 = vmul.f32 %v3372, 0.7978846
          %v3405 = vmul.f32 %v3373, 0.7978846
          %v3406 = vmul.f32 %v3374, 0.7978846
          %v3407 = vtanh.pop %v3375
          %v3408 = vtanh.pop %v3376
          %v3409 = vtanh.pop %v3377
          %v3410 = vtanh.pop %v3378
          %v3411 = vtanh.pop %v3379
          %v3412 = vtanh.pop %v3380
          %v3413 = vtanh.pop %v3381
          %v3414 = vtanh.pop %v3382
          %v3415 = vtanh.pop %v3383
          %v3416 = vtanh.pop %v3384
          %v3417 = vtanh.pop %v3385
          %v3418 = vtanh.pop %v3386
          %v3419 = vtanh.pop %v3387
          %v3420 = vtanh.pop %v3388
          %v3421 = vtanh.pop %v3389
          %v3422 = vtanh.pop %v3390
          %v3423 = vtanh.pop %v3391
          %v3424 = vtanh.pop %v3392
          %v3425 = vtanh.pop %v3393
          %v3426 = vtanh.pop %v3394
          %v3427 = vtanh.pop %v3395
          %v3428 = vtanh.pop %v3396
          %v3429 = vtanh.pop %v3397
          %v3430 = vtanh.pop %v3398
          %v3431 = vtanh.pop %v3399
          %v3432 = vtanh.pop %v3400
          %v3433 = vtanh.pop %v3401
          %v3434 = vtanh.pop %v3402
          %v3435 = vtanh.pop %v3403
          %v3436 = vtanh.pop %v3404
          %v3437 = vtanh.pop %v3405
          %v3438 = vtanh.pop %v3406
          %v3439 = vadd.f32 %v3407, 1.0
          %v3440 = vadd.f32 %v3408, 1.0
          %v3441 = vadd.f32 %v3409, 1.0
          %v3442 = vadd.f32 %v3410, 1.0
          %v3443 = vadd.f32 %v3411, 1.0
          %v3444 = vadd.f32 %v3412, 1.0
          %v3445 = vadd.f32 %v3413, 1.0
          %v3446 = vadd.f32 %v3414, 1.0
          %v3447 = vadd.f32 %v3415, 1.0
          %v3448 = vadd.f32 %v3416, 1.0
          %v3449 = vadd.f32 %v3417, 1.0
          %v3450 = vadd.f32 %v3418, 1.0
          %v3451 = vadd.f32 %v3419, 1.0
          %v3452 = vadd.f32 %v3420, 1.0
          %v3453 = vadd.f32 %v3421, 1.0
          %v3454 = vadd.f32 %v3422, 1.0
          %v3455 = vadd.f32 %v3423, 1.0
          %v3456 = vadd.f32 %v3424, 1.0
          %v3457 = vadd.f32 %v3425, 1.0
          %v3458 = vadd.f32 %v3426, 1.0
          %v3459 = vadd.f32 %v3427, 1.0
          %v3460 = vadd.f32 %v3428, 1.0
          %v3461 = vadd.f32 %v3429, 1.0
          %v3462 = vadd.f32 %v3430, 1.0
          %v3463 = vadd.f32 %v3431, 1.0
          %v3464 = vadd.f32 %v3432, 1.0
          %v3465 = vadd.f32 %v3433, 1.0
          %v3466 = vadd.f32 %v3434, 1.0
          %v3467 = vadd.f32 %v3435, 1.0
          %v3468 = vadd.f32 %v3436, 1.0
          %v3469 = vadd.f32 %v3437, 1.0
          %v3470 = vadd.f32 %v3438, 1.0
          %v3471 = vmul.f32 %v3215, %v3439
          %v3472 = vmul.f32 %v3216, %v3440
          %v3473 = vmul.f32 %v3217, %v3441
          %v3474 = vmul.f32 %v3218, %v3442
          %v3475 = vmul.f32 %v3219, %v3443
          %v3476 = vmul.f32 %v3220, %v3444
          %v3477 = vmul.f32 %v3221, %v3445
          %v3478 = vmul.f32 %v3222, %v3446
          %v3479 = vmul.f32 %v3223, %v3447
          %v3480 = vmul.f32 %v3224, %v3448
          %v3481 = vmul.f32 %v3225, %v3449
          %v3482 = vmul.f32 %v3226, %v3450
          %v3483 = vmul.f32 %v3227, %v3451
          %v3484 = vmul.f32 %v3228, %v3452
          %v3485 = vmul.f32 %v3229, %v3453
          %v3486 = vmul.f32 %v3230, %v3454
          %v3487 = vmul.f32 %v3231, %v3455
          %v3488 = vmul.f32 %v3232, %v3456
          %v3489 = vmul.f32 %v3233, %v3457
          %v3490 = vmul.f32 %v3234, %v3458
          %v3491 = vmul.f32 %v3235, %v3459
          %v3492 = vmul.f32 %v3236, %v3460
          %v3493 = vmul.f32 %v3237, %v3461
          %v3494 = vmul.f32 %v3238, %v3462
          %v3495 = vmul.f32 %v3239, %v3463
          %v3496 = vmul.f32 %v3240, %v3464
          %v3497 = vmul.f32 %v3241, %v3465
          %v3498 = vmul.f32 %v3242, %v3466
          %v3499 = vmul.f32 %v3243, %v3467
          %v3500 = vmul.f32 %v3244, %v3468
          %v3501 = vmul.f32 %v3245, %v3469
          %v3502 = vmul.f32 %v3246, %v3470
          %v3503 = vmul.f32 %v3183, %v3471
          %v3504 = vmul.f32 %v3184, %v3472
          %v3505 = vmul.f32 %v3185, %v3473
          %v3506 = vmul.f32 %v3186, %v3474
          %v3507 = vmul.f32 %v3187, %v3475
          %v3508 = vmul.f32 %v3188, %v3476
          %v3509 = vmul.f32 %v3189, %v3477
          %v3510 = vmul.f32 %v3190, %v3478
          %v3511 = vmul.f32 %v3191, %v3479
          %v3512 = vmul.f32 %v3192, %v3480
          %v3513 = vmul.f32 %v3193, %v3481
          %v3514 = vmul.f32 %v3194, %v3482
          %v3515 = vmul.f32 %v3195, %v3483
          %v3516 = vmul.f32 %v3196, %v3484
          %v3517 = vmul.f32 %v3197, %v3485
          %v3518 = vmul.f32 %v3198, %v3486
          %v3519 = vmul.f32 %v3199, %v3487
          %v3520 = vmul.f32 %v3200, %v3488
          %v3521 = vmul.f32 %v3201, %v3489
          %v3522 = vmul.f32 %v3202, %v3490
          %v3523 = vmul.f32 %v3203, %v3491
          %v3524 = vmul.f32 %v3204, %v3492
          %v3525 = vmul.f32 %v3205, %v3493
          %v3526 = vmul.f32 %v3206, %v3494
          %v3527 = vmul.f32 %v3207, %v3495
          %v3528 = vmul.f32 %v3208, %v3496
          %v3529 = vmul.f32 %v3209, %v3497
          %v3530 = vmul.f32 %v3210, %v3498
          %v3531 = vmul.f32 %v3211, %v3499
          %v3532 = vmul.f32 %v3212, %v3500
          %v3533 = vmul.f32 %v3213, %v3501
          %v3534 = vmul.f32 %v3214, %v3502
          %v3535 = vsub.f32 1.0, %v3183
          %v3536 = vsub.f32 1.0, %v3184
          %v3537 = vsub.f32 1.0, %v3185
          %v3538 = vsub.f32 1.0, %v3186
          %v3539 = vsub.f32 1.0, %v3187
          %v3540 = vsub.f32 1.0, %v3188
          %v3541 = vsub.f32 1.0, %v3189
          %v3542 = vsub.f32 1.0, %v3190
          %v3543 = vsub.f32 1.0, %v3191
          %v3544 = vsub.f32 1.0, %v3192
          %v3545 = vsub.f32 1.0, %v3193
          %v3546 = vsub.f32 1.0, %v3194
          %v3547 = vsub.f32 1.0, %v3195
          %v3548 = vsub.f32 1.0, %v3196
          %v3549 = vsub.f32 1.0, %v3197
          %v3550 = vsub.f32 1.0, %v3198
          %v3551 = vsub.f32 1.0, %v3199
          %v3552 = vsub.f32 1.0, %v3200
          %v3553 = vsub.f32 1.0, %v3201
          %v3554 = vsub.f32 1.0, %v3202
          %v3555 = vsub.f32 1.0, %v3203
          %v3556 = vsub.f32 1.0, %v3204
          %v3557 = vsub.f32 1.0, %v3205
          %v3558 = vsub.f32 1.0, %v3206
          %v3559 = vsub.f32 1.0, %v3207
          %v3560 = vsub.f32 1.0, %v3208
          %v3561 = vsub.f32 1.0, %v3209
          %v3562 = vsub.f32 1.0, %v3210
          %v3563 = vsub.f32 1.0, %v3211
          %v3564 = vsub.f32 1.0, %v3212
          %v3565 = vsub.f32 1.0, %v3213
          %v3566 = vsub.f32 1.0, %v3214
          %v3567 = vmul.f32 %v3535, %v681
          %v3568 = vmul.f32 %v3536, %v682
          %v3569 = vmul.f32 %v3537, %v683
          %v3570 = vmul.f32 %v3538, %v684
          %v3571 = vmul.f32 %v3539, %v685
          %v3572 = vmul.f32 %v3540, %v686
          %v3573 = vmul.f32 %v3541, %v687
          %v3574 = vmul.f32 %v3542, %v688
          %v3575 = vmul.f32 %v3543, %v689
          %v3576 = vmul.f32 %v3544, %v690
          %v3577 = vmul.f32 %v3545, %v691
          %v3578 = vmul.f32 %v3546, %v692
          %v3579 = vmul.f32 %v3547, %v693
          %v3580 = vmul.f32 %v3548, %v694
          %v3581 = vmul.f32 %v3549, %v695
          %v3582 = vmul.f32 %v3550, %v696
          %v3583 = vmul.f32 %v3551, %v697
          %v3584 = vmul.f32 %v3552, %v698
          %v3585 = vmul.f32 %v3553, %v699
          %v3586 = vmul.f32 %v3554, %v700
          %v3587 = vmul.f32 %v3555, %v701
          %v3588 = vmul.f32 %v3556, %v702
          %v3589 = vmul.f32 %v3557, %v703
          %v3590 = vmul.f32 %v3558, %v704
          %v3591 = vmul.f32 %v3559, %v705
          %v3592 = vmul.f32 %v3560, %v706
          %v3593 = vmul.f32 %v3561, %v707
          %v3594 = vmul.f32 %v3562, %v708
          %v3595 = vmul.f32 %v3563, %v709
          %v3596 = vmul.f32 %v3564, %v710
          %v3597 = vmul.f32 %v3565, %v711
          %v3598 = vmul.f32 %v3566, %v712
          %v3599 = vadd.f32 %v3503, %v3567
          %v3600 = vadd.f32 %v3504, %v3568
          %v3601 = vadd.f32 %v3505, %v3569
          %v3602 = vadd.f32 %v3506, %v3570
          %v3603 = vadd.f32 %v3507, %v3571
          %v3604 = vadd.f32 %v3508, %v3572
          %v3605 = vadd.f32 %v3509, %v3573
          %v3606 = vadd.f32 %v3510, %v3574
          %v3607 = vadd.f32 %v3511, %v3575
          %v3608 = vadd.f32 %v3512, %v3576
          %v3609 = vadd.f32 %v3513, %v3577
          %v3610 = vadd.f32 %v3514, %v3578
          %v3611 = vadd.f32 %v3515, %v3579
          %v3612 = vadd.f32 %v3516, %v3580
          %v3613 = vadd.f32 %v3517, %v3581
          %v3614 = vadd.f32 %v3518, %v3582
          %v3615 = vadd.f32 %v3519, %v3583
          %v3616 = vadd.f32 %v3520, %v3584
          %v3617 = vadd.f32 %v3521, %v3585
          %v3618 = vadd.f32 %v3522, %v3586
          %v3619 = vadd.f32 %v3523, %v3587
          %v3620 = vadd.f32 %v3524, %v3588
          %v3621 = vadd.f32 %v3525, %v3589
          %v3622 = vadd.f32 %v3526, %v3590
          %v3623 = vadd.f32 %v3527, %v3591
          %v3624 = vadd.f32 %v3528, %v3592
          %v3625 = vadd.f32 %v3529, %v3593
          %v3626 = vadd.f32 %v3530, %v3594
          %v3627 = vadd.f32 %v3531, %v3595
          %v3628 = vadd.f32 %v3532, %v3596
          %v3629 = vadd.f32 %v3533, %v3597
          %v3630 = vadd.f32 %v3534, %v3598
        $region77: #{tpu_custom_call.1} parent=55 // loop_footer
          %s680 = sadd.s32 1, %s676
        $region78: #{tpu_custom_call.1} parent=55 // loop_footer_branch
          %675 = sbr.rel target = $region74
        $region79: #{tpu_custom_call.1} parent=55 // loop_exit
          _
        %3631 = vst [vmem:[%s435] sm:$0xff] %v681
        %3632 = vst [vmem:[%s435 + $0x8] sm:$0xff] %v682
        %3633 = vst [vmem:[%s435 + $0x10] sm:$0xff] %v683
        %3634 = vst [vmem:[%s435 + $0x18] sm:$0xff] %v684
        %3635 = vst [vmem:[%s435 + $0x20] sm:$0xff] %v685
        %3636 = vst [vmem:[%s435 + $0x28] sm:$0xff] %v686
        %3637 = vst [vmem:[%s435 + $0x30] sm:$0xff] %v687
        %3638 = vst [vmem:[%s435 + $0x38] sm:$0xff] %v688
        %3639 = vst [vmem:[%s435 + $0x40] sm:$0xff] %v689
        %3640 = vst [vmem:[%s435 + $0x48] sm:$0xff] %v690
        %3641 = vst [vmem:[%s435 + $0x50] sm:$0xff] %v691
        %3642 = vst [vmem:[%s435 + $0x58] sm:$0xff] %v692
        %3643 = vst [vmem:[%s435 + $0x60] sm:$0xff] %v693
        %3644 = vst [vmem:[%s435 + $0x68] sm:$0xff] %v694
        %3645 = vst [vmem:[%s435 + $0x70] sm:$0xff] %v695
        %3646 = vst [vmem:[%s435 + $0x78] sm:$0xff] %v696
        %3647 = vst [vmem:[%s435 + $0x80] sm:$0xff] %v697
        %3648 = vst [vmem:[%s435 + $0x88] sm:$0xff] %v698
        %3649 = vst [vmem:[%s435 + $0x90] sm:$0xff] %v699
        %3650 = vst [vmem:[%s435 + $0x98] sm:$0xff] %v700
        %3651 = vst [vmem:[%s435 + $0xa0] sm:$0xff] %v701
        %3652 = vst [vmem:[%s435 + $0xa8] sm:$0xff] %v702
        %3653 = vst [vmem:[%s435 + $0xb0] sm:$0xff] %v703
        %3654 = vst [vmem:[%s435 + $0xb8] sm:$0xff] %v704
        %3655 = vst [vmem:[%s435 + $0xc0] sm:$0xff] %v705
        %3656 = vst [vmem:[%s435 + $0xc8] sm:$0xff] %v706
        %3657 = vst [vmem:[%s435 + $0xd0] sm:$0xff] %v707
        %3658 = vst [vmem:[%s435 + $0xd8] sm:$0xff] %v708
        %3659 = vst [vmem:[%s435 + $0xe0] sm:$0xff] %v709
        %3660 = vst [vmem:[%s435 + $0xe8] sm:$0xff] %v710
        %3661 = vst [vmem:[%s435 + $0xf0] sm:$0xff] %v711
        %3662 = vst [vmem:[%s435 + $0xf8] sm:$0xff] %v712
        %s3663 = sand.u32 %s240, 1
        %s3664 = scalar_lea.sflag [#allocation4], %s3663
        %s3665 = sand.u32 %s240, 1
        %s3666 = smul.addr %s3665, 256
        %s3667 = scalar_lea.vmem [#allocation10], %s3666
        // Predicated region
        $region80: #{tpu_custom_call.1} parent=55 // pred_check
          %p3668 = pneg %p250
        $region81: #{tpu_custom_call.1} parent=55 // pred_check_branch
          %3670 = sbr.rel (%p3668) target = $region83
        $region82: #{tpu_custom_call.1} parent=55 // pred_region
          %s3671 = smul.u32 32, %s28
          %3673 = vsyncadd %s3664, 0
          %s3674 = smul.addr %s3671, 8
          %s3675 = scalar_lea.hbm %s9, %s3674
          %s3676 = sshll.u32 %s3667, 4
          %s3677 = int_to_ptr.vmem [resolvable:$true] %s3676
          %s3678 = sshll.u32 %s3675, 4
          %s3679 = int_to_ptr.hbm [resolvable:$true] %s3678
          %3684 = dma.vmem_to_hbm [thread:$0]  %s3677, 4096, %s3679, %s3664, 128, 128, 8
        $region83: #{tpu_custom_call.1} parent=55 // pred_fallthru
          _
      $region56: #{tpu_custom_call.1} parent=5 // pred_fallthru
        _
      %p3685 = scmp.le.s32.totalorder 2, %s23
      // Predicated region
      $region84: #{tpu_custom_call.1} parent=5 // pred_check
        %p3686 = pneg %p3685
      $region85: #{tpu_custom_call.1} parent=5 // pred_check_branch
        %3688 = sbr.rel (%p3686) target = $region87
      $region86: #{tpu_custom_call.1} parent=5 // pred_region
        %s3689 = ssub.s32 %s23, 2
        // Predicated region
        $region88: #{tpu_custom_call.1} parent=86 // pred_check
          %p3690 = pneg %p256
        $region89: #{tpu_custom_call.1} parent=86 // pred_check_branch
          %3692 = sbr.rel (%p3690) target = $region91
        $region90: #{tpu_custom_call.1} parent=86 // pred_region
          %s3693 = sand.u32 %s241, 1
          %s3694 = scalar_lea.sflag [#allocation4], %s3693
          %s3695 = sand.u32 %s241, 1
          %s3696 = smul.addr %s3695, 256
          %s3697 = scalar_lea.vmem [#allocation10], %s3696
          %3699 = dma.done %s3694, 4096
        $region91: #{tpu_custom_call.1} parent=86 // pred_fallthru
          _
      $region87: #{tpu_custom_call.1} parent=5 // pred_fallthru
        _
    $region6: #{tpu_custom_call.1} parent=1 // loop_footer
      %s27 = sadd.s32 1, %s23
    $region7: #{tpu_custom_call.1} parent=1 // loop_footer_branch
      %22 = sbr.rel target = $region3
    $region8: #{tpu_custom_call.1} parent=1 // loop_exit
      _
    %3700 = vsyncpa [#allocation3], 1
    %s3701 = scalar_lea.sflag [#allocation3], 1
    %3702 = vsyncpa %s3701, 1
    %3703 = vsyncpa [#allocation6], 1
    %3704 = vsyncpa [#allocation9], 1
    %3705 = vsyncpa [#allocation4], 1
    %s3706 = scalar_lea.sflag [#allocation4], 1
    %3707 = vsyncpa %s3706, 1

</llo_original>
